<compile_context>
chip_gen: v6e
topology: v6e:2x2x1
jax: 0.10.0
libtpu: 0.0.40
codegen_flags: <defaults>
</compile_context>

<pallas_src>
import math
import functools

import jax
import jax.numpy as jnp
from jax.experimental import pallas as pl
from jax.experimental.pallas import tpu as pltpu


# ----------------------------------------------------------------------------
# Fused kernel: one grid step = Bb batch elements, all layers (static unroll).
# ----------------------------------------------------------------------------
def _fused_encoder_kernel(
    x_mel_ref, x_art_ref, pos_ref,
    wqkv_ref, wo_ref, w1_ref, w2_ref, slab_ref,
    out_ref,
    *, num_layers, nhead, eps):

    Bb, S, D = out_ref.shape
    hd = D // nhead
    F = w2_ref.shape[1]
    M = Bb * S

    # ---- prologue: [cls | x_mel | x_art] + pos (cls folded into pos row 0) --
    cls_rows = jnp.zeros((Bb, 1, D), jnp.float32)
    x3 = jnp.concatenate([cls_rows, x_mel_ref[...], x_art_ref[...]], axis=1)
    x3 = x3 + pos_ref[0]                       # (Bb, S, D) + (S, D)
    x = x3.reshape(M, D)                       # fold batch into matmul M dim

    def layer_norm(y, w, b):
        mu = jnp.mean(y, axis=-1, keepdims=True)
        var = jnp.mean((y - mu) ** 2, axis=-1, keepdims=True)
        return (y - mu) * jax.lax.rsqrt(var + eps) * w + b

    # Static unroll over layers; all weights resident in VMEM.
    for l in range(num_layers):
        # ---- self attention --------------------------------------------------
        # single fused QKV matmul (scale already folded into Q cols / bias)
        qkv = jnp.dot(x, wqkv_ref[l], preferred_element_type=jnp.float32)
        qkv = qkv + slab_ref[l, 0:1, 0:3 * D]              # (M, 3D)
        qkv3 = qkv.reshape(Bb, S, 3 * D)

        # per-head score / softmax / PV core (head split is intrinsic at hd=8)
        heads = []
        for h in range(nhead):
            qh = qkv3[:, :, h * hd:(h + 1) * hd]                    # (Bb, S, hd)
            kh = qkv3[:, :, D + h * hd:D + (h + 1) * hd]
            vh = qkv3[:, :, 2 * D + h * hd:2 * D + (h + 1) * hd]
            s = jnp.einsum('bqd,bkd->bqk', qh, kh,
                           preferred_element_type=jnp.float32)      # (Bb, S, S)
            s = s - jnp.max(s, axis=-1, keepdims=True)
            e = jnp.exp(s)
            p = e * pl.reciprocal(jnp.sum(e, axis=-1, keepdims=True), approx=True)
            heads.append(jnp.einsum('bqk,bkd->bqd', p, vh,
                                    preferred_element_type=jnp.float32))

        # concat heads back along lanes -> one (M, D) x (D, D) output projection
        o = jnp.concatenate(heads, axis=-1).reshape(M, D)
        attn = jnp.dot(o, wo_ref[l], preferred_element_type=jnp.float32)
        attn = attn + slab_ref[l, 2:3, 0:D]

        x = layer_norm(x + attn, slab_ref[l, 3:4, 0:D], slab_ref[l, 4:5, 0:D])

        # ---- feed forward (ReLU), pre-transposed weights ---------------------
        h1 = jnp.dot(x, w1_ref[l], preferred_element_type=jnp.float32)
        h1 = jnp.maximum(h1 + slab_ref[l, 1:2, 0:F], 0.0)
        h2 = jnp.dot(h1, w2_ref[l], preferred_element_type=jnp.float32)
        h2 = h2 + slab_ref[l, 5:6, 0:D]

        x = layer_norm(x + h2, slab_ref[l, 6:7, 0:D], slab_ref[l, 7:8, 0:D])

    # Single (Bb, S, D) store per grid step (leading-dim reshape only).
    out_ref[...] = x.reshape(Bb, S, D).astype(out_ref.dtype)


# ----------------------------------------------------------------------------
# Batch-block picker: fill MXU rows while keeping >=2 parallel grid steps
# (v7x has 2 TensorCores; a single grid step would idle one of them).
# ----------------------------------------------------------------------------
def _pick_block_b(batch, seq, target_rows=128):
    cap = max(1, target_rows // seq)
    divs = [d for d in range(1, batch + 1) if batch % d == 0]
    two_step = [d for d in divs if d <= cap and batch // d >= 2]
    if two_step:
        return max(two_step)
    capped = [d for d in divs if d <= cap]
    return max(capped) if capped else 1


# ----------------------------------------------------------------------------
# Wrapper: one pallas_call for the whole stack.
# ----------------------------------------------------------------------------
def transformer_encoder_forward(x_mel, x_art, packed, *, nhead, num_layers):
    B, n_mel, D = x_mel.shape
    _, n_art, _ = x_art.shape
    S = 1 + n_mel + n_art
    F = packed["w1t"].shape[-1]
    L = num_layers
    W = packed["slab"].shape[-1]
    Bb = _pick_block_b(B, S)
    assert B % Bb == 0

    # tiny one-time XLA slice: positional slab, row 0 pre-folded with cls_token
    pos_cls = packed["cls_token"][:, 0:1, :] + packed["pos_embed"][:, 0:1, :]
    pos_all = jnp.concatenate([pos_cls, packed["pos_embed"][:, 1:S, :]], axis=1)

    kernel = functools.partial(_fused_encoder_kernel,
                               num_layers=L, nhead=nhead, eps=1e-5)

    def rep(shape):                       # replicated (weight) block
        nd = len(shape)
        return pl.BlockSpec(shape, lambda b, nd=nd: (0,) * nd)

    out = pl.pallas_call(
        kernel,
        out_shape=jax.ShapeDtypeStruct((B, S, D), jnp.float32),
        grid_spec=pltpu.PrefetchScalarGridSpec(
            num_scalar_prefetch=0,
            grid=(B // Bb,),
            in_specs=[
                pl.BlockSpec((Bb, n_mel, D), lambda b: (b, 0, 0)),   # x_mel
                pl.BlockSpec((Bb, n_art, D), lambda b: (b, 0, 0)),   # x_art
                rep((1, S, D)),                                      # pos (+cls)
                rep((L, D, 3 * D)),                                  # Wqkv (pre-T, Q scaled)
                rep((L, D, D)),                                      # Wo   (pre-T)
                rep((L, D, F)),                                      # W1   (pre-T)
                rep((L, F, D)),                                      # W2   (pre-T)
                rep((L, 8, W)),                                      # bias/LN slab
            ],
            out_specs=pl.BlockSpec((Bb, S, D), lambda b: (b, 0, 0)),
        ),
        compiler_params=pltpu.CompilerParams(
            dimension_semantics=("parallel",)),
    )(x_mel, x_art, pos_all,
      packed["wqkv_t"], packed["wo_t"], packed["w1t"], packed["w2t"],
      packed["slab"])

    return out[:, 0, :], out[:, 1:, :]


# ----------------------------------------------------------------------------
# Parameter init (PyTorch layout) and one-time kernel-layout repack.
# ----------------------------------------------------------------------------
def init_params(key, d_model, nhead, num_layers, dim_feedforward, max_pos=10000):
    # NOTE: the PyTorch module inits cls_token / pos_embed to zeros; we use
    # small random values here purely so the fused prologue is exercised.
    key, k_cls, k_pos = jax.random.split(key, 3)
    params = {
        "cls_token": 0.02 * jax.random.normal(k_cls, (1, 1, d_model), jnp.float32),
        "pos_embed": 0.02 * jax.random.normal(k_pos, (1, max_pos, d_model), jnp.float32),
        "layers": [],
    }
    for _ in range(num_layers):
        key, *ks = jax.random.split(key, 7)
        params["layers"].append({
            "wqkv": 0.02 * jax.random.normal(ks[0], (3 * d_model, d_model), jnp.float32),
            "bqkv": jnp.zeros((1, 3 * d_model), jnp.float32),
            "wo":   0.02 * jax.random.normal(ks[1], (d_model, d_model), jnp.float32),
            "bo":   jnp.zeros((1, d_model), jnp.float32),
            "ln1w": jnp.ones((1, d_model), jnp.float32),
            "ln1b": jnp.zeros((1, d_model), jnp.float32),
            "w1":   0.02 * jax.random.normal(ks[2], (dim_feedforward, d_model), jnp.float32),
            "b1":   0.02 * jax.random.normal(ks[3], (1, dim_feedforward), jnp.float32),
            "w2":   0.02 * jax.random.normal(ks[4], (d_model, dim_feedforward), jnp.float32),
            "b2":   0.02 * jax.random.normal(ks[5], (1, d_model), jnp.float32),
            "ln2w": jnp.ones((1, d_model), jnp.float32),
            "ln2b": jnp.zeros((1, d_model), jnp.float32),
        })
    return params


def pack_params(params, nhead):
    """Host-side, one-time repack: pre-transpose weights, fold the 1/sqrt(hd)
    attention scale into the Q projection, and consolidate every per-layer
    bias / LayerNorm vector into one (L, 8, W) slab (rows: bqkv, b1, bo,
    ln1w, ln1b, b2, ln2w, ln2b)."""
    D = params["layers"][0]["wo"].shape[0]
    F = params["layers"][0]["w1"].shape[0]
    hd = D // nhead
    scale = 1.0 / math.sqrt(hd)
    W = ((max(3 * D, F, D) + 127) // 128) * 128

    def row(v):
        v = v.reshape(-1)
        return jnp.pad(v, (0, W - v.shape[0]))

    def pack_layer(p):
        wqkv_t = p["wqkv"].T                              # (D, 3D), cols [q|k|v]
        wqkv_t = wqkv_t.at[:, :D].multiply(scale)         # fold scale into Q
        bqkv = p["bqkv"][0].at[:D].multiply(scale)        # (3D,), q part scaled
        slab = jnp.stack([
            row(bqkv),            # 0: qkv bias
            row(p["b1"][0]),      # 1: linear1 bias
            row(p["bo"][0]),      # 2: out-proj bias
            row(p["ln1w"][0]),    # 3: ln1 weight
            row(p["ln1b"][0]),    # 4: ln1 bias
            row(p["b2"][0]),      # 5: linear2 bias
            row(p["ln2w"][0]),    # 6: ln2 weight
            row(p["ln2b"][0]),    # 7: ln2 bias
        ], axis=0)                                        # (8, W)
        return dict(wqkv_t=wqkv_t, wo_t=p["wo"].T,
                    w1t=p["w1"].T, w2t=p["w2"].T, slab=slab)

    per_layer = [pack_layer(p) for p in params["layers"]]
    packed = {k: jnp.stack([lyr[k] for lyr in per_layer], axis=0)
              for k in per_layer[0]}
    packed["cls_token"] = params["cls_token"]
    packed["pos_embed"] = params["pos_embed"]
    return packed


# ----------------------------------------------------------------------------
# Pure-JAX reference (PyTorch layout) for a numerical sanity check.
# ----------------------------------------------------------------------------
def reference_forward(x_mel, x_art, params, *, nhead, eps=1e-5):
    hp = jax.lax.Precision.HIGHEST
    B, _, D = x_mel.shape
    hd = D // nhead

    def ln(y, w, b):
        mu = jnp.mean(y, axis=-1, keepdims=True)
        var = jnp.mean((y - mu) ** 2, axis=-1, keepdims=True)
        return (y - mu) * jax.lax.rsqrt(var + eps) * w + b

    cls_tok = jnp.broadcast_to(params["cls_token"], (B, 1, D))
    x = jnp.concatenate([cls_tok, x_mel, x_art], axis=1)
    S = x.shape[1]
    x = x + params["pos_embed"][:, :S, :]
    for p in params["layers"]:
        qkv = jnp.einsum('bsd,ed->bse', x, p["wqkv"], precision=hp) + p["bqkv"][0]
        q, k, v = qkv[..., :D], qkv[..., D:2 * D], qkv[..., 2 * D:]
        q = q.reshape(B, S, nhead, hd).transpose(0, 2, 1, 3)
        k = k.reshape(B, S, nhead, hd).transpose(0, 2, 1, 3)
        v = v.reshape(B, S, nhead, hd).transpose(0, 2, 1, 3)
        s = jnp.einsum('bhqd,bhkd->bhqk', q, k, precision=hp) / math.sqrt(hd)
        a = jax.nn.softmax(s, axis=-1)
        o = jnp.einsum('bhqk,bhkd->bhqd', a, v, precision=hp)
        o = o.transpose(0, 2, 1, 3).reshape(B, S, D)
        attn = jnp.einsum('bsd,ed->bse', o, p["wo"], precision=hp) + p["bo"][0]
        x = ln(x + attn, p["ln1w"][0], p["ln1b"][0])
        h1 = jax.nn.relu(jnp.einsum('bsd,fd->bsf', x, p["w1"], precision=hp) + p["b1"][0])
        h2 = jnp.einsum('bsf,df->bsd', h1, p["w2"], precision=hp) + p["b2"][0]
        x = ln(x + h2, p["ln2w"][0], p["ln2b"][0])
    return x[:, 0, :], x[:, 1:, :]


# ----------------------------------------------------------------------------
if __name__ == "__main__":
    d_model, nhead, num_layers, dim_feedforward = 32, 4, 2, 64
    B, N_mel, N_art = 4, 8, 7          # seq_len = 1 + 8 + 7 = 16; Bb=2 -> grid=(2,)

    key = jax.random.PRNGKey(0)
    k_mel, k_art, k_par = jax.random.split(key, 3)
    x_mel = jax.random.normal(k_mel, (B, N_mel, d_model), jnp.float32)
    x_art = jax.random.normal(k_art, (B, N_art, d_model), jnp.float32)

    params = init_params(k_par, d_model, nhead, num_layers, dim_feedforward)
    packed = pack_params(params, nhead)

    fwd = jax.jit(functools.partial(transformer_encoder_forward,
                                    nhead=nhead, num_layers=num_layers))
    cls_emb, tokens = fwd(x_mel, x_art, packed)
    jax.block_until_ready((cls_emb, tokens))

    assert cls_emb.shape == (B, d_model)
    assert tokens.shape == (B, N_mel + N_art, d_model)

    # numerical sanity check vs. pure-JAX reference (loose tol: approx recip)
    ref_cls, ref_tok = reference_forward(x_mel, x_art, params, nhead=nhead)
    err = max(float(jnp.max(jnp.abs(cls_emb - ref_cls))),
              float(jnp.max(jnp.abs(tokens - ref_tok))))
    assert err < 2e-2, f"max abs error vs reference: {err}"

    print("KERNEL_OK")
</pallas_src>

<mosaic_0001>
module attributes {stable_mosaic.version = 11 : i64} {
  func.func @_fused_encoder_kernel(%arg0: i32, %arg1: memref<2x8x32xf32, #tpu.memory_space<vmem>>, %arg2: memref<2x7x32xf32, #tpu.memory_space<vmem>>, %arg3: memref<1x16x32xf32, #tpu.memory_space<vmem>>, %arg4: memref<2x32x96xf32, #tpu.memory_space<vmem>>, %arg5: memref<2x32x32xf32, #tpu.memory_space<vmem>>, %arg6: memref<2x32x64xf32, #tpu.memory_space<vmem>>, %arg7: memref<2x64x32xf32, #tpu.memory_space<vmem>>, %arg8: memref<2x8x128xf32, #tpu.memory_space<vmem>>, %arg9: memref<2x16x32xf32, #tpu.memory_space<vmem>>) attributes {dimension_semantics = [#tpu.dimension_semantics<parallel>], iteration_bounds = array<i64: 2>, scalar_prefetch = 0 : i64, scratch_operands = 0 : i64, tpu.core_type = #tpu.core_type<tc>, window_params = [{transform_indices = @transform_0, window_bounds = array<i64: 2, 8, 32>}, {transform_indices = @transform_1, window_bounds = array<i64: 2, 7, 32>}, {pipeline_mode = #tpu.pipeline_mode<synchronous>, transform_indices = @transform_2, window_bounds = array<i64: 1, 16, 32>}, {pipeline_mode = #tpu.pipeline_mode<synchronous>, transform_indices = @transform_3, window_bounds = array<i64: 2, 32, 96>}, {pipeline_mode = #tpu.pipeline_mode<synchronous>, transform_indices = @transform_4, window_bounds = array<i64: 2, 32, 32>}, {pipeline_mode = #tpu.pipeline_mode<synchronous>, transform_indices = @transform_5, window_bounds = array<i64: 2, 32, 64>}, {pipeline_mode = #tpu.pipeline_mode<synchronous>, transform_indices = @transform_6, window_bounds = array<i64: 2, 64, 32>}, {pipeline_mode = #tpu.pipeline_mode<synchronous>, transform_indices = @transform_7, window_bounds = array<i64: 2, 8, 128>}, {transform_indices = @transform_8, window_bounds = array<i64: 2, 16, 32>}]} {
    %cst = arith.constant 0.000000e+00 : f32
    %0 = vector.broadcast %cst : f32 to vector<2x1x32xf32>
    %c0 = arith.constant 0 : index
    %c0_0 = arith.constant 0 : index
    %c0_1 = arith.constant 0 : index
    %1 = vector.load %arg1[%c0, %c0_0, %c0_1] : memref<2x8x32xf32, #tpu.memory_space<vmem>>, vector<2x8x32xf32>
    %c0_2 = arith.constant 0 : index
    %c0_3 = arith.constant 0 : index
    %c0_4 = arith.constant 0 : index
    %2 = vector.load %arg2[%c0_2, %c0_3, %c0_4] : memref<2x7x32xf32, #tpu.memory_space<vmem>>, vector<2x7x32xf32>
    %3 = tpu.concatenate %0, %1, %2 in 1 : vector<2x1x32xf32>, vector<2x8x32xf32>, vector<2x7x32xf32> -> vector<2x16x32xf32>
    %c0_5 = arith.constant 0 : index
    %c0_6 = arith.constant 0 : index
    %c0_7 = arith.constant 0 : index
    %4 = vector.load %arg3[%c0_5, %c0_6, %c0_7] : memref<1x16x32xf32, #tpu.memory_space<vmem>>, vector<1x16x32xf32>
    %5 = vector.shape_cast %4 : vector<1x16x32xf32> to vector<16x32xf32>
    %6 = vector.shape_cast %5 : vector<16x32xf32> to vector<1x16x32xf32>
    %7 = vector.broadcast %6 : vector<1x16x32xf32> to vector<2x16x32xf32>
    %8 = arith.addf %3, %7 : vector<2x16x32xf32>
    %9 = vector.shape_cast %8 : vector<2x16x32xf32> to vector<32x32xf32>
    %c0_8 = arith.constant 0 : index
    %c0_9 = arith.constant 0 : index
    %c0_10 = arith.constant 0 : index
    %10 = vector.load %arg4[%c0_8, %c0_9, %c0_10] : memref<2x32x96xf32, #tpu.memory_space<vmem>>, vector<1x32x96xf32>
    %11 = vector.shape_cast %10 : vector<1x32x96xf32> to vector<32x96xf32>
    %cst_11 = arith.constant dense<0.000000e+00> : vector<32x96xf32>
    %12 = tpu.matmul %9, %11, %cst_11 {dimension_numbers = #tpu.dot_dimension_numbers<[1], [0], [0], [1], [0, 0, 1, 1], [], []>} : vector<32x32xf32>, vector<32x96xf32>, vector<32x96xf32> -> vector<32x96xf32>
    %c0_12 = arith.constant 0 : index
    %c0_13 = arith.constant 0 : index
    %c0_14 = arith.constant 0 : index
    %13 = vector.load %arg8[%c0_12, %c0_13, %c0_14] : memref<2x8x128xf32, #tpu.memory_space<vmem>>, vector<1x1x96xf32>
    %14 = vector.shape_cast %13 : vector<1x1x96xf32> to vector<1x96xf32>
    %15 = vector.broadcast %14 : vector<1x96xf32> to vector<32x96xf32>
    %16 = arith.addf %12, %15 : vector<32x96xf32>
    %17 = vector.shape_cast %16 : vector<32x96xf32> to vector<2x16x96xf32>
    %18 = vector.extract_strided_slice %17 {offsets = [0, 0, 0], sizes = [2, 16, 8], strides = [1, 1, 1]} : vector<2x16x96xf32> to vector<2x16x8xf32>
    %19 = vector.extract_strided_slice %17 {offsets = [0, 0, 32], sizes = [2, 16, 8], strides = [1, 1, 1]} : vector<2x16x96xf32> to vector<2x16x8xf32>
    %20 = vector.extract_strided_slice %17 {offsets = [0, 0, 64], sizes = [2, 16, 8], strides = [1, 1, 1]} : vector<2x16x96xf32> to vector<2x16x8xf32>
    "tpu.trace_start"() <{level = 10 : i32, message = "bqd,bkd->bqk"}> : () -> ()
    %cst_15 = arith.constant dense<0.000000e+00> : vector<2x16x16xf32>
    %21 = tpu.matmul %18, %19, %cst_15 {dimension_numbers = #tpu.dot_dimension_numbers<[2], [2], [1], [1], [0, 0, 0, 1, 1, 1], [0], [0]>} : vector<2x16x8xf32>, vector<2x16x8xf32>, vector<2x16x16xf32> -> vector<2x16x16xf32>
    "tpu.trace_stop"() : () -> ()
    %cst_16 = arith.constant dense<0xFF800000> : vector<2x16xf32>
    %22 = vector.multi_reduction <maximumf>, %21, %cst_16 [2] : vector<2x16x16xf32> to vector<2x16xf32>
    %23 = vector.shape_cast %22 : vector<2x16xf32> to vector<2x16x1xf32>
    %24 = vector.broadcast %23 : vector<2x16x1xf32> to vector<2x16x16xf32>
    %25 = arith.subf %21, %24 : vector<2x16x16xf32>
    %26 = math.exp %25 : vector<2x16x16xf32>
    %cst_17 = arith.constant dense<0.000000e+00> : vector<2x16xf32>
    %27 = vector.multi_reduction <add>, %26, %cst_17 [2] : vector<2x16x16xf32> to vector<2x16xf32>
    %28 = vector.shape_cast %27 : vector<2x16xf32> to vector<2x16x1xf32>
    %29 = tpu.reciprocal %28 {approx = true} : vector<2x16x1xf32> -> vector<2x16x1xf32>
    %30 = vector.broadcast %29 : vector<2x16x1xf32> to vector<2x16x16xf32>
    %31 = arith.mulf %26, %30 : vector<2x16x16xf32>
    "tpu.trace_start"() <{level = 10 : i32, message = "bqk,bkd->bqd"}> : () -> ()
    %cst_18 = arith.constant dense<0.000000e+00> : vector<2x16x8xf32>
    %32 = tpu.matmul %31, %20, %cst_18 {dimension_numbers = #tpu.dot_dimension_numbers<[2], [1], [1], [2], [0, 0, 0, 1, 1, 2], [0], [0]>} : vector<2x16x16xf32>, vector<2x16x8xf32>, vector<2x16x8xf32> -> vector<2x16x8xf32>
    "tpu.trace_stop"() : () -> ()
    %33 = vector.extract_strided_slice %17 {offsets = [0, 0, 8], sizes = [2, 16, 8], strides = [1, 1, 1]} : vector<2x16x96xf32> to vector<2x16x8xf32>
    %34 = vector.extract_strided_slice %17 {offsets = [0, 0, 40], sizes = [2, 16, 8], strides = [1, 1, 1]} : vector<2x16x96xf32> to vector<2x16x8xf32>
    %35 = vector.extract_strided_slice %17 {offsets = [0, 0, 72], sizes = [2, 16, 8], strides = [1, 1, 1]} : vector<2x16x96xf32> to vector<2x16x8xf32>
    "tpu.trace_start"() <{level = 10 : i32, message = "bqd,bkd->bqk"}> : () -> ()
    %cst_19 = arith.constant dense<0.000000e+00> : vector<2x16x16xf32>
    %36 = tpu.matmul %33, %34, %cst_19 {dimension_numbers = #tpu.dot_dimension_numbers<[2], [2], [1], [1], [0, 0, 0, 1, 1, 1], [0], [0]>} : vector<2x16x8xf32>, vector<2x16x8xf32>, vector<2x16x16xf32> -> vector<2x16x16xf32>
    "tpu.trace_stop"() : () -> ()
    %cst_20 = arith.constant dense<0xFF800000> : vector<2x16xf32>
    %37 = vector.multi_reduction <maximumf>, %36, %cst_20 [2] : vector<2x16x16xf32> to vector<2x16xf32>
    %38 = vector.shape_cast %37 : vector<2x16xf32> to vector<2x16x1xf32>
    %39 = vector.broadcast %38 : vector<2x16x1xf32> to vector<2x16x16xf32>
    %40 = arith.subf %36, %39 : vector<2x16x16xf32>
    %41 = math.exp %40 : vector<2x16x16xf32>
    %cst_21 = arith.constant dense<0.000000e+00> : vector<2x16xf32>
    %42 = vector.multi_reduction <add>, %41, %cst_21 [2] : vector<2x16x16xf32> to vector<2x16xf32>
    %43 = vector.shape_cast %42 : vector<2x16xf32> to vector<2x16x1xf32>
    %44 = tpu.reciprocal %43 {approx = true} : vector<2x16x1xf32> -> vector<2x16x1xf32>
    %45 = vector.broadcast %44 : vector<2x16x1xf32> to vector<2x16x16xf32>
    %46 = arith.mulf %41, %45 : vector<2x16x16xf32>
    "tpu.trace_start"() <{level = 10 : i32, message = "bqk,bkd->bqd"}> : () -> ()
    %cst_22 = arith.constant dense<0.000000e+00> : vector<2x16x8xf32>
    %47 = tpu.matmul %46, %35, %cst_22 {dimension_numbers = #tpu.dot_dimension_numbers<[2], [1], [1], [2], [0, 0, 0, 1, 1, 2], [0], [0]>} : vector<2x16x16xf32>, vector<2x16x8xf32>, vector<2x16x8xf32> -> vector<2x16x8xf32>
    "tpu.trace_stop"() : () -> ()
    %48 = vector.extract_strided_slice %17 {offsets = [0, 0, 16], sizes = [2, 16, 8], strides = [1, 1, 1]} : vector<2x16x96xf32> to vector<2x16x8xf32>
    %49 = vector.extract_strided_slice %17 {offsets = [0, 0, 48], sizes = [2, 16, 8], strides = [1, 1, 1]} : vector<2x16x96xf32> to vector<2x16x8xf32>
    %50 = vector.extract_strided_slice %17 {offsets = [0, 0, 80], sizes = [2, 16, 8], strides = [1, 1, 1]} : vector<2x16x96xf32> to vector<2x16x8xf32>
    "tpu.trace_start"() <{level = 10 : i32, message = "bqd,bkd->bqk"}> : () -> ()
    %cst_23 = arith.constant dense<0.000000e+00> : vector<2x16x16xf32>
    %51 = tpu.matmul %48, %49, %cst_23 {dimension_numbers = #tpu.dot_dimension_numbers<[2], [2], [1], [1], [0, 0, 0, 1, 1, 1], [0], [0]>} : vector<2x16x8xf32>, vector<2x16x8xf32>, vector<2x16x16xf32> -> vector<2x16x16xf32>
    "tpu.trace_stop"() : () -> ()
    %cst_24 = arith.constant dense<0xFF800000> : vector<2x16xf32>
    %52 = vector.multi_reduction <maximumf>, %51, %cst_24 [2] : vector<2x16x16xf32> to vector<2x16xf32>
    %53 = vector.shape_cast %52 : vector<2x16xf32> to vector<2x16x1xf32>
    %54 = vector.broadcast %53 : vector<2x16x1xf32> to vector<2x16x16xf32>
    %55 = arith.subf %51, %54 : vector<2x16x16xf32>
    %56 = math.exp %55 : vector<2x16x16xf32>
    %cst_25 = arith.constant dense<0.000000e+00> : vector<2x16xf32>
    %57 = vector.multi_reduction <add>, %56, %cst_25 [2] : vector<2x16x16xf32> to vector<2x16xf32>
    %58 = vector.shape_cast %57 : vector<2x16xf32> to vector<2x16x1xf32>
    %59 = tpu.reciprocal %58 {approx = true} : vector<2x16x1xf32> -> vector<2x16x1xf32>
    %60 = vector.broadcast %59 : vector<2x16x1xf32> to vector<2x16x16xf32>
    %61 = arith.mulf %56, %60 : vector<2x16x16xf32>
    "tpu.trace_start"() <{level = 10 : i32, message = "bqk,bkd->bqd"}> : () -> ()
    %cst_26 = arith.constant dense<0.000000e+00> : vector<2x16x8xf32>
    %62 = tpu.matmul %61, %50, %cst_26 {dimension_numbers = #tpu.dot_dimension_numbers<[2], [1], [1], [2], [0, 0, 0, 1, 1, 2], [0], [0]>} : vector<2x16x16xf32>, vector<2x16x8xf32>, vector<2x16x8xf32> -> vector<2x16x8xf32>
    "tpu.trace_stop"() : () -> ()
    %63 = vector.extract_strided_slice %17 {offsets = [0, 0, 24], sizes = [2, 16, 8], strides = [1, 1, 1]} : vector<2x16x96xf32> to vector<2x16x8xf32>
    %64 = vector.extract_strided_slice %17 {offsets = [0, 0, 56], sizes = [2, 16, 8], strides = [1, 1, 1]} : vector<2x16x96xf32> to vector<2x16x8xf32>
    %65 = vector.extract_strided_slice %17 {offsets = [0, 0, 88], sizes = [2, 16, 8], strides = [1, 1, 1]} : vector<2x16x96xf32> to vector<2x16x8xf32>
    "tpu.trace_start"() <{level = 10 : i32, message = "bqd,bkd->bqk"}> : () -> ()
    %cst_27 = arith.constant dense<0.000000e+00> : vector<2x16x16xf32>
    %66 = tpu.matmul %63, %64, %cst_27 {dimension_numbers = #tpu.dot_dimension_numbers<[2], [2], [1], [1], [0, 0, 0, 1, 1, 1], [0], [0]>} : vector<2x16x8xf32>, vector<2x16x8xf32>, vector<2x16x16xf32> -> vector<2x16x16xf32>
    "tpu.trace_stop"() : () -> ()
    %cst_28 = arith.constant dense<0xFF800000> : vector<2x16xf32>
    %67 = vector.multi_reduction <maximumf>, %66, %cst_28 [2] : vector<2x16x16xf32> to vector<2x16xf32>
    %68 = vector.shape_cast %67 : vector<2x16xf32> to vector<2x16x1xf32>
    %69 = vector.broadcast %68 : vector<2x16x1xf32> to vector<2x16x16xf32>
    %70 = arith.subf %66, %69 : vector<2x16x16xf32>
    %71 = math.exp %70 : vector<2x16x16xf32>
    %cst_29 = arith.constant dense<0.000000e+00> : vector<2x16xf32>
    %72 = vector.multi_reduction <add>, %71, %cst_29 [2] : vector<2x16x16xf32> to vector<2x16xf32>
    %73 = vector.shape_cast %72 : vector<2x16xf32> to vector<2x16x1xf32>
    %74 = tpu.reciprocal %73 {approx = true} : vector<2x16x1xf32> -> vector<2x16x1xf32>
    %75 = vector.broadcast %74 : vector<2x16x1xf32> to vector<2x16x16xf32>
    %76 = arith.mulf %71, %75 : vector<2x16x16xf32>
    "tpu.trace_start"() <{level = 10 : i32, message = "bqk,bkd->bqd"}> : () -> ()
    %cst_30 = arith.constant dense<0.000000e+00> : vector<2x16x8xf32>
    %77 = tpu.matmul %76, %65, %cst_30 {dimension_numbers = #tpu.dot_dimension_numbers<[2], [1], [1], [2], [0, 0, 0, 1, 1, 2], [0], [0]>} : vector<2x16x16xf32>, vector<2x16x8xf32>, vector<2x16x8xf32> -> vector<2x16x8xf32>
    "tpu.trace_stop"() : () -> ()
    %78 = tpu.concatenate %32, %47, %62, %77 in 2 : vector<2x16x8xf32>, vector<2x16x8xf32>, vector<2x16x8xf32>, vector<2x16x8xf32> -> vector<2x16x32xf32>
    %79 = vector.shape_cast %78 : vector<2x16x32xf32> to vector<32x32xf32>
    %c0_31 = arith.constant 0 : index
    %c0_32 = arith.constant 0 : index
    %c0_33 = arith.constant 0 : index
    %80 = vector.load %arg5[%c0_31, %c0_32, %c0_33] : memref<2x32x32xf32, #tpu.memory_space<vmem>>, vector<1x32x32xf32>
    %81 = vector.shape_cast %80 : vector<1x32x32xf32> to vector<32x32xf32>
    %cst_34 = arith.constant dense<0.000000e+00> : vector<32x32xf32>
    %82 = tpu.matmul %79, %81, %cst_34 {dimension_numbers = #tpu.dot_dimension_numbers<[1], [0], [0], [1], [0, 0, 1, 1], [], []>} : vector<32x32xf32>, vector<32x32xf32>, vector<32x32xf32> -> vector<32x32xf32>
    %c0_35 = arith.constant 0 : index
    %c2 = arith.constant 2 : index
    %c0_36 = arith.constant 0 : index
    %83 = vector.load %arg8[%c0_35, %c2, %c0_36] : memref<2x8x128xf32, #tpu.memory_space<vmem>>, vector<1x1x32xf32>
    %84 = vector.shape_cast %83 : vector<1x1x32xf32> to vector<1x32xf32>
    %85 = vector.broadcast %84 : vector<1x32xf32> to vector<32x32xf32>
    %86 = arith.addf %82, %85 : vector<32x32xf32>
    %87 = arith.addf %9, %86 : vector<32x32xf32>
    %c0_37 = arith.constant 0 : index
    %c3 = arith.constant 3 : index
    %c0_38 = arith.constant 0 : index
    %88 = vector.load %arg8[%c0_37, %c3, %c0_38] : memref<2x8x128xf32, #tpu.memory_space<vmem>>, vector<1x1x32xf32>
    %89 = vector.shape_cast %88 : vector<1x1x32xf32> to vector<1x32xf32>
    %c0_39 = arith.constant 0 : index
    %c4 = arith.constant 4 : index
    %c0_40 = arith.constant 0 : index
    %90 = vector.load %arg8[%c0_39, %c4, %c0_40] : memref<2x8x128xf32, #tpu.memory_space<vmem>>, vector<1x1x32xf32>
    %91 = vector.shape_cast %90 : vector<1x1x32xf32> to vector<1x32xf32>
    %cst_41 = arith.constant dense<0.000000e+00> : vector<32xf32>
    %92 = vector.multi_reduction <add>, %87, %cst_41 [1] : vector<32x32xf32> to vector<32xf32>
    %93 = vector.shape_cast %92 : vector<32xf32> to vector<32x1xf32>
    %cst_42 = arith.constant 3.200000e+01 : f32
    %94 = vector.broadcast %cst_42 : f32 to vector<32x1xf32>
    %95 = arith.divf %93, %94 : vector<32x1xf32>
    %96 = vector.broadcast %95 : vector<32x1xf32> to vector<32x32xf32>
    %97 = arith.subf %87, %96 : vector<32x32xf32>
    %98 = arith.mulf %97, %97 : vector<32x32xf32>
    %cst_43 = arith.constant dense<0.000000e+00> : vector<32xf32>
    %99 = vector.multi_reduction <add>, %98, %cst_43 [1] : vector<32x32xf32> to vector<32xf32>
    %100 = vector.shape_cast %99 : vector<32xf32> to vector<32x1xf32>
    %cst_44 = arith.constant 3.200000e+01 : f32
    %101 = vector.broadcast %cst_44 : f32 to vector<32x1xf32>
    %102 = arith.divf %100, %101 : vector<32x1xf32>
    %103 = vector.broadcast %95 : vector<32x1xf32> to vector<32x32xf32>
    %104 = arith.subf %87, %103 : vector<32x32xf32>
    %cst_45 = arith.constant 9.99999974E-6 : f32
    %105 = vector.broadcast %cst_45 : f32 to vector<32x1xf32>
    %106 = arith.addf %102, %105 : vector<32x1xf32>
    %107 = math.rsqrt %106 : vector<32x1xf32>
    %108 = vector.broadcast %107 : vector<32x1xf32> to vector<32x32xf32>
    %109 = arith.mulf %104, %108 : vector<32x32xf32>
    %110 = vector.broadcast %89 : vector<1x32xf32> to vector<32x32xf32>
    %111 = arith.mulf %109, %110 : vector<32x32xf32>
    %112 = vector.broadcast %91 : vector<1x32xf32> to vector<32x32xf32>
    %113 = arith.addf %111, %112 : vector<32x32xf32>
    %c0_46 = arith.constant 0 : index
    %c0_47 = arith.constant 0 : index
    %c0_48 = arith.constant 0 : index
    %114 = vector.load %arg6[%c0_46, %c0_47, %c0_48] : memref<2x32x64xf32, #tpu.memory_space<vmem>>, vector<1x32x64xf32>
    %115 = vector.shape_cast %114 : vector<1x32x64xf32> to vector<32x64xf32>
    %cst_49 = arith.constant dense<0.000000e+00> : vector<32x64xf32>
    %116 = tpu.matmul %113, %115, %cst_49 {dimension_numbers = #tpu.dot_dimension_numbers<[1], [0], [0], [1], [0, 0, 1, 1], [], []>} : vector<32x32xf32>, vector<32x64xf32>, vector<32x64xf32> -> vector<32x64xf32>
    %c0_50 = arith.constant 0 : index
    %c1 = arith.constant 1 : index
    %c0_51 = arith.constant 0 : index
    %117 = vector.load %arg8[%c0_50, %c1, %c0_51] : memref<2x8x128xf32, #tpu.memory_space<vmem>>, vector<1x1x64xf32>
    %118 = vector.shape_cast %117 : vector<1x1x64xf32> to vector<1x64xf32>
    %119 = vector.broadcast %118 : vector<1x64xf32> to vector<32x64xf32>
    %120 = arith.addf %116, %119 : vector<32x64xf32>
    %cst_52 = arith.constant 0.000000e+00 : f32
    %121 = vector.broadcast %cst_52 : f32 to vector<32x64xf32>
    %122 = arith.maximumf %120, %121 : vector<32x64xf32>
    %c0_53 = arith.constant 0 : index
    %c0_54 = arith.constant 0 : index
    %c0_55 = arith.constant 0 : index
    %123 = vector.load %arg7[%c0_53, %c0_54, %c0_55] : memref<2x64x32xf32, #tpu.memory_space<vmem>>, vector<1x64x32xf32>
    %124 = vector.shape_cast %123 : vector<1x64x32xf32> to vector<64x32xf32>
    %cst_56 = arith.constant dense<0.000000e+00> : vector<32x32xf32>
    %125 = tpu.matmul %122, %124, %cst_56 {dimension_numbers = #tpu.dot_dimension_numbers<[1], [0], [0], [1], [0, 0, 1, 1], [], []>} : vector<32x64xf32>, vector<64x32xf32>, vector<32x32xf32> -> vector<32x32xf32>
    %c0_57 = arith.constant 0 : index
    %c5 = arith.constant 5 : index
    %c0_58 = arith.constant 0 : index
    %126 = vector.load %arg8[%c0_57, %c5, %c0_58] : memref<2x8x128xf32, #tpu.memory_space<vmem>>, vector<1x1x32xf32>
    %127 = vector.shape_cast %126 : vector<1x1x32xf32> to vector<1x32xf32>
    %128 = vector.broadcast %127 : vector<1x32xf32> to vector<32x32xf32>
    %129 = arith.addf %125, %128 : vector<32x32xf32>
    %130 = arith.addf %113, %129 : vector<32x32xf32>
    %c0_59 = arith.constant 0 : index
    %c6 = arith.constant 6 : index
    %c0_60 = arith.constant 0 : index
    %131 = vector.load %arg8[%c0_59, %c6, %c0_60] : memref<2x8x128xf32, #tpu.memory_space<vmem>>, vector<1x1x32xf32>
    %132 = vector.shape_cast %131 : vector<1x1x32xf32> to vector<1x32xf32>
    %c0_61 = arith.constant 0 : index
    %c7 = arith.constant 7 : index
    %c0_62 = arith.constant 0 : index
    %133 = vector.load %arg8[%c0_61, %c7, %c0_62] : memref<2x8x128xf32, #tpu.memory_space<vmem>>, vector<1x1x32xf32>
    %134 = vector.shape_cast %133 : vector<1x1x32xf32> to vector<1x32xf32>
    %cst_63 = arith.constant dense<0.000000e+00> : vector<32xf32>
    %135 = vector.multi_reduction <add>, %130, %cst_63 [1] : vector<32x32xf32> to vector<32xf32>
    %136 = vector.shape_cast %135 : vector<32xf32> to vector<32x1xf32>
    %cst_64 = arith.constant 3.200000e+01 : f32
    %137 = vector.broadcast %cst_64 : f32 to vector<32x1xf32>
    %138 = arith.divf %136, %137 : vector<32x1xf32>
    %139 = vector.broadcast %138 : vector<32x1xf32> to vector<32x32xf32>
    %140 = arith.subf %130, %139 : vector<32x32xf32>
    %141 = arith.mulf %140, %140 : vector<32x32xf32>
    %cst_65 = arith.constant dense<0.000000e+00> : vector<32xf32>
    %142 = vector.multi_reduction <add>, %141, %cst_65 [1] : vector<32x32xf32> to vector<32xf32>
    %143 = vector.shape_cast %142 : vector<32xf32> to vector<32x1xf32>
    %cst_66 = arith.constant 3.200000e+01 : f32
    %144 = vector.broadcast %cst_66 : f32 to vector<32x1xf32>
    %145 = arith.divf %143, %144 : vector<32x1xf32>
    %146 = vector.broadcast %138 : vector<32x1xf32> to vector<32x32xf32>
    %147 = arith.subf %130, %146 : vector<32x32xf32>
    %cst_67 = arith.constant 9.99999974E-6 : f32
    %148 = vector.broadcast %cst_67 : f32 to vector<32x1xf32>
    %149 = arith.addf %145, %148 : vector<32x1xf32>
    %150 = math.rsqrt %149 : vector<32x1xf32>
    %151 = vector.broadcast %150 : vector<32x1xf32> to vector<32x32xf32>
    %152 = arith.mulf %147, %151 : vector<32x32xf32>
    %153 = vector.broadcast %132 : vector<1x32xf32> to vector<32x32xf32>
    %154 = arith.mulf %152, %153 : vector<32x32xf32>
    %155 = vector.broadcast %134 : vector<1x32xf32> to vector<32x32xf32>
    %156 = arith.addf %154, %155 : vector<32x32xf32>
    %c1_68 = arith.constant 1 : index
    %c0_69 = arith.constant 0 : index
    %c0_70 = arith.constant 0 : index
    %157 = vector.load %arg4[%c1_68, %c0_69, %c0_70] : memref<2x32x96xf32, #tpu.memory_space<vmem>>, vector<1x32x96xf32>
    %158 = vector.shape_cast %157 : vector<1x32x96xf32> to vector<32x96xf32>
    %cst_71 = arith.constant dense<0.000000e+00> : vector<32x96xf32>
    %159 = tpu.matmul %156, %158, %cst_71 {dimension_numbers = #tpu.dot_dimension_numbers<[1], [0], [0], [1], [0, 0, 1, 1], [], []>} : vector<32x32xf32>, vector<32x96xf32>, vector<32x96xf32> -> vector<32x96xf32>
    %c1_72 = arith.constant 1 : index
    %c0_73 = arith.constant 0 : index
    %c0_74 = arith.constant 0 : index
    %160 = vector.load %arg8[%c1_72, %c0_73, %c0_74] : memref<2x8x128xf32, #tpu.memory_space<vmem>>, vector<1x1x96xf32>
    %161 = vector.shape_cast %160 : vector<1x1x96xf32> to vector<1x96xf32>
    %162 = vector.broadcast %161 : vector<1x96xf32> to vector<32x96xf32>
    %163 = arith.addf %159, %162 : vector<32x96xf32>
    %164 = vector.shape_cast %163 : vector<32x96xf32> to vector<2x16x96xf32>
    %165 = vector.extract_strided_slice %164 {offsets = [0, 0, 0], sizes = [2, 16, 8], strides = [1, 1, 1]} : vector<2x16x96xf32> to vector<2x16x8xf32>
    %166 = vector.extract_strided_slice %164 {offsets = [0, 0, 32], sizes = [2, 16, 8], strides = [1, 1, 1]} : vector<2x16x96xf32> to vector<2x16x8xf32>
    %167 = vector.extract_strided_slice %164 {offsets = [0, 0, 64], sizes = [2, 16, 8], strides = [1, 1, 1]} : vector<2x16x96xf32> to vector<2x16x8xf32>
    "tpu.trace_start"() <{level = 10 : i32, message = "bqd,bkd->bqk"}> : () -> ()
    %cst_75 = arith.constant dense<0.000000e+00> : vector<2x16x16xf32>
    %168 = tpu.matmul %165, %166, %cst_75 {dimension_numbers = #tpu.dot_dimension_numbers<[2], [2], [1], [1], [0, 0, 0, 1, 1, 1], [0], [0]>} : vector<2x16x8xf32>, vector<2x16x8xf32>, vector<2x16x16xf32> -> vector<2x16x16xf32>
    "tpu.trace_stop"() : () -> ()
    %cst_76 = arith.constant dense<0xFF800000> : vector<2x16xf32>
    %169 = vector.multi_reduction <maximumf>, %168, %cst_76 [2] : vector<2x16x16xf32> to vector<2x16xf32>
    %170 = vector.shape_cast %169 : vector<2x16xf32> to vector<2x16x1xf32>
    %171 = vector.broadcast %170 : vector<2x16x1xf32> to vector<2x16x16xf32>
    %172 = arith.subf %168, %171 : vector<2x16x16xf32>
    %173 = math.exp %172 : vector<2x16x16xf32>
    %cst_77 = arith.constant dense<0.000000e+00> : vector<2x16xf32>
    %174 = vector.multi_reduction <add>, %173, %cst_77 [2] : vector<2x16x16xf32> to vector<2x16xf32>
    %175 = vector.shape_cast %174 : vector<2x16xf32> to vector<2x16x1xf32>
    %176 = tpu.reciprocal %175 {approx = true} : vector<2x16x1xf32> -> vector<2x16x1xf32>
    %177 = vector.broadcast %176 : vector<2x16x1xf32> to vector<2x16x16xf32>
    %178 = arith.mulf %173, %177 : vector<2x16x16xf32>
    "tpu.trace_start"() <{level = 10 : i32, message = "bqk,bkd->bqd"}> : () -> ()
    %cst_78 = arith.constant dense<0.000000e+00> : vector<2x16x8xf32>
    %179 = tpu.matmul %178, %167, %cst_78 {dimension_numbers = #tpu.dot_dimension_numbers<[2], [1], [1], [2], [0, 0, 0, 1, 1, 2], [0], [0]>} : vector<2x16x16xf32>, vector<2x16x8xf32>, vector<2x16x8xf32> -> vector<2x16x8xf32>
    "tpu.trace_stop"() : () -> ()
    %180 = vector.extract_strided_slice %164 {offsets = [0, 0, 8], sizes = [2, 16, 8], strides = [1, 1, 1]} : vector<2x16x96xf32> to vector<2x16x8xf32>
    %181 = vector.extract_strided_slice %164 {offsets = [0, 0, 40], sizes = [2, 16, 8], strides = [1, 1, 1]} : vector<2x16x96xf32> to vector<2x16x8xf32>
    %182 = vector.extract_strided_slice %164 {offsets = [0, 0, 72], sizes = [2, 16, 8], strides = [1, 1, 1]} : vector<2x16x96xf32> to vector<2x16x8xf32>
    "tpu.trace_start"() <{level = 10 : i32, message = "bqd,bkd->bqk"}> : () -> ()
    %cst_79 = arith.constant dense<0.000000e+00> : vector<2x16x16xf32>
    %183 = tpu.matmul %180, %181, %cst_79 {dimension_numbers = #tpu.dot_dimension_numbers<[2], [2], [1], [1], [0, 0, 0, 1, 1, 1], [0], [0]>} : vector<2x16x8xf32>, vector<2x16x8xf32>, vector<2x16x16xf32> -> vector<2x16x16xf32>
    "tpu.trace_stop"() : () -> ()
    %cst_80 = arith.constant dense<0xFF800000> : vector<2x16xf32>
    %184 = vector.multi_reduction <maximumf>, %183, %cst_80 [2] : vector<2x16x16xf32> to vector<2x16xf32>
    %185 = vector.shape_cast %184 : vector<2x16xf32> to vector<2x16x1xf32>
    %186 = vector.broadcast %185 : vector<2x16x1xf32> to vector<2x16x16xf32>
    %187 = arith.subf %183, %186 : vector<2x16x16xf32>
    %188 = math.exp %187 : vector<2x16x16xf32>
    %cst_81 = arith.constant dense<0.000000e+00> : vector<2x16xf32>
    %189 = vector.multi_reduction <add>, %188, %cst_81 [2] : vector<2x16x16xf32> to vector<2x16xf32>
    %190 = vector.shape_cast %189 : vector<2x16xf32> to vector<2x16x1xf32>
    %191 = tpu.reciprocal %190 {approx = true} : vector<2x16x1xf32> -> vector<2x16x1xf32>
    %192 = vector.broadcast %191 : vector<2x16x1xf32> to vector<2x16x16xf32>
    %193 = arith.mulf %188, %192 : vector<2x16x16xf32>
    "tpu.trace_start"() <{level = 10 : i32, message = "bqk,bkd->bqd"}> : () -> ()
    %cst_82 = arith.constant dense<0.000000e+00> : vector<2x16x8xf32>
    %194 = tpu.matmul %193, %182, %cst_82 {dimension_numbers = #tpu.dot_dimension_numbers<[2], [1], [1], [2], [0, 0, 0, 1, 1, 2], [0], [0]>} : vector<2x16x16xf32>, vector<2x16x8xf32>, vector<2x16x8xf32> -> vector<2x16x8xf32>
    "tpu.trace_stop"() : () -> ()
    %195 = vector.extract_strided_slice %164 {offsets = [0, 0, 16], sizes = [2, 16, 8], strides = [1, 1, 1]} : vector<2x16x96xf32> to vector<2x16x8xf32>
    %196 = vector.extract_strided_slice %164 {offsets = [0, 0, 48], sizes = [2, 16, 8], strides = [1, 1, 1]} : vector<2x16x96xf32> to vector<2x16x8xf32>
    %197 = vector.extract_strided_slice %164 {offsets = [0, 0, 80], sizes = [2, 16, 8], strides = [1, 1, 1]} : vector<2x16x96xf32> to vector<2x16x8xf32>
    "tpu.trace_start"() <{level = 10 : i32, message = "bqd,bkd->bqk"}> : () -> ()
    %cst_83 = arith.constant dense<0.000000e+00> : vector<2x16x16xf32>
    %198 = tpu.matmul %195, %196, %cst_83 {dimension_numbers = #tpu.dot_dimension_numbers<[2], [2], [1], [1], [0, 0, 0, 1, 1, 1], [0], [0]>} : vector<2x16x8xf32>, vector<2x16x8xf32>, vector<2x16x16xf32> -> vector<2x16x16xf32>
    "tpu.trace_stop"() : () -> ()
    %cst_84 = arith.constant dense<0xFF800000> : vector<2x16xf32>
    %199 = vector.multi_reduction <maximumf>, %198, %cst_84 [2] : vector<2x16x16xf32> to vector<2x16xf32>
    %200 = vector.shape_cast %199 : vector<2x16xf32> to vector<2x16x1xf32>
    %201 = vector.broadcast %200 : vector<2x16x1xf32> to vector<2x16x16xf32>
    %202 = arith.subf %198, %201 : vector<2x16x16xf32>
    %203 = math.exp %202 : vector<2x16x16xf32>
    %cst_85 = arith.constant dense<0.000000e+00> : vector<2x16xf32>
    %204 = vector.multi_reduction <add>, %203, %cst_85 [2] : vector<2x16x16xf32> to vector<2x16xf32>
    %205 = vector.shape_cast %204 : vector<2x16xf32> to vector<2x16x1xf32>
    %206 = tpu.reciprocal %205 {approx = true} : vector<2x16x1xf32> -> vector<2x16x1xf32>
    %207 = vector.broadcast %206 : vector<2x16x1xf32> to vector<2x16x16xf32>
    %208 = arith.mulf %203, %207 : vector<2x16x16xf32>
    "tpu.trace_start"() <{level = 10 : i32, message = "bqk,bkd->bqd"}> : () -> ()
    %cst_86 = arith.constant dense<0.000000e+00> : vector<2x16x8xf32>
    %209 = tpu.matmul %208, %197, %cst_86 {dimension_numbers = #tpu.dot_dimension_numbers<[2], [1], [1], [2], [0, 0, 0, 1, 1, 2], [0], [0]>} : vector<2x16x16xf32>, vector<2x16x8xf32>, vector<2x16x8xf32> -> vector<2x16x8xf32>
    "tpu.trace_stop"() : () -> ()
    %210 = vector.extract_strided_slice %164 {offsets = [0, 0, 24], sizes = [2, 16, 8], strides = [1, 1, 1]} : vector<2x16x96xf32> to vector<2x16x8xf32>
    %211 = vector.extract_strided_slice %164 {offsets = [0, 0, 56], sizes = [2, 16, 8], strides = [1, 1, 1]} : vector<2x16x96xf32> to vector<2x16x8xf32>
    %212 = vector.extract_strided_slice %164 {offsets = [0, 0, 88], sizes = [2, 16, 8], strides = [1, 1, 1]} : vector<2x16x96xf32> to vector<2x16x8xf32>
    "tpu.trace_start"() <{level = 10 : i32, message = "bqd,bkd->bqk"}> : () -> ()
    %cst_87 = arith.constant dense<0.000000e+00> : vector<2x16x16xf32>
    %213 = tpu.matmul %210, %211, %cst_87 {dimension_numbers = #tpu.dot_dimension_numbers<[2], [2], [1], [1], [0, 0, 0, 1, 1, 1], [0], [0]>} : vector<2x16x8xf32>, vector<2x16x8xf32>, vector<2x16x16xf32> -> vector<2x16x16xf32>
    "tpu.trace_stop"() : () -> ()
    %cst_88 = arith.constant dense<0xFF800000> : vector<2x16xf32>
    %214 = vector.multi_reduction <maximumf>, %213, %cst_88 [2] : vector<2x16x16xf32> to vector<2x16xf32>
    %215 = vector.shape_cast %214 : vector<2x16xf32> to vector<2x16x1xf32>
    %216 = vector.broadcast %215 : vector<2x16x1xf32> to vector<2x16x16xf32>
    %217 = arith.subf %213, %216 : vector<2x16x16xf32>
    %218 = math.exp %217 : vector<2x16x16xf32>
    %cst_89 = arith.constant dense<0.000000e+00> : vector<2x16xf32>
    %219 = vector.multi_reduction <add>, %218, %cst_89 [2] : vector<2x16x16xf32> to vector<2x16xf32>
    %220 = vector.shape_cast %219 : vector<2x16xf32> to vector<2x16x1xf32>
    %221 = tpu.reciprocal %220 {approx = true} : vector<2x16x1xf32> -> vector<2x16x1xf32>
    %222 = vector.broadcast %221 : vector<2x16x1xf32> to vector<2x16x16xf32>
    %223 = arith.mulf %218, %222 : vector<2x16x16xf32>
    "tpu.trace_start"() <{level = 10 : i32, message = "bqk,bkd->bqd"}> : () -> ()
    %cst_90 = arith.constant dense<0.000000e+00> : vector<2x16x8xf32>
    %224 = tpu.matmul %223, %212, %cst_90 {dimension_numbers = #tpu.dot_dimension_numbers<[2], [1], [1], [2], [0, 0, 0, 1, 1, 2], [0], [0]>} : vector<2x16x16xf32>, vector<2x16x8xf32>, vector<2x16x8xf32> -> vector<2x16x8xf32>
    "tpu.trace_stop"() : () -> ()
    %225 = tpu.concatenate %179, %194, %209, %224 in 2 : vector<2x16x8xf32>, vector<2x16x8xf32>, vector<2x16x8xf32>, vector<2x16x8xf32> -> vector<2x16x32xf32>
    %226 = vector.shape_cast %225 : vector<2x16x32xf32> to vector<32x32xf32>
    %c1_91 = arith.constant 1 : index
    %c0_92 = arith.constant 0 : index
    %c0_93 = arith.constant 0 : index
    %227 = vector.load %arg5[%c1_91, %c0_92, %c0_93] : memref<2x32x32xf32, #tpu.memory_space<vmem>>, vector<1x32x32xf32>
    %228 = vector.shape_cast %227 : vector<1x32x32xf32> to vector<32x32xf32>
    %cst_94 = arith.constant dense<0.000000e+00> : vector<32x32xf32>
    %229 = tpu.matmul %226, %228, %cst_94 {dimension_numbers = #tpu.dot_dimension_numbers<[1], [0], [0], [1], [0, 0, 1, 1], [], []>} : vector<32x32xf32>, vector<32x32xf32>, vector<32x32xf32> -> vector<32x32xf32>
    %c1_95 = arith.constant 1 : index
    %c2_96 = arith.constant 2 : index
    %c0_97 = arith.constant 0 : index
    %230 = vector.load %arg8[%c1_95, %c2_96, %c0_97] : memref<2x8x128xf32, #tpu.memory_space<vmem>>, vector<1x1x32xf32>
    %231 = vector.shape_cast %230 : vector<1x1x32xf32> to vector<1x32xf32>
    %232 = vector.broadcast %231 : vector<1x32xf32> to vector<32x32xf32>
    %233 = arith.addf %229, %232 : vector<32x32xf32>
    %234 = arith.addf %156, %233 : vector<32x32xf32>
    %c1_98 = arith.constant 1 : index
    %c3_99 = arith.constant 3 : index
    %c0_100 = arith.constant 0 : index
    %235 = vector.load %arg8[%c1_98, %c3_99, %c0_100] : memref<2x8x128xf32, #tpu.memory_space<vmem>>, vector<1x1x32xf32>
    %236 = vector.shape_cast %235 : vector<1x1x32xf32> to vector<1x32xf32>
    %c1_101 = arith.constant 1 : index
    %c4_102 = arith.constant 4 : index
    %c0_103 = arith.constant 0 : index
    %237 = vector.load %arg8[%c1_101, %c4_102, %c0_103] : memref<2x8x128xf32, #tpu.memory_space<vmem>>, vector<1x1x32xf32>
    %238 = vector.shape_cast %237 : vector<1x1x32xf32> to vector<1x32xf32>
    %cst_104 = arith.constant dense<0.000000e+00> : vector<32xf32>
    %239 = vector.multi_reduction <add>, %234, %cst_104 [1] : vector<32x32xf32> to vector<32xf32>
    %240 = vector.shape_cast %239 : vector<32xf32> to vector<32x1xf32>
    %cst_105 = arith.constant 3.200000e+01 : f32
    %241 = vector.broadcast %cst_105 : f32 to vector<32x1xf32>
    %242 = arith.divf %240, %241 : vector<32x1xf32>
    %243 = vector.broadcast %242 : vector<32x1xf32> to vector<32x32xf32>
    %244 = arith.subf %234, %243 : vector<32x32xf32>
    %245 = arith.mulf %244, %244 : vector<32x32xf32>
    %cst_106 = arith.constant dense<0.000000e+00> : vector<32xf32>
    %246 = vector.multi_reduction <add>, %245, %cst_106 [1] : vector<32x32xf32> to vector<32xf32>
    %247 = vector.shape_cast %246 : vector<32xf32> to vector<32x1xf32>
    %cst_107 = arith.constant 3.200000e+01 : f32
    %248 = vector.broadcast %cst_107 : f32 to vector<32x1xf32>
    %249 = arith.divf %247, %248 : vector<32x1xf32>
    %250 = vector.broadcast %242 : vector<32x1xf32> to vector<32x32xf32>
    %251 = arith.subf %234, %250 : vector<32x32xf32>
    %cst_108 = arith.constant 9.99999974E-6 : f32
    %252 = vector.broadcast %cst_108 : f32 to vector<32x1xf32>
    %253 = arith.addf %249, %252 : vector<32x1xf32>
    %254 = math.rsqrt %253 : vector<32x1xf32>
    %255 = vector.broadcast %254 : vector<32x1xf32> to vector<32x32xf32>
    %256 = arith.mulf %251, %255 : vector<32x32xf32>
    %257 = vector.broadcast %236 : vector<1x32xf32> to vector<32x32xf32>
    %258 = arith.mulf %256, %257 : vector<32x32xf32>
    %259 = vector.broadcast %238 : vector<1x32xf32> to vector<32x32xf32>
    %260 = arith.addf %258, %259 : vector<32x32xf32>
    %c1_109 = arith.constant 1 : index
    %c0_110 = arith.constant 0 : index
    %c0_111 = arith.constant 0 : index
    %261 = vector.load %arg6[%c1_109, %c0_110, %c0_111] : memref<2x32x64xf32, #tpu.memory_space<vmem>>, vector<1x32x64xf32>
    %262 = vector.shape_cast %261 : vector<1x32x64xf32> to vector<32x64xf32>
    %cst_112 = arith.constant dense<0.000000e+00> : vector<32x64xf32>
    %263 = tpu.matmul %260, %262, %cst_112 {dimension_numbers = #tpu.dot_dimension_numbers<[1], [0], [0], [1], [0, 0, 1, 1], [], []>} : vector<32x32xf32>, vector<32x64xf32>, vector<32x64xf32> -> vector<32x64xf32>
    %c1_113 = arith.constant 1 : index
    %c1_114 = arith.constant 1 : index
    %c0_115 = arith.constant 0 : index
    %264 = vector.load %arg8[%c1_113, %c1_114, %c0_115] : memref<2x8x128xf32, #tpu.memory_space<vmem>>, vector<1x1x64xf32>
    %265 = vector.shape_cast %264 : vector<1x1x64xf32> to vector<1x64xf32>
    %266 = vector.broadcast %265 : vector<1x64xf32> to vector<32x64xf32>
    %267 = arith.addf %263, %266 : vector<32x64xf32>
    %cst_116 = arith.constant 0.000000e+00 : f32
    %268 = vector.broadcast %cst_116 : f32 to vector<32x64xf32>
    %269 = arith.maximumf %267, %268 : vector<32x64xf32>
    %c1_117 = arith.constant 1 : index
    %c0_118 = arith.constant 0 : index
    %c0_119 = arith.constant 0 : index
    %270 = vector.load %arg7[%c1_117, %c0_118, %c0_119] : memref<2x64x32xf32, #tpu.memory_space<vmem>>, vector<1x64x32xf32>
    %271 = vector.shape_cast %270 : vector<1x64x32xf32> to vector<64x32xf32>
    %cst_120 = arith.constant dense<0.000000e+00> : vector<32x32xf32>
    %272 = tpu.matmul %269, %271, %cst_120 {dimension_numbers = #tpu.dot_dimension_numbers<[1], [0], [0], [1], [0, 0, 1, 1], [], []>} : vector<32x64xf32>, vector<64x32xf32>, vector<32x32xf32> -> vector<32x32xf32>
    %c1_121 = arith.constant 1 : index
    %c5_122 = arith.constant 5 : index
    %c0_123 = arith.constant 0 : index
    %273 = vector.load %arg8[%c1_121, %c5_122, %c0_123] : memref<2x8x128xf32, #tpu.memory_space<vmem>>, vector<1x1x32xf32>
    %274 = vector.shape_cast %273 : vector<1x1x32xf32> to vector<1x32xf32>
    %275 = vector.broadcast %274 : vector<1x32xf32> to vector<32x32xf32>
    %276 = arith.addf %272, %275 : vector<32x32xf32>
    %277 = arith.addf %260, %276 : vector<32x32xf32>
    %c1_124 = arith.constant 1 : index
    %c6_125 = arith.constant 6 : index
    %c0_126 = arith.constant 0 : index
    %278 = vector.load %arg8[%c1_124, %c6_125, %c0_126] : memref<2x8x128xf32, #tpu.memory_space<vmem>>, vector<1x1x32xf32>
    %279 = vector.shape_cast %278 : vector<1x1x32xf32> to vector<1x32xf32>
    %c1_127 = arith.constant 1 : index
    %c7_128 = arith.constant 7 : index
    %c0_129 = arith.constant 0 : index
    %280 = vector.load %arg8[%c1_127, %c7_128, %c0_129] : memref<2x8x128xf32, #tpu.memory_space<vmem>>, vector<1x1x32xf32>
    %281 = vector.shape_cast %280 : vector<1x1x32xf32> to vector<1x32xf32>
    %cst_130 = arith.constant dense<0.000000e+00> : vector<32xf32>
    %282 = vector.multi_reduction <add>, %277, %cst_130 [1] : vector<32x32xf32> to vector<32xf32>
    %283 = vector.shape_cast %282 : vector<32xf32> to vector<32x1xf32>
    %cst_131 = arith.constant 3.200000e+01 : f32
    %284 = vector.broadcast %cst_131 : f32 to vector<32x1xf32>
    %285 = arith.divf %283, %284 : vector<32x1xf32>
    %286 = vector.broadcast %285 : vector<32x1xf32> to vector<32x32xf32>
    %287 = arith.subf %277, %286 : vector<32x32xf32>
    %288 = arith.mulf %287, %287 : vector<32x32xf32>
    %cst_132 = arith.constant dense<0.000000e+00> : vector<32xf32>
    %289 = vector.multi_reduction <add>, %288, %cst_132 [1] : vector<32x32xf32> to vector<32xf32>
    %290 = vector.shape_cast %289 : vector<32xf32> to vector<32x1xf32>
    %cst_133 = arith.constant 3.200000e+01 : f32
    %291 = vector.broadcast %cst_133 : f32 to vector<32x1xf32>
    %292 = arith.divf %290, %291 : vector<32x1xf32>
    %293 = vector.broadcast %285 : vector<32x1xf32> to vector<32x32xf32>
    %294 = arith.subf %277, %293 : vector<32x32xf32>
    %cst_134 = arith.constant 9.99999974E-6 : f32
    %295 = vector.broadcast %cst_134 : f32 to vector<32x1xf32>
    %296 = arith.addf %292, %295 : vector<32x1xf32>
    %297 = math.rsqrt %296 : vector<32x1xf32>
    %298 = vector.broadcast %297 : vector<32x1xf32> to vector<32x32xf32>
    %299 = arith.mulf %294, %298 : vector<32x32xf32>
    %300 = vector.broadcast %279 : vector<1x32xf32> to vector<32x32xf32>
    %301 = arith.mulf %299, %300 : vector<32x32xf32>
    %302 = vector.broadcast %281 : vector<1x32xf32> to vector<32x32xf32>
    %303 = arith.addf %301, %302 : vector<32x32xf32>
    %304 = vector.shape_cast %303 : vector<32x32xf32> to vector<2x16x32xf32>
    %c0_135 = arith.constant 0 : index
    %c0_136 = arith.constant 0 : index
    %c0_137 = arith.constant 0 : index
    %305 = vector.load %arg9[%c0_135, %c0_136, %c0_137] : memref<2x16x32xf32, #tpu.memory_space<vmem>>, vector<2x16x32xf32>
    tpu.vector_store %arg9[%c0_135, %c0_136, %c0_137], %304 {strides = array<i32>} : memref<2x16x32xf32, #tpu.memory_space<vmem>>, vector<2x16x32xf32>,
    return
  }
  func.func @transform_0(%arg0: i32) -> (i32, i32, i32) {
    %c0_i32 = arith.constant 0 : i32
    %c0_i32_0 = arith.constant 0 : i32
    %c0_i32_1 = arith.constant 0 : i32
    return %arg0, %c0_i32, %c0_i32_0 : i32, i32, i32
  }
  func.func @transform_1(%arg0: i32) -> (i32, i32, i32) {
    %c0_i32 = arith.constant 0 : i32
    %c0_i32_0 = arith.constant 0 : i32
    %c0_i32_1 = arith.constant 0 : i32
    return %arg0, %c0_i32, %c0_i32_0 : i32, i32, i32
  }
  func.func @transform_2(%arg0: i32) -> (i32, i32, i32) {
    %c0_i32 = arith.constant 0 : i32
    %c0_i32_0 = arith.constant 0 : i32
    %c0_i32_1 = arith.constant 0 : i32
    %c0_i32_2 = arith.constant 0 : i32
    return %c0_i32, %c0_i32_0, %c0_i32_1 : i32, i32, i32
  }
  func.func @transform_3(%arg0: i32) -> (i32, i32, i32) {
    %c0_i32 = arith.constant 0 : i32
    %c0_i32_0 = arith.constant 0 : i32
    %c0_i32_1 = arith.constant 0 : i32
    %c0_i32_2 = arith.constant 0 : i32
    return %c0_i32, %c0_i32_0, %c0_i32_1 : i32, i32, i32
  }
  func.func @transform_4(%arg0: i32) -> (i32, i32, i32) {
    %c0_i32 = arith.constant 0 : i32
    %c0_i32_0 = arith.constant 0 : i32
    %c0_i32_1 = arith.constant 0 : i32
    %c0_i32_2 = arith.constant 0 : i32
    return %c0_i32, %c0_i32_0, %c0_i32_1 : i32, i32, i32
  }
  func.func @transform_5(%arg0: i32) -> (i32, i32, i32) {
    %c0_i32 = arith.constant 0 : i32
    %c0_i32_0 = arith.constant 0 : i32
    %c0_i32_1 = arith.constant 0 : i32
    %c0_i32_2 = arith.constant 0 : i32
    return %c0_i32, %c0_i32_0, %c0_i32_1 : i32, i32, i32
  }
  func.func @transform_6(%arg0: i32) -> (i32, i32, i32) {
    %c0_i32 = arith.constant 0 : i32
    %c0_i32_0 = arith.constant 0 : i32
    %c0_i32_1 = arith.constant 0 : i32
    %c0_i32_2 = arith.constant 0 : i32
    return %c0_i32, %c0_i32_0, %c0_i32_1 : i32, i32, i32
  }
  func.func @transform_7(%arg0: i32) -> (i32, i32, i32) {
    %c0_i32 = arith.constant 0 : i32
    %c0_i32_0 = arith.constant 0 : i32
    %c0_i32_1 = arith.constant 0 : i32
    %c0_i32_2 = arith.constant 0 : i32
    return %c0_i32, %c0_i32_0, %c0_i32_1 : i32, i32, i32
  }
  func.func @transform_8(%arg0: i32) -> (i32, i32, i32) {
    %c0_i32 = arith.constant 0 : i32
    %c0_i32_0 = arith.constant 0 : i32
    %c0_i32_1 = arith.constant 0 : i32
    return %arg0, %c0_i32, %c0_i32_0 : i32, i32, i32
  }
}

</mosaic_0001>

<llo_original>
// kernel: transformer_encoder_forward.1
$region0: #{transformer_encoder_forward.1}
  #allocation0 [shape = 'u32[]', space=smem, size = 0x4, offset = 0x4, fixed_abs, tag = 'smem constant byte address 0x4 - core index']
  #allocation1 [shape = 'u32[144,128]{1,0:T(1,128)}', space=vmem, size = 0x12000, scoped, tag = 'internal scratch']
  %s0 = inlined_call_operand.hbm [shape: f32[4,8,32], index: 0, kind: input, shape index: {}]
  %s1 = inlined_call_operand.vmem [shape: f32[4,7,32], index: 1, kind: input, shape index: {}]
  %s2 = inlined_call_operand.vmem [shape: f32[1,16,32], index: 2, kind: input, shape index: {}]
  %s3 = inlined_call_operand.hbm [shape: f32[2,32,96], index: 3, kind: input, shape index: {}]
  %s4 = inlined_call_operand.hbm [shape: f32[2,32,32], index: 4, kind: input, shape index: {}]
  %s5 = inlined_call_operand.hbm [shape: f32[2,32,64], index: 5, kind: input, shape index: {}]
  %s6 = inlined_call_operand.vmem [shape: f32[2,64,32], index: 6, kind: input, shape index: {}]
  %s7 = inlined_call_operand.hbm [shape: f32[2,8,128], index: 7, kind: input, shape index: {}]
  %s8 = inlined_call_operand.vmem [shape: f32[4,16,32], index: 8, kind: output, shape index: {}]
  %s9 = sld [smem:[#allocation0]]
  $region85: #{transformer_encoder_forward.1} parent=0
    _
  %s11 = ssub.s32 1, %s9
  %s12 = scalar_select 0, %s11, %s9
  $region1: #{transformer_encoder_forward.1} parent=0
    #allocation2 [shape = 'u8[16384]{0}', space=vmem, size = 0x4000, scoped, tag = 'input window, operand 0']
    #allocation3 [shape = 's32[2]{0}', space=sflag, size = 0x8, scoped, tag = 'scoped memory for transformer_encoder_forward.1']
    #allocation4 [shape = 'u8[32768]{0}', space=vmem, size = 0x8000, scoped, tag = 'input window, operand 3, single buffered']
    #allocation5 [shape = 's32[1]{0}', space=sflag, size = 0x4, scoped, tag = 'scoped memory for transformer_encoder_forward.1']
    #allocation6 [shape = 'u8[32768]{0}', space=vmem, size = 0x8000, scoped, tag = 'input window, operand 4, single buffered']
    #allocation7 [shape = 'u8[32768]{0}', space=vmem, size = 0x8000, scoped, tag = 'input window, operand 5, single buffered']
    #allocation8 [shape = 's32[1]{0}', space=sflag, size = 0x4, scoped, tag = 'scoped memory for transformer_encoder_forward.1']
    #allocation9 [shape = 'u8[8192]{0}', space=vmem, size = 0x2000, scoped, tag = 'input window, operand 7, single buffered']
    %13 = vsyncpa [#allocation3], 0
    %s14 = scalar_lea.sflag [#allocation3], 1
    %15 = vsyncpa %s14, 0
    %16 = vsyncpa [#allocation5], 0
    %17 = vsyncpa [#allocation8], 0
    loop: start=0, step=1, limit=4
    $region2: #{transformer_encoder_forward.1} parent=1 // loop_pre_header
      _
    $region3: #{transformer_encoder_forward.1} parent=1 // loop_header
      %s19 = sphi 0, %s23
      %p20 = scmp.ge.s32.totalorder %s19, 4
      %s29 = sphi 0, %s31
      %s32 = sphi 0, %s29
      %s33 = sphi 0, %s32
      %s49 = sphi 0, %s33
      %s55 = sphi 0, %s57
      %s58 = sphi 0, %s55
      %s59 = sphi 0, %s58
      %s75 = sphi 0, %s59
      %s79 = sphi 0, %s79
      %s81 = sphi 0, %s79
      %s82 = sphi 0, %s81
      %s96 = sphi 0, %s82
      %s100 = sphi 0, %s100
      %s102 = sphi 0, %s100
      %s103 = sphi 0, %s102
      %s117 = sphi 0, %s103
      %s121 = sphi 0, %s121
      %s123 = sphi 0, %s121
      %s124 = sphi 0, %s123
      %s138 = sphi 0, %s124
      %s142 = sphi 0, %s142
      %s144 = sphi 0, %s142
      %s145 = sphi 0, %s144
      %s159 = sphi 0, %s145
      %s163 = sphi 0, %s163
      %s165 = sphi 0, %s163
      %s166 = sphi 0, %s165
      %s180 = sphi 0, %s166
      %s184 = sphi 0, %s184
      %s186 = sphi 0, %s184
      %s187 = sphi 0, %s186
      %s201 = sphi 0, %s187
      %s207 = sphi 0, %s209
      %s210 = sphi 0, %s207
      %s211 = sphi 0, %s210
      %s227 = sphi 0, %s211
    $region4: #{transformer_encoder_forward.1} parent=1 // loop_header_branch
      %22 = sbr.rel (%p20) target = $region8
    $region5: #{transformer_encoder_forward.1} parent=1 // loop_body
      %s24 = ssub.s32 %s19, 1
      %s25 = ssub.s32 %s19, 2
      %s26 = sadd.s32 %s19, 1
      %s27 = ssub.s32 %s19, %s26
      %p28 = scmp.eq.s32.totalorder %s27, 0
      %s30 = sadd.s32 %s29, 1
      %s31 = scalar_select %p28, %s29, %s30
      %p34 = pneg %p28
      %p35 = scmp.eq.s32.totalorder %s19, 1
      %p36 = por %p34, %p35
      %p37 = scmp.ne.s32.totalorder %s29, %s32
      %p38 = scmp.eq.s32.totalorder %s19, 0
      %p39 = por %p37, %p38
      %p40 = scmp.ne.s32.totalorder %s29, %s32
      %p41 = scmp.eq.s32.totalorder %s24, 1
      %p42 = por %p40, %p41
      %p43 = scmp.ne.s32.totalorder %s32, %s33
      %p44 = scmp.eq.s32.totalorder %s24, 0
      %p45 = por %p43, %p44
      %p46 = scmp.ne.s32.totalorder %s32, %s33
      %p47 = scmp.eq.s32.totalorder %s25, 1
      %p48 = por %p46, %p47
      %p50 = scmp.ne.s32.totalorder %s33, %s49
      %p51 = scmp.eq.s32.totalorder %s25, 0
      %p52 = por %p50, %p51
      %s53 = ssub.s32 %s19, %s26
      %p54 = scmp.eq.s32.totalorder %s53, 0
      %s56 = sadd.s32 %s55, 1
      %s57 = scalar_select %p54, %s55, %s56
      %p60 = pneg %p54
      %p61 = scmp.eq.s32.totalorder %s19, 1
      %p62 = por %p60, %p61
      %p63 = scmp.ne.s32.totalorder %s55, %s58
      %p64 = scmp.eq.s32.totalorder %s19, 0
      %p65 = por %p63, %p64
      %p66 = scmp.ne.s32.totalorder %s55, %s58
      %p67 = scmp.eq.s32.totalorder %s24, 1
      %p68 = por %p66, %p67
      %p69 = scmp.ne.s32.totalorder %s58, %s59
      %p70 = scmp.eq.s32.totalorder %s24, 0
      %p71 = por %p69, %p70
      %p72 = scmp.ne.s32.totalorder %s58, %s59
      %p73 = scmp.eq.s32.totalorder %s25, 1
      %p74 = por %p72, %p73
      %p76 = scmp.ne.s32.totalorder %s59, %s75
      %p77 = scmp.eq.s32.totalorder %s25, 0
      %p78 = por %p76, %p77
      %s80 = sadd.s32 %s79, 1
      %p83 = scmp.eq.s32.totalorder %s19, 1
      %p84 = scmp.ne.s32.totalorder %s79, %s81
      %p85 = scmp.eq.s32.totalorder %s19, 0
      %p86 = por %p84, %p85
      %p87 = scmp.ne.s32.totalorder %s79, %s81
      %p88 = scmp.eq.s32.totalorder %s24, 1
      %p89 = por %p87, %p88
      %p90 = scmp.ne.s32.totalorder %s81, %s82
      %p91 = scmp.eq.s32.totalorder %s24, 0
      %p92 = por %p90, %p91
      %p93 = scmp.ne.s32.totalorder %s81, %s82
      %p94 = scmp.eq.s32.totalorder %s25, 1
      %p95 = por %p93, %p94
      %p97 = scmp.ne.s32.totalorder %s82, %s96
      %p98 = scmp.eq.s32.totalorder %s25, 0
      %p99 = por %p97, %p98
      %s101 = sadd.s32 %s100, 1
      %p104 = scmp.eq.s32.totalorder %s19, 1
      %p105 = scmp.ne.s32.totalorder %s100, %s102
      %p106 = scmp.eq.s32.totalorder %s19, 0
      %p107 = por %p105, %p106
      %p108 = scmp.ne.s32.totalorder %s100, %s102
      %p109 = scmp.eq.s32.totalorder %s24, 1
      %p110 = por %p108, %p109
      %p111 = scmp.ne.s32.totalorder %s102, %s103
      %p112 = scmp.eq.s32.totalorder %s24, 0
      %p113 = por %p111, %p112
      %p114 = scmp.ne.s32.totalorder %s102, %s103
      %p115 = scmp.eq.s32.totalorder %s25, 1
      %p116 = por %p114, %p115
      %p118 = scmp.ne.s32.totalorder %s103, %s117
      %p119 = scmp.eq.s32.totalorder %s25, 0
      %p120 = por %p118, %p119
      %s122 = sadd.s32 %s121, 1
      %p125 = scmp.eq.s32.totalorder %s19, 1
      %p126 = scmp.ne.s32.totalorder %s121, %s123
      %p127 = scmp.eq.s32.totalorder %s19, 0
      %p128 = por %p126, %p127
      %p129 = scmp.ne.s32.totalorder %s121, %s123
      %p130 = scmp.eq.s32.totalorder %s24, 1
      %p131 = por %p129, %p130
      %p132 = scmp.ne.s32.totalorder %s123, %s124
      %p133 = scmp.eq.s32.totalorder %s24, 0
      %p134 = por %p132, %p133
      %p135 = scmp.ne.s32.totalorder %s123, %s124
      %p136 = scmp.eq.s32.totalorder %s25, 1
      %p137 = por %p135, %p136
      %p139 = scmp.ne.s32.totalorder %s124, %s138
      %p140 = scmp.eq.s32.totalorder %s25, 0
      %p141 = por %p139, %p140
      %s143 = sadd.s32 %s142, 1
      %p146 = scmp.eq.s32.totalorder %s19, 1
      %p147 = scmp.ne.s32.totalorder %s142, %s144
      %p148 = scmp.eq.s32.totalorder %s19, 0
      %p149 = por %p147, %p148
      %p150 = scmp.ne.s32.totalorder %s142, %s144
      %p151 = scmp.eq.s32.totalorder %s24, 1
      %p152 = por %p150, %p151
      %p153 = scmp.ne.s32.totalorder %s144, %s145
      %p154 = scmp.eq.s32.totalorder %s24, 0
      %p155 = por %p153, %p154
      %p156 = scmp.ne.s32.totalorder %s144, %s145
      %p157 = scmp.eq.s32.totalorder %s25, 1
      %p158 = por %p156, %p157
      %p160 = scmp.ne.s32.totalorder %s145, %s159
      %p161 = scmp.eq.s32.totalorder %s25, 0
      %p162 = por %p160, %p161
      %s164 = sadd.s32 %s163, 1
      %p167 = scmp.eq.s32.totalorder %s19, 1
      %p168 = scmp.ne.s32.totalorder %s163, %s165
      %p169 = scmp.eq.s32.totalorder %s19, 0
      %p170 = por %p168, %p169
      %p171 = scmp.ne.s32.totalorder %s163, %s165
      %p172 = scmp.eq.s32.totalorder %s24, 1
      %p173 = por %p171, %p172
      %p174 = scmp.ne.s32.totalorder %s165, %s166
      %p175 = scmp.eq.s32.totalorder %s24, 0
      %p176 = por %p174, %p175
      %p177 = scmp.ne.s32.totalorder %s165, %s166
      %p178 = scmp.eq.s32.totalorder %s25, 1
      %p179 = por %p177, %p178
      %p181 = scmp.ne.s32.totalorder %s166, %s180
      %p182 = scmp.eq.s32.totalorder %s25, 0
      %p183 = por %p181, %p182
      %s185 = sadd.s32 %s184, 1
      %p188 = scmp.eq.s32.totalorder %s19, 1
      %p189 = scmp.ne.s32.totalorder %s184, %s186
      %p190 = scmp.eq.s32.totalorder %s19, 0
      %p191 = por %p189, %p190
      %p192 = scmp.ne.s32.totalorder %s184, %s186
      %p193 = scmp.eq.s32.totalorder %s24, 1
      %p194 = por %p192, %p193
      %p195 = scmp.ne.s32.totalorder %s186, %s187
      %p196 = scmp.eq.s32.totalorder %s24, 0
      %p197 = por %p195, %p196
      %p198 = scmp.ne.s32.totalorder %s186, %s187
      %p199 = scmp.eq.s32.totalorder %s25, 1
      %p200 = por %p198, %p199
      %p202 = scmp.ne.s32.totalorder %s187, %s201
      %p203 = scmp.eq.s32.totalorder %s25, 0
      %p204 = por %p202, %p203
      %s205 = ssub.s32 %s19, %s26
      %p206 = scmp.eq.s32.totalorder %s205, 0
      %s208 = sadd.s32 %s207, 1
      %s209 = scalar_select %p206, %s207, %s208
      %p212 = pneg %p206
      %p213 = scmp.eq.s32.totalorder %s19, 1
      %p214 = por %p212, %p213
      %p215 = scmp.ne.s32.totalorder %s207, %s210
      %p216 = scmp.eq.s32.totalorder %s19, 0
      %p217 = por %p215, %p216
      %p218 = scmp.ne.s32.totalorder %s207, %s210
      %p219 = scmp.eq.s32.totalorder %s24, 1
      %p220 = por %p218, %p219
      %p221 = scmp.ne.s32.totalorder %s210, %s211
      %p222 = scmp.eq.s32.totalorder %s24, 0
      %p223 = por %p221, %p222
      %p224 = scmp.ne.s32.totalorder %s210, %s211
      %p225 = scmp.eq.s32.totalorder %s25, 1
      %p226 = por %p224, %p225
      %p228 = scmp.ne.s32.totalorder %s211, %s227
      %p229 = scmp.eq.s32.totalorder %s25, 0
      %p230 = por %p228, %p229
      %p231 = scmp.le.s32.totalorder 1, %s19
      %p232 = scmp.lt.s32.totalorder %s19, 3
      %p233 = pnand %p231, %p232
      %p234 = pneg %p233
      // Predicated region
      $region9: #{transformer_encoder_forward.1} parent=5 // pred_check
        _
      $region10: #{transformer_encoder_forward.1} parent=5 // pred_check_branch
        %236 = sbr.rel (%p233) target = $region12
      $region11: #{transformer_encoder_forward.1} parent=5 // pred_region
        %s237 = ssub.s32 %s19, 1
        // Predicated region
        $region13: #{transformer_encoder_forward.1} parent=11 // pred_check
          %p238 = pneg %p92
        $region14: #{transformer_encoder_forward.1} parent=11 // pred_check_branch
          %240 = sbr.rel (%p238) target = $region16
        $region15: #{transformer_encoder_forward.1} parent=11 // pred_region
          _
        $region16: #{transformer_encoder_forward.1} parent=11 // pred_fallthru
          _
        // Predicated region
        $region17: #{transformer_encoder_forward.1} parent=11 // pred_check
          %p241 = pneg %p113
        $region18: #{transformer_encoder_forward.1} parent=11 // pred_check_branch
          %243 = sbr.rel (%p241) target = $region20
        $region19: #{transformer_encoder_forward.1} parent=11 // pred_region
          %s245 = ssub.s32 1024, 1024
          %246 = vsyncadd [#allocation5], %s245
          %s247 = sshll.u32 [#allocation4], 4
          %s248 = int_to_ptr.vmem [resolvable:$true] %s247
          %253 = dma.hbm_to_vmem [thread:$0]  %s3, 1024, %s248, [#allocation5], 128, 128, 8
        $region20: #{transformer_encoder_forward.1} parent=11 // pred_fallthru
          _
        // Predicated region
        $region21: #{transformer_encoder_forward.1} parent=11 // pred_check
          %p254 = pneg %p134
        $region22: #{transformer_encoder_forward.1} parent=11 // pred_check_branch
          %256 = sbr.rel (%p254) target = $region24
        $region23: #{transformer_encoder_forward.1} parent=11 // pred_region
          %s258 = ssub.s32 1024, 1024
          %259 = vsyncadd [#allocation5], %s258
          %s260 = sshll.u32 [#allocation6], 4
          %s261 = int_to_ptr.vmem [resolvable:$true] %s260
          %266 = dma.hbm_to_vmem [thread:$0]  %s4, 1024, %s261, [#allocation5], 128, 128, 8
        $region24: #{transformer_encoder_forward.1} parent=11 // pred_fallthru
          _
        // Predicated region
        $region25: #{transformer_encoder_forward.1} parent=11 // pred_check
          %p267 = pneg %p155
        $region26: #{transformer_encoder_forward.1} parent=11 // pred_check_branch
          %269 = sbr.rel (%p267) target = $region28
        $region27: #{transformer_encoder_forward.1} parent=11 // pred_region
          %s271 = ssub.s32 1024, 1024
          %272 = vsyncadd [#allocation8], %s271
          %s273 = sshll.u32 [#allocation7], 4
          %s274 = int_to_ptr.vmem [resolvable:$true] %s273
          %279 = dma.hbm_to_vmem [thread:$0]  %s5, 1024, %s274, [#allocation8], 128, 128, 8
        $region28: #{transformer_encoder_forward.1} parent=11 // pred_fallthru
          _
        // Predicated region
        $region29: #{transformer_encoder_forward.1} parent=11 // pred_check
          %p280 = pneg %p176
        $region30: #{transformer_encoder_forward.1} parent=11 // pred_check_branch
          %282 = sbr.rel (%p280) target = $region32
        $region31: #{transformer_encoder_forward.1} parent=11 // pred_region
          _
        $region32: #{transformer_encoder_forward.1} parent=11 // pred_fallthru
          _
        // Predicated region
        $region33: #{transformer_encoder_forward.1} parent=11 // pred_check
          %p283 = pneg %p197
        $region34: #{transformer_encoder_forward.1} parent=11 // pred_check_branch
          %285 = sbr.rel (%p283) target = $region36
        $region35: #{transformer_encoder_forward.1} parent=11 // pred_region
          %s287 = ssub.s32 256, 256
          %288 = vsyncadd [#allocation8], %s287
          %s289 = sshll.u32 [#allocation9], 4
          %s290 = int_to_ptr.vmem [resolvable:$true] %s289
          %295 = dma.hbm_to_vmem [thread:$0]  %s7, 256, %s290, [#allocation8], 128, 128, 8
        $region36: #{transformer_encoder_forward.1} parent=11 // pred_fallthru
          _
      $region12: #{transformer_encoder_forward.1} parent=5 // pred_fallthru
        _
      %p296 = scmp.lt.s32.totalorder %s19, 2
      // Predicated region
      $region37: #{transformer_encoder_forward.1} parent=5 // pred_check
        %p297 = pneg %p296
      $region38: #{transformer_encoder_forward.1} parent=5 // pred_check_branch
        %299 = sbr.rel (%p297) target = $region40
      $region39: #{transformer_encoder_forward.1} parent=5 // pred_region
        // Predicated region
        $region41: #{transformer_encoder_forward.1} parent=39 // pred_check
          %p300 = pneg %p39
        $region42: #{transformer_encoder_forward.1} parent=39 // pred_check_branch
          %302 = sbr.rel (%p300) target = $region44
        $region43: #{transformer_encoder_forward.1} parent=39 // pred_region
          %s303 = sand.u32 %s29, 1
          %s304 = scalar_lea.sflag [#allocation3], %s303
          %s305 = sand.u32 %s29, 1
          %s306 = smul.addr %s305, 16
          %s307 = scalar_lea.vmem [#allocation2], %s306
          %s308 = smul.u32 2, %s19
          %s310 = ssub.s32 256, 256
          %311 = vsyncadd %s304, %s310
          %s312 = smul.addr %s308, 128
          %s313 = scalar_lea.hbm %s0, %s312
          %s314 = sshll.u32 %s307, 4
          %s315 = int_to_ptr.vmem [resolvable:$true] %s314
          %320 = dma.hbm_to_vmem [thread:$0]  %s313, 256, %s315, %s304, 128, 128, 8
        $region44: #{transformer_encoder_forward.1} parent=39 // pred_fallthru
          _
        // Predicated region
        $region45: #{transformer_encoder_forward.1} parent=39 // pred_check
          %p321 = pneg %p65
        $region46: #{transformer_encoder_forward.1} parent=39 // pred_check_branch
          %323 = sbr.rel (%p321) target = $region48
        $region47: #{transformer_encoder_forward.1} parent=39 // pred_region
          %s324 = smul.u32 2, %s19
          %p325 = scmp.lt.s32.totalorder %s324, 3
          %s326 = scalar_select %p325, %s324, 3
          %s327 = smul.addr %s326, 8
          %s328 = scalar_lea.vmem %s1, %s327
          %s329 = smul.u32 2, %s19
        $region48: #{transformer_encoder_forward.1} parent=39 // pred_fallthru
          _
      $region40: #{transformer_encoder_forward.1} parent=5 // pred_fallthru
        _
      %p330 = scmp.le.s32.totalorder 1, %s19
      %p331 = scmp.lt.s32.totalorder %s19, 3
      %p332 = pnand %p330, %p331
      %p333 = pneg %p332
      // Predicated region
      $region49: #{transformer_encoder_forward.1} parent=5 // pred_check
        _
      $region50: #{transformer_encoder_forward.1} parent=5 // pred_check_branch
        %335 = sbr.rel (%p332) target = $region52
      $region51: #{transformer_encoder_forward.1} parent=5 // pred_region
        %s336 = ssub.s32 %s19, 1
        %s337 = sand.u32 %s32, 1
        %s338 = scalar_lea.sflag [#allocation3], %s337
        %s339 = sand.u32 %s32, 1
        %s340 = smul.addr %s339, 16
        %s341 = scalar_lea.vmem [#allocation2], %s340
        // Predicated region
        $region53: #{transformer_encoder_forward.1} parent=51 // pred_check
          %p342 = pneg %p45
        $region54: #{transformer_encoder_forward.1} parent=51 // pred_check_branch
          %344 = sbr.rel (%p342) target = $region56
        $region55: #{transformer_encoder_forward.1} parent=51 // pred_region
          %345 = dma.done %s338, 256
        $region56: #{transformer_encoder_forward.1} parent=51 // pred_fallthru
          _
        // Predicated region
        $region57: #{transformer_encoder_forward.1} parent=51 // pred_check
          %p346 = pneg %p113
        $region58: #{transformer_encoder_forward.1} parent=51 // pred_check_branch
          %348 = sbr.rel (%p346) target = $region60
        $region59: #{transformer_encoder_forward.1} parent=51 // pred_region
          %349 = dma.done [#allocation5], 1024
        $region60: #{transformer_encoder_forward.1} parent=51 // pred_fallthru
          _
        // Predicated region
        $region61: #{transformer_encoder_forward.1} parent=51 // pred_check
          %p350 = pneg %p134
        $region62: #{transformer_encoder_forward.1} parent=51 // pred_check_branch
          %352 = sbr.rel (%p350) target = $region64
        $region63: #{transformer_encoder_forward.1} parent=51 // pred_region
          %353 = dma.done [#allocation5], 1024
        $region64: #{transformer_encoder_forward.1} parent=51 // pred_fallthru
          _
        // Predicated region
        $region65: #{transformer_encoder_forward.1} parent=51 // pred_check
          %p354 = pneg %p155
        $region66: #{transformer_encoder_forward.1} parent=51 // pred_check_branch
          %356 = sbr.rel (%p354) target = $region68
        $region67: #{transformer_encoder_forward.1} parent=51 // pred_region
          %357 = dma.done [#allocation8], 1024
        $region68: #{transformer_encoder_forward.1} parent=51 // pred_fallthru
          _
        // Predicated region
        $region69: #{transformer_encoder_forward.1} parent=51 // pred_check
          %p358 = pneg %p197
        $region70: #{transformer_encoder_forward.1} parent=51 // pred_check_branch
          %360 = sbr.rel (%p358) target = $region72
        $region71: #{transformer_encoder_forward.1} parent=51 // pred_region
          %361 = dma.done [#allocation8], 256
        $region72: #{transformer_encoder_forward.1} parent=51 // pred_fallthru
          _
        %s362 = sand.u32 %s32, 1
        %s363 = scalar_lea.sflag [#allocation3], %s362
        %s364 = sand.u32 %s32, 1
        %s365 = smul.addr %s364, 16
        %s366 = scalar_lea.vmem [#allocation2], %s365
        %p367 = pneg %p45
        %p368 = pneg %p42
        %s369 = smul.u32 2, %s24
        %p370 = scmp.lt.s32.totalorder %s369, 3
        %s371 = scalar_select %p370, %s369, 3
        %s372 = smul.addr %s371, 8
        %s373 = scalar_lea.vmem %s1, %s372
        %p374 = pneg %p71
        %p375 = pneg %p68
        %p376 = pneg %p92
        %p377 = pneg %p89
        %p378 = pneg %p113
        %p379 = pneg %p110
        %p380 = pneg %p134
        %p381 = pneg %p131
        %p382 = pneg %p155
        %p383 = pneg %p152
        %p384 = pneg %p176
        %p385 = pneg %p173
        %p386 = pneg %p197
        %p387 = pneg %p194
        %p388 = pneg %p223
        %p389 = pneg %p220
        %s390 = smul.u32 2, %s24
        %p391 = scmp.lt.s32.totalorder %s390, 3
        %s392 = scalar_select %p391, %s390, 3
        %s393 = smul.addr %s392, 2
        %s394 = smul.addr %s393, 8
        %s395 = scalar_lea.vmem %s8, %s394
        %s396 = smul.u32 2, %s24
        %s397 = smul.u32 2, %s24
        %p398 = scmp.lt.s32.totalorder %s397, 3
        %s399 = scalar_select %p398, %s397, 3
        %s400 = smul.addr %s399, 8
        %s401 = scalar_lea.vmem %s1, %s400
        %s402 = smul.u32 2, %s24
        %s403 = smul.u32 2, %s24
        %p404 = scmp.lt.s32.totalorder %s403, 3
        %s405 = scalar_select %p404, %s403, 3
        %s406 = smul.addr %s405, 2
        %s407 = smul.addr %s406, 8
        %s408 = scalar_lea.vmem %s8, %s407
        %s409 = smul.u32 2, %s24
        %v410 = vld [vmem:[%s341] sm:$0xff]
        %v411 = vld [vmem:[%s341 + $0x8] sm:$0xff]
        %v412 = vld [vmem:[%s401] sm:$0x7f]
        %v413 = vld [vmem:[%s401 + $0x8] sm:$0x7f]
        %v416 = vrot.slane %v410, 7
        %v417 = vrot.slane %v411, 7
        %v422 = vrot.slane %v412, 7
        %v423 = vrot.slane %v413, 7
        %vm426 = vcmask 1040384
        %v427 = vsel %vm426, 0.0, %v416
        %v428 = vsel %vm426, 0.0, %v417
        %v429 = vsel %vm426, %v416, %v422
        %v430 = vsel %vm426, %v417, %v423
        %v431 = vld [vmem:[%s2] sm:$0xff]
        %v432 = vld [vmem:[%s2 + $0x8] sm:$0xff]
        %v433 = vadd.f32 %v427, %v431
        %v434 = vadd.f32 %v429, %v432
        %v435 = vadd.f32 %v428, %v431
        %v436 = vadd.f32 %v430, %v432
        %v437 = vld [vmem:[#allocation4] sm:$0xff]
        %v438 = vld [vmem:[#allocation4 + $0x8] sm:$0xff]
        %v439 = vld [vmem:[#allocation4 + $0x10] sm:$0xff]
        %v440 = vld [vmem:[#allocation4 + $0x18] sm:$0xff]
        %v441 = vld [vmem:[#allocation9] sm:$0x1]
        %v442 = vlaneseq
        %v443 = vshrl.u32 %v442, 7
        %v444 = vsub.s32 0, %v443
        %v445 = vrot.slane %v441, %v444
        %vm446 = vcmask 261120
        %v448 = vsel %vm446, %v433, 0
        %v451 = vsel %vm446, %v434, 0
        %v454 = vsel %vm446, %v435, 0
        %v457 = vsel %vm446, %v436, 0
        %459 = vmatprep.subr.mxu0 0.0
        %460 = vmatpush1.msra.mxu0 0.0
        %461 = vmatprep.subr.mxu0 0.0
        %462 = vmatpush1.msra.mxu0 0.0
        %463 = vmatprep.subr.mxu0 0.0
        %464 = vmatpush1.msra.mxu0 0.0
        %465 = vmatprep.subr.mxu0 0.0
        %466 = vmatpush1.msra.mxu0 0.0
        %467 = vmatprep.subr.mxu0 0.0
        %468 = vmatpush1.msra.mxu0 0.0
        %469 = vmatprep.subr.mxu0 0.0
        %470 = vmatpush1.msra.mxu0 0.0
        %471 = vmatprep.subr.mxu0 0.0
        %472 = vmatpush1.msra.mxu0 0.0
        %473 = vmatprep.subr.mxu0 0.0
        %474 = vmatpush1.msra.mxu0 0.0
        %475 = vmatprep.subr.mxu0 0.0
        %476 = vmatpush1.msra.mxu0 0.0
        %477 = vmatprep.subr.mxu0 0.0
        %478 = vmatpush1.msra.mxu0 0.0
        %479 = vmatprep.subr.mxu0 0.0
        %480 = vmatpush1.msra.mxu0 0.0
        %481 = vmatprep.subr.mxu0 0.0
        %482 = vmatpush1.msra.mxu0 0.0
        %483 = vmatprep.subr.mxu0 0.0
        %484 = vmatpush1.msra.mxu0 %v440
        %485 = vmatprep.subr.mxu0 0.0
        %486 = vmatpush1.msra.mxu0 %v439
        %487 = vmatprep.subr.mxu0 0.0
        %488 = vmatpush1.msra.mxu0 %v438
        %489 = vmatprep.subr.mxu0 0.0
        %490 = vmatpush1.msra.mxu0 %v437
        %491 = vmatprep.subr.mxu0 0.0
        %492 = vmatpush2.msra.mxu0 0.0
        %493 = vmatprep.subr.mxu0 0.0
        %494 = vmatpush2.msra.mxu0 0.0
        %495 = vmatprep.subr.mxu0 0.0
        %496 = vmatpush2.msra.mxu0 0.0
        %497 = vmatprep.subr.mxu0 0.0
        %498 = vmatpush2.msra.mxu0 0.0
        %499 = vmatprep.subr.mxu0 0.0
        %500 = vmatpush2.msra.mxu0 0.0
        %501 = vmatprep.subr.mxu0 0.0
        %502 = vmatpush2.msra.mxu0 0.0
        %503 = vmatprep.subr.mxu0 0.0
        %504 = vmatpush2.msra.mxu0 0.0
        %505 = vmatprep.subr.mxu0 0.0
        %506 = vmatpush2.msra.mxu0 0.0
        %507 = vmatprep.subr.mxu0 0.0
        %508 = vmatpush2.msra.mxu0 0.0
        %509 = vmatprep.subr.mxu0 0.0
        %510 = vmatpush2.msra.mxu0 0.0
        %511 = vmatprep.subr.mxu0 0.0
        %512 = vmatpush2.msra.mxu0 0.0
        %513 = vmatprep.subr.mxu0 0.0
        %514 = vmatpush2.msra.mxu0 0.0
        %515 = vmatprep.subr.mxu0 0.0
        %516 = vmatpush2.msra.mxu0 0.0
        %517 = vmatprep.subr.mxu0 0.0
        %518 = vmatpush2.msra.mxu0 0.0
        %519 = vmatprep.subr.mxu0 0.0
        %520 = vmatpush2.msra.mxu0 0.0
        %521 = vmatprep.subr.mxu0 0.0
        %522 = vmatpush2.msra.mxu0 0.0
        %523 = vmatprep.mubr.f32.mxu0 0.0
        %524 = vmatmul.mubr.f32.gmra.mxu0 %v448
        %v525 = vpop.f32.mrf.mxu0
        %v526 = vadd.f32 %v445, %v525
        %v527 = vpop.f32.mrf.mxu0
        %528 = vmatprep.mubr.f32.mxu0 0.0
        %529 = vmatmul.mubr.f32.gmra.mxu0 %v451
        %v530 = vpop.f32.mrf.mxu0
        %v531 = vadd.f32 %v445, %v530
        %v532 = vpop.f32.mrf.mxu0
        %533 = vmatprep.mubr.f32.mxu0 0.0
        %534 = vmatmul.mubr.f32.gmra.mxu0 %v454
        %v535 = vpop.f32.mrf.mxu0
        %v536 = vadd.f32 %v445, %v535
        %v537 = vpop.f32.mrf.mxu0
        %538 = vmatprep.mubr.f32.mxu0 0.0
        %539 = vmatmul.mubr.f32.gmra.mxu0 %v457
        %v540 = vpop.f32.mrf.mxu0
        %v541 = vadd.f32 %v445, %v540
        %v542 = vpop.f32.mrf.mxu0
        %543 = vdwg.mxu0
        %546 = vrot.lane.b32.xlu0 %v526, 96
        %v547 = vpop.permute.xlu0 %546
        %548 = vrot.lane.b32.xlu0 %v531, 96
        %v549 = vpop.permute.xlu0 %548
        %vm550 = vcmask 64512
        %v551 = vsel %vm550, %v526, 0
        %v553 = vsel %vm550, %v531, 0
        %v555 = vsel %vm550, %v547, 0
        %v557 = vsel %vm550, %v549, 0
        %559 = vmatprep.subr.mxu0 0.0
        %560 = vmatpush1.xpose.msra.mxu0 0.0
        %561 = vmatprep.subr.mxu0 0.0
        %562 = vmatpush1.xpose.msra.mxu0 0.0
        %563 = vmatprep.subr.mxu0 0.0
        %564 = vmatpush1.xpose.msra.mxu0 0.0
        %565 = vmatprep.subr.mxu0 0.0
        %566 = vmatpush1.xpose.msra.mxu0 0.0
        %567 = vmatprep.subr.mxu0 0.0
        %568 = vmatpush1.xpose.msra.mxu0 0.0
        %569 = vmatprep.subr.mxu0 0.0
        %570 = vmatpush1.xpose.msra.mxu0 0.0
        %571 = vmatprep.subr.mxu0 0.0
        %572 = vmatpush1.xpose.msra.mxu0 0.0
        %573 = vmatprep.subr.mxu0 0.0
        %574 = vmatpush1.xpose.msra.mxu0 0.0
        %575 = vmatprep.subr.mxu0 0.0
        %576 = vmatpush1.xpose.msra.mxu0 0.0
        %577 = vmatprep.subr.mxu0 0.0
        %578 = vmatpush1.xpose.msra.mxu0 0.0
        %579 = vmatprep.subr.mxu0 0.0
        %580 = vmatpush1.xpose.msra.mxu0 0.0
        %581 = vmatprep.subr.mxu0 0.0
        %582 = vmatpush1.xpose.msra.mxu0 0.0
        %583 = vmatprep.subr.mxu0 0.0
        %584 = vmatpush1.xpose.msra.mxu0 0.0
        %585 = vmatprep.subr.mxu0 0.0
        %586 = vmatpush1.xpose.msra.mxu0 0.0
        %587 = vmatprep.subr.mxu0 0.0
        %588 = vmatpush1.xpose.msra.mxu0 %v557
        %589 = vmatprep.subr.mxu0 0.0
        %590 = vmatpush1.xpose.msra.mxu0 %v555
        %591 = vmatprep.subr.mxu0 0.0
        %592 = vmatpush2.xpose.msra.mxu0 0.0
        %593 = vmatprep.subr.mxu0 0.0
        %594 = vmatpush2.xpose.msra.mxu0 0.0
        %595 = vmatprep.subr.mxu0 0.0
        %596 = vmatpush2.xpose.msra.mxu0 0.0
        %597 = vmatprep.subr.mxu0 0.0
        %598 = vmatpush2.xpose.msra.mxu0 0.0
        %599 = vmatprep.subr.mxu0 0.0
        %600 = vmatpush2.xpose.msra.mxu0 0.0
        %601 = vmatprep.subr.mxu0 0.0
        %602 = vmatpush2.xpose.msra.mxu0 0.0
        %603 = vmatprep.subr.mxu0 0.0
        %604 = vmatpush2.xpose.msra.mxu0 0.0
        %605 = vmatprep.subr.mxu0 0.0
        %606 = vmatpush2.xpose.msra.mxu0 0.0
        %607 = vmatprep.subr.mxu0 0.0
        %608 = vmatpush2.xpose.msra.mxu0 0.0
        %609 = vmatprep.subr.mxu0 0.0
        %610 = vmatpush2.xpose.msra.mxu0 0.0
        %611 = vmatprep.subr.mxu0 0.0
        %612 = vmatpush2.xpose.msra.mxu0 0.0
        %613 = vmatprep.subr.mxu0 0.0
        %614 = vmatpush2.xpose.msra.mxu0 0.0
        %615 = vmatprep.subr.mxu0 0.0
        %616 = vmatpush2.xpose.msra.mxu0 0.0
        %617 = vmatprep.subr.mxu0 0.0
        %618 = vmatpush2.xpose.msra.mxu0 0.0
        %619 = vmatprep.subr.mxu0 0.0
        %620 = vmatpush2.xpose.msra.mxu0 0.0
        %621 = vmatprep.subr.mxu0 0.0
        %622 = vmatpush2.xpose.msra.mxu0 0.0
        %623 = vmatprep.mubr.f32.mxu0 0.0
        %624 = vmatmul.mubr.f32.gmra.mxu0 %v551
        %v625 = vpop.f32.mrf.mxu0
        %v626 = vadd.f32 0.0, %v625
        %v627 = vpop.f32.mrf.mxu0
        %628 = vmatprep.mubr.f32.mxu0 0.0
        %629 = vmatmul.mubr.f32.gmra.mxu0 %v553
        %v630 = vpop.f32.mrf.mxu0
        %v631 = vadd.f32 0.0, %v630
        %v632 = vpop.f32.mrf.mxu0
        %633 = vdwg.mxu0
        %636 = vrot.lane.b32.xlu0 %v536, 96
        %v637 = vpop.permute.xlu0 %636
        %638 = vrot.lane.b32.xlu0 %v541, 96
        %v639 = vpop.permute.xlu0 %638
        %v640 = vsel %vm550, %v536, 0
        %v642 = vsel %vm550, %v541, 0
        %v644 = vsel %vm550, %v637, 0
        %v646 = vsel %vm550, %v639, 0
        %648 = vmatprep.subr.mxu0 0.0
        %649 = vmatpush1.xpose.msra.mxu0 0.0
        %650 = vmatprep.subr.mxu0 0.0
        %651 = vmatpush1.xpose.msra.mxu0 0.0
        %652 = vmatprep.subr.mxu0 0.0
        %653 = vmatpush1.xpose.msra.mxu0 0.0
        %654 = vmatprep.subr.mxu0 0.0
        %655 = vmatpush1.xpose.msra.mxu0 0.0
        %656 = vmatprep.subr.mxu0 0.0
        %657 = vmatpush1.xpose.msra.mxu0 0.0
        %658 = vmatprep.subr.mxu0 0.0
        %659 = vmatpush1.xpose.msra.mxu0 0.0
        %660 = vmatprep.subr.mxu0 0.0
        %661 = vmatpush1.xpose.msra.mxu0 0.0
        %662 = vmatprep.subr.mxu0 0.0
        %663 = vmatpush1.xpose.msra.mxu0 0.0
        %664 = vmatprep.subr.mxu0 0.0
        %665 = vmatpush1.xpose.msra.mxu0 0.0
        %666 = vmatprep.subr.mxu0 0.0
        %667 = vmatpush1.xpose.msra.mxu0 0.0
        %668 = vmatprep.subr.mxu0 0.0
        %669 = vmatpush1.xpose.msra.mxu0 0.0
        %670 = vmatprep.subr.mxu0 0.0
        %671 = vmatpush1.xpose.msra.mxu0 0.0
        %672 = vmatprep.subr.mxu0 0.0
        %673 = vmatpush1.xpose.msra.mxu0 0.0
        %674 = vmatprep.subr.mxu0 0.0
        %675 = vmatpush1.xpose.msra.mxu0 0.0
        %676 = vmatprep.subr.mxu0 0.0
        %677 = vmatpush1.xpose.msra.mxu0 %v646
        %678 = vmatprep.subr.mxu0 0.0
        %679 = vmatpush1.xpose.msra.mxu0 %v644
        %680 = vmatprep.subr.mxu0 0.0
        %681 = vmatpush2.xpose.msra.mxu0 0.0
        %682 = vmatprep.subr.mxu0 0.0
        %683 = vmatpush2.xpose.msra.mxu0 0.0
        %684 = vmatprep.subr.mxu0 0.0
        %685 = vmatpush2.xpose.msra.mxu0 0.0
        %686 = vmatprep.subr.mxu0 0.0
        %687 = vmatpush2.xpose.msra.mxu0 0.0
        %688 = vmatprep.subr.mxu0 0.0
        %689 = vmatpush2.xpose.msra.mxu0 0.0
        %690 = vmatprep.subr.mxu0 0.0
        %691 = vmatpush2.xpose.msra.mxu0 0.0
        %692 = vmatprep.subr.mxu0 0.0
        %693 = vmatpush2.xpose.msra.mxu0 0.0
        %694 = vmatprep.subr.mxu0 0.0
        %695 = vmatpush2.xpose.msra.mxu0 0.0
        %696 = vmatprep.subr.mxu0 0.0
        %697 = vmatpush2.xpose.msra.mxu0 0.0
        %698 = vmatprep.subr.mxu0 0.0
        %699 = vmatpush2.xpose.msra.mxu0 0.0
        %700 = vmatprep.subr.mxu0 0.0
        %701 = vmatpush2.xpose.msra.mxu0 0.0
        %702 = vmatprep.subr.mxu0 0.0
        %703 = vmatpush2.xpose.msra.mxu0 0.0
        %704 = vmatprep.subr.mxu0 0.0
        %705 = vmatpush2.xpose.msra.mxu0 0.0
        %706 = vmatprep.subr.mxu0 0.0
        %707 = vmatpush2.xpose.msra.mxu0 0.0
        %708 = vmatprep.subr.mxu0 0.0
        %709 = vmatpush2.xpose.msra.mxu0 0.0
        %710 = vmatprep.subr.mxu0 0.0
        %711 = vmatpush2.xpose.msra.mxu0 0.0
        %712 = vmatprep.mubr.f32.mxu0 0.0
        %713 = vmatmul.mubr.f32.gmra.mxu0 %v640
        %v714 = vpop.f32.mrf.mxu0
        %v715 = vadd.f32 0.0, %v714
        %v716 = vpop.f32.mrf.mxu0
        %717 = vmatprep.mubr.f32.mxu0 0.0
        %718 = vmatmul.mubr.f32.gmra.mxu0 %v642
        %v719 = vpop.f32.mrf.mxu0
        %v720 = vadd.f32 0.0, %v719
        %v721 = vpop.f32.mrf.mxu0
        %722 = vdwg.mxu0
        %vm723 = vcmask 130048
        %v724 = vsel %vm723, %v626, -inf
        %725 = vmax.xlane.f32.xlu0 %v724
        %v726 = vpop.xlane.xlu0 %725
        %v727 = vsel %vm723, %v631, -inf
        %728 = vmax.xlane.f32.xlu0 %v727
        %v729 = vpop.xlane.xlu0 %728
        %v730 = vsel %vm723, %v715, -inf
        %731 = vmax.xlane.f32.xlu0 %v730
        %v732 = vpop.xlane.xlu0 %731
        %v733 = vsel %vm723, %v720, -inf
        %734 = vmax.xlane.f32.xlu0 %v733
        %v735 = vpop.xlane.xlu0 %734
        %v736 = vsub.f32 %v626, %v726
        %v737 = vsub.f32 %v631, %v729
        %v738 = vsub.f32 %v715, %v732
        %v739 = vsub.f32 %v720, %v735
        %v740 = vmul.f32 %v736, 1.442695
        %v741 = vpow.pop %v740
        %v742 = vmul.f32 %v737, 1.442695
        %v743 = vpow.pop %v742
        %v744 = vmul.f32 %v738, 1.442695
        %v745 = vpow.pop %v744
        %v746 = vmul.f32 %v739, 1.442695
        %v747 = vpow.pop %v746
        %v748 = vsel %vm723, %v741, 0.0
        %749 = vadd.xlane.f32.xlu0 %v748
        %v750 = vpop.xlane.xlu0 %749
        %v751 = vsel %vm723, %v743, 0.0
        %752 = vadd.xlane.f32.xlu0 %v751
        %v753 = vpop.xlane.xlu0 %752
        %v754 = vsel %vm723, %v745, 0.0
        %755 = vadd.xlane.f32.xlu0 %v754
        %v756 = vpop.xlane.xlu0 %755
        %v757 = vsel %vm723, %v747, 0.0
        %758 = vadd.xlane.f32.xlu0 %v757
        %v759 = vpop.xlane.xlu0 %758
        %v760 = vrcp.pop %v750
        %v761 = vrcp.pop %v753
        %v762 = vrcp.pop %v756
        %v763 = vrcp.pop %v759
        %v764 = vmul.f32 %v741, %v760
        %v765 = vmul.f32 %v743, %v761
        %v766 = vmul.f32 %v745, %v762
        %v767 = vmul.f32 %v747, %v763
        %768 = vrot.lane.b32.xlu0 %v526, 64
        %v769 = vpop.permute.xlu0 %768
        %770 = vrot.lane.b32.xlu0 %v531, 64
        %v771 = vpop.permute.xlu0 %770
        %v775 = vsel %vm723, %v764, 0
        %v778 = vsel %vm723, %v765, 0
        %780 = vmatprep.subr.mxu0 0.0
        %781 = vmatpush1.msra.mxu0 0.0
        %782 = vmatprep.subr.mxu0 0.0
        %783 = vmatpush1.msra.mxu0 0.0
        %784 = vmatprep.subr.mxu0 0.0
        %785 = vmatpush1.msra.mxu0 0.0
        %786 = vmatprep.subr.mxu0 0.0
        %787 = vmatpush1.msra.mxu0 0.0
        %788 = vmatprep.subr.mxu0 0.0
        %789 = vmatpush1.msra.mxu0 0.0
        %790 = vmatprep.subr.mxu0 0.0
        %791 = vmatpush1.msra.mxu0 0.0
        %792 = vmatprep.subr.mxu0 0.0
        %793 = vmatpush1.msra.mxu0 0.0
        %794 = vmatprep.subr.mxu0 0.0
        %795 = vmatpush1.msra.mxu0 0.0
        %796 = vmatprep.subr.mxu0 0.0
        %797 = vmatpush1.msra.mxu0 0.0
        %798 = vmatprep.subr.mxu0 0.0
        %799 = vmatpush1.msra.mxu0 0.0
        %800 = vmatprep.subr.mxu0 0.0
        %801 = vmatpush1.msra.mxu0 0.0
        %802 = vmatprep.subr.mxu0 0.0
        %803 = vmatpush1.msra.mxu0 0.0
        %804 = vmatprep.subr.mxu0 0.0
        %805 = vmatpush1.msra.mxu0 0.0
        %806 = vmatprep.subr.mxu0 0.0
        %807 = vmatpush1.msra.mxu0 0.0
        %808 = vmatprep.subr.mxu0 0.0
        %809 = vmatpush1.msra.mxu0 %v771
        %810 = vmatprep.subr.mxu0 0.0
        %811 = vmatpush1.msra.mxu0 %v769
        %812 = vmatprep.subr.mxu0 0.0
        %813 = vmatpush2.msra.mxu0 0.0
        %814 = vmatprep.subr.mxu0 0.0
        %815 = vmatpush2.msra.mxu0 0.0
        %816 = vmatprep.subr.mxu0 0.0
        %817 = vmatpush2.msra.mxu0 0.0
        %818 = vmatprep.subr.mxu0 0.0
        %819 = vmatpush2.msra.mxu0 0.0
        %820 = vmatprep.subr.mxu0 0.0
        %821 = vmatpush2.msra.mxu0 0.0
        %822 = vmatprep.subr.mxu0 0.0
        %823 = vmatpush2.msra.mxu0 0.0
        %824 = vmatprep.subr.mxu0 0.0
        %825 = vmatpush2.msra.mxu0 0.0
        %826 = vmatprep.subr.mxu0 0.0
        %827 = vmatpush2.msra.mxu0 0.0
        %828 = vmatprep.subr.mxu0 0.0
        %829 = vmatpush2.msra.mxu0 0.0
        %830 = vmatprep.subr.mxu0 0.0
        %831 = vmatpush2.msra.mxu0 0.0
        %832 = vmatprep.subr.mxu0 0.0
        %833 = vmatpush2.msra.mxu0 0.0
        %834 = vmatprep.subr.mxu0 0.0
        %835 = vmatpush2.msra.mxu0 0.0
        %836 = vmatprep.subr.mxu0 0.0
        %837 = vmatpush2.msra.mxu0 0.0
        %838 = vmatprep.subr.mxu0 0.0
        %839 = vmatpush2.msra.mxu0 0.0
        %840 = vmatprep.subr.mxu0 0.0
        %841 = vmatpush2.msra.mxu0 0.0
        %842 = vmatprep.subr.mxu0 0.0
        %843 = vmatpush2.msra.mxu0 0.0
        %844 = vmatprep.mubr.f32.mxu0 0.0
        %845 = vmatmul.mubr.f32.gmra.mxu0 %v775
        %v846 = vpop.f32.mrf.mxu0
        %v847 = vadd.f32 0.0, %v846
        %v848 = vpop.f32.mrf.mxu0
        %849 = vmatprep.mubr.f32.mxu0 0.0
        %850 = vmatmul.mubr.f32.gmra.mxu0 %v778
        %v851 = vpop.f32.mrf.mxu0
        %v852 = vadd.f32 0.0, %v851
        %v853 = vpop.f32.mrf.mxu0
        %854 = vdwg.mxu0
        %855 = vrot.lane.b32.xlu0 %v536, 64
        %v856 = vpop.permute.xlu0 %855
        %857 = vrot.lane.b32.xlu0 %v541, 64
        %v858 = vpop.permute.xlu0 %857
        %v862 = vsel %vm723, %v766, 0
        %v865 = vsel %vm723, %v767, 0
        %867 = vmatprep.subr.mxu0 0.0
        %868 = vmatpush1.msra.mxu0 0.0
        %869 = vmatprep.subr.mxu0 0.0
        %870 = vmatpush1.msra.mxu0 0.0
        %871 = vmatprep.subr.mxu0 0.0
        %872 = vmatpush1.msra.mxu0 0.0
        %873 = vmatprep.subr.mxu0 0.0
        %874 = vmatpush1.msra.mxu0 0.0
        %875 = vmatprep.subr.mxu0 0.0
        %876 = vmatpush1.msra.mxu0 0.0
        %877 = vmatprep.subr.mxu0 0.0
        %878 = vmatpush1.msra.mxu0 0.0
        %879 = vmatprep.subr.mxu0 0.0
        %880 = vmatpush1.msra.mxu0 0.0
        %881 = vmatprep.subr.mxu0 0.0
        %882 = vmatpush1.msra.mxu0 0.0
        %883 = vmatprep.subr.mxu0 0.0
        %884 = vmatpush1.msra.mxu0 0.0
        %885 = vmatprep.subr.mxu0 0.0
        %886 = vmatpush1.msra.mxu0 0.0
        %887 = vmatprep.subr.mxu0 0.0
        %888 = vmatpush1.msra.mxu0 0.0
        %889 = vmatprep.subr.mxu0 0.0
        %890 = vmatpush1.msra.mxu0 0.0
        %891 = vmatprep.subr.mxu0 0.0
        %892 = vmatpush1.msra.mxu0 0.0
        %893 = vmatprep.subr.mxu0 0.0
        %894 = vmatpush1.msra.mxu0 0.0
        %895 = vmatprep.subr.mxu0 0.0
        %896 = vmatpush1.msra.mxu0 %v858
        %897 = vmatprep.subr.mxu0 0.0
        %898 = vmatpush1.msra.mxu0 %v856
        %899 = vmatprep.subr.mxu0 0.0
        %900 = vmatpush2.msra.mxu0 0.0
        %901 = vmatprep.subr.mxu0 0.0
        %902 = vmatpush2.msra.mxu0 0.0
        %903 = vmatprep.subr.mxu0 0.0
        %904 = vmatpush2.msra.mxu0 0.0
        %905 = vmatprep.subr.mxu0 0.0
        %906 = vmatpush2.msra.mxu0 0.0
        %907 = vmatprep.subr.mxu0 0.0
        %908 = vmatpush2.msra.mxu0 0.0
        %909 = vmatprep.subr.mxu0 0.0
        %910 = vmatpush2.msra.mxu0 0.0
        %911 = vmatprep.subr.mxu0 0.0
        %912 = vmatpush2.msra.mxu0 0.0
        %913 = vmatprep.subr.mxu0 0.0
        %914 = vmatpush2.msra.mxu0 0.0
        %915 = vmatprep.subr.mxu0 0.0
        %916 = vmatpush2.msra.mxu0 0.0
        %917 = vmatprep.subr.mxu0 0.0
        %918 = vmatpush2.msra.mxu0 0.0
        %919 = vmatprep.subr.mxu0 0.0
        %920 = vmatpush2.msra.mxu0 0.0
        %921 = vmatprep.subr.mxu0 0.0
        %922 = vmatpush2.msra.mxu0 0.0
        %923 = vmatprep.subr.mxu0 0.0
        %924 = vmatpush2.msra.mxu0 0.0
        %925 = vmatprep.subr.mxu0 0.0
        %926 = vmatpush2.msra.mxu0 0.0
        %927 = vmatprep.subr.mxu0 0.0
        %928 = vmatpush2.msra.mxu0 0.0
        %929 = vmatprep.subr.mxu0 0.0
        %930 = vmatpush2.msra.mxu0 0.0
        %931 = vmatprep.mubr.f32.mxu0 0.0
        %932 = vmatmul.mubr.f32.gmra.mxu0 %v862
        %v933 = vpop.f32.mrf.mxu0
        %v934 = vadd.f32 0.0, %v933
        %v935 = vpop.f32.mrf.mxu0
        %936 = vmatprep.mubr.f32.mxu0 0.0
        %937 = vmatmul.mubr.f32.gmra.mxu0 %v865
        %v938 = vpop.f32.mrf.mxu0
        %v939 = vadd.f32 0.0, %v938
        %v940 = vpop.f32.mrf.mxu0
        %941 = vdwg.mxu0
        %942 = vrot.lane.b32.xlu0 %v526, 120
        %v943 = vpop.permute.xlu0 %942
        %944 = vrot.lane.b32.xlu0 %v531, 120
        %v945 = vpop.permute.xlu0 %944
        %946 = vrot.lane.b32.xlu0 %v526, 88
        %v947 = vpop.permute.xlu0 %946
        %948 = vrot.lane.b32.xlu0 %v531, 88
        %v949 = vpop.permute.xlu0 %948
        %v950 = vsel %vm550, %v943, 0
        %v952 = vsel %vm550, %v945, 0
        %v954 = vsel %vm550, %v947, 0
        %v956 = vsel %vm550, %v949, 0
        %958 = vmatprep.subr.mxu0 0.0
        %959 = vmatpush1.xpose.msra.mxu0 0.0
        %960 = vmatprep.subr.mxu0 0.0
        %961 = vmatpush1.xpose.msra.mxu0 0.0
        %962 = vmatprep.subr.mxu0 0.0
        %963 = vmatpush1.xpose.msra.mxu0 0.0
        %964 = vmatprep.subr.mxu0 0.0
        %965 = vmatpush1.xpose.msra.mxu0 0.0
        %966 = vmatprep.subr.mxu0 0.0
        %967 = vmatpush1.xpose.msra.mxu0 0.0
        %968 = vmatprep.subr.mxu0 0.0
        %969 = vmatpush1.xpose.msra.mxu0 0.0
        %970 = vmatprep.subr.mxu0 0.0
        %971 = vmatpush1.xpose.msra.mxu0 0.0
        %972 = vmatprep.subr.mxu0 0.0
        %973 = vmatpush1.xpose.msra.mxu0 0.0
        %974 = vmatprep.subr.mxu0 0.0
        %975 = vmatpush1.xpose.msra.mxu0 0.0
        %976 = vmatprep.subr.mxu0 0.0
        %977 = vmatpush1.xpose.msra.mxu0 0.0
        %978 = vmatprep.subr.mxu0 0.0
        %979 = vmatpush1.xpose.msra.mxu0 0.0
        %980 = vmatprep.subr.mxu0 0.0
        %981 = vmatpush1.xpose.msra.mxu0 0.0
        %982 = vmatprep.subr.mxu0 0.0
        %983 = vmatpush1.xpose.msra.mxu0 0.0
        %984 = vmatprep.subr.mxu0 0.0
        %985 = vmatpush1.xpose.msra.mxu0 0.0
        %986 = vmatprep.subr.mxu0 0.0
        %987 = vmatpush1.xpose.msra.mxu0 %v956
        %988 = vmatprep.subr.mxu0 0.0
        %989 = vmatpush1.xpose.msra.mxu0 %v954
        %990 = vmatprep.subr.mxu0 0.0
        %991 = vmatpush2.xpose.msra.mxu0 0.0
        %992 = vmatprep.subr.mxu0 0.0
        %993 = vmatpush2.xpose.msra.mxu0 0.0
        %994 = vmatprep.subr.mxu0 0.0
        %995 = vmatpush2.xpose.msra.mxu0 0.0
        %996 = vmatprep.subr.mxu0 0.0
        %997 = vmatpush2.xpose.msra.mxu0 0.0
        %998 = vmatprep.subr.mxu0 0.0
        %999 = vmatpush2.xpose.msra.mxu0 0.0
        %1000 = vmatprep.subr.mxu0 0.0
        %1001 = vmatpush2.xpose.msra.mxu0 0.0
        %1002 = vmatprep.subr.mxu0 0.0
        %1003 = vmatpush2.xpose.msra.mxu0 0.0
        %1004 = vmatprep.subr.mxu0 0.0
        %1005 = vmatpush2.xpose.msra.mxu0 0.0
        %1006 = vmatprep.subr.mxu0 0.0
        %1007 = vmatpush2.xpose.msra.mxu0 0.0
        %1008 = vmatprep.subr.mxu0 0.0
        %1009 = vmatpush2.xpose.msra.mxu0 0.0
        %1010 = vmatprep.subr.mxu0 0.0
        %1011 = vmatpush2.xpose.msra.mxu0 0.0
        %1012 = vmatprep.subr.mxu0 0.0
        %1013 = vmatpush2.xpose.msra.mxu0 0.0
        %1014 = vmatprep.subr.mxu0 0.0
        %1015 = vmatpush2.xpose.msra.mxu0 0.0
        %1016 = vmatprep.subr.mxu0 0.0
        %1017 = vmatpush2.xpose.msra.mxu0 0.0
        %1018 = vmatprep.subr.mxu0 0.0
        %1019 = vmatpush2.xpose.msra.mxu0 0.0
        %1020 = vmatprep.subr.mxu0 0.0
        %1021 = vmatpush2.xpose.msra.mxu0 0.0
        %1022 = vmatprep.mubr.f32.mxu0 0.0
        %1023 = vmatmul.mubr.f32.gmra.mxu0 %v950
        %v1024 = vpop.f32.mrf.mxu0
        %v1025 = vadd.f32 0.0, %v1024
        %v1026 = vpop.f32.mrf.mxu0
        %1027 = vmatprep.mubr.f32.mxu0 0.0
        %1028 = vmatmul.mubr.f32.gmra.mxu0 %v952
        %v1029 = vpop.f32.mrf.mxu0
        %v1030 = vadd.f32 0.0, %v1029
        %v1031 = vpop.f32.mrf.mxu0
        %1032 = vdwg.mxu0
        %1033 = vrot.lane.b32.xlu0 %v536, 120
        %v1034 = vpop.permute.xlu0 %1033
        %1035 = vrot.lane.b32.xlu0 %v541, 120
        %v1036 = vpop.permute.xlu0 %1035
        %1037 = vrot.lane.b32.xlu0 %v536, 88
        %v1038 = vpop.permute.xlu0 %1037
        %1039 = vrot.lane.b32.xlu0 %v541, 88
        %v1040 = vpop.permute.xlu0 %1039
        %v1041 = vsel %vm550, %v1034, 0
        %v1043 = vsel %vm550, %v1036, 0
        %v1045 = vsel %vm550, %v1038, 0
        %v1047 = vsel %vm550, %v1040, 0
        %1049 = vmatprep.subr.mxu0 0.0
        %1050 = vmatpush1.xpose.msra.mxu0 0.0
        %1051 = vmatprep.subr.mxu0 0.0
        %1052 = vmatpush1.xpose.msra.mxu0 0.0
        %1053 = vmatprep.subr.mxu0 0.0
        %1054 = vmatpush1.xpose.msra.mxu0 0.0
        %1055 = vmatprep.subr.mxu0 0.0
        %1056 = vmatpush1.xpose.msra.mxu0 0.0
        %1057 = vmatprep.subr.mxu0 0.0
        %1058 = vmatpush1.xpose.msra.mxu0 0.0
        %1059 = vmatprep.subr.mxu0 0.0
        %1060 = vmatpush1.xpose.msra.mxu0 0.0
        %1061 = vmatprep.subr.mxu0 0.0
        %1062 = vmatpush1.xpose.msra.mxu0 0.0
        %1063 = vmatprep.subr.mxu0 0.0
        %1064 = vmatpush1.xpose.msra.mxu0 0.0
        %1065 = vmatprep.subr.mxu0 0.0
        %1066 = vmatpush1.xpose.msra.mxu0 0.0
        %1067 = vmatprep.subr.mxu0 0.0
        %1068 = vmatpush1.xpose.msra.mxu0 0.0
        %1069 = vmatprep.subr.mxu0 0.0
        %1070 = vmatpush1.xpose.msra.mxu0 0.0
        %1071 = vmatprep.subr.mxu0 0.0
        %1072 = vmatpush1.xpose.msra.mxu0 0.0
        %1073 = vmatprep.subr.mxu0 0.0
        %1074 = vmatpush1.xpose.msra.mxu0 0.0
        %1075 = vmatprep.subr.mxu0 0.0
        %1076 = vmatpush1.xpose.msra.mxu0 0.0
        %1077 = vmatprep.subr.mxu0 0.0
        %1078 = vmatpush1.xpose.msra.mxu0 %v1047
        %1079 = vmatprep.subr.mxu0 0.0
        %1080 = vmatpush1.xpose.msra.mxu0 %v1045
        %1081 = vmatprep.subr.mxu0 0.0
        %1082 = vmatpush2.xpose.msra.mxu0 0.0
        %1083 = vmatprep.subr.mxu0 0.0
        %1084 = vmatpush2.xpose.msra.mxu0 0.0
        %1085 = vmatprep.subr.mxu0 0.0
        %1086 = vmatpush2.xpose.msra.mxu0 0.0
        %1087 = vmatprep.subr.mxu0 0.0
        %1088 = vmatpush2.xpose.msra.mxu0 0.0
        %1089 = vmatprep.subr.mxu0 0.0
        %1090 = vmatpush2.xpose.msra.mxu0 0.0
        %1091 = vmatprep.subr.mxu0 0.0
        %1092 = vmatpush2.xpose.msra.mxu0 0.0
        %1093 = vmatprep.subr.mxu0 0.0
        %1094 = vmatpush2.xpose.msra.mxu0 0.0
        %1095 = vmatprep.subr.mxu0 0.0
        %1096 = vmatpush2.xpose.msra.mxu0 0.0
        %1097 = vmatprep.subr.mxu0 0.0
        %1098 = vmatpush2.xpose.msra.mxu0 0.0
        %1099 = vmatprep.subr.mxu0 0.0
        %1100 = vmatpush2.xpose.msra.mxu0 0.0
        %1101 = vmatprep.subr.mxu0 0.0
        %1102 = vmatpush2.xpose.msra.mxu0 0.0
        %1103 = vmatprep.subr.mxu0 0.0
        %1104 = vmatpush2.xpose.msra.mxu0 0.0
        %1105 = vmatprep.subr.mxu0 0.0
        %1106 = vmatpush2.xpose.msra.mxu0 0.0
        %1107 = vmatprep.subr.mxu0 0.0
        %1108 = vmatpush2.xpose.msra.mxu0 0.0
        %1109 = vmatprep.subr.mxu0 0.0
        %1110 = vmatpush2.xpose.msra.mxu0 0.0
        %1111 = vmatprep.subr.mxu0 0.0
        %1112 = vmatpush2.xpose.msra.mxu0 0.0
        %1113 = vmatprep.mubr.f32.mxu0 0.0
        %1114 = vmatmul.mubr.f32.gmra.mxu0 %v1041
        %v1115 = vpop.f32.mrf.mxu0
        %v1116 = vadd.f32 0.0, %v1115
        %v1117 = vpop.f32.mrf.mxu0
        %1118 = vmatprep.mubr.f32.mxu0 0.0
        %1119 = vmatmul.mubr.f32.gmra.mxu0 %v1043
        %v1120 = vpop.f32.mrf.mxu0
        %v1121 = vadd.f32 0.0, %v1120
        %v1122 = vpop.f32.mrf.mxu0
        %1123 = vdwg.mxu0
        %v1124 = vsel %vm723, %v1025, -inf
        %1125 = vmax.xlane.f32.xlu0 %v1124
        %v1126 = vpop.xlane.xlu0 %1125
        %v1127 = vsel %vm723, %v1030, -inf
        %1128 = vmax.xlane.f32.xlu0 %v1127
        %v1129 = vpop.xlane.xlu0 %1128
        %v1130 = vsel %vm723, %v1116, -inf
        %1131 = vmax.xlane.f32.xlu0 %v1130
        %v1132 = vpop.xlane.xlu0 %1131
        %v1133 = vsel %vm723, %v1121, -inf
        %1134 = vmax.xlane.f32.xlu0 %v1133
        %v1135 = vpop.xlane.xlu0 %1134
        %v1136 = vsub.f32 %v1025, %v1126
        %v1137 = vsub.f32 %v1030, %v1129
        %v1138 = vsub.f32 %v1116, %v1132
        %v1139 = vsub.f32 %v1121, %v1135
        %v1140 = vmul.f32 %v1136, 1.442695
        %v1141 = vpow.pop %v1140
        %v1142 = vmul.f32 %v1137, 1.442695
        %v1143 = vpow.pop %v1142
        %v1144 = vmul.f32 %v1138, 1.442695
        %v1145 = vpow.pop %v1144
        %v1146 = vmul.f32 %v1139, 1.442695
        %v1147 = vpow.pop %v1146
        %v1148 = vsel %vm723, %v1141, 0.0
        %1149 = vadd.xlane.f32.xlu0 %v1148
        %v1150 = vpop.xlane.xlu0 %1149
        %v1151 = vsel %vm723, %v1143, 0.0
        %1152 = vadd.xlane.f32.xlu0 %v1151
        %v1153 = vpop.xlane.xlu0 %1152
        %v1154 = vsel %vm723, %v1145, 0.0
        %1155 = vadd.xlane.f32.xlu0 %v1154
        %v1156 = vpop.xlane.xlu0 %1155
        %v1157 = vsel %vm723, %v1147, 0.0
        %1158 = vadd.xlane.f32.xlu0 %v1157
        %v1159 = vpop.xlane.xlu0 %1158
        %v1160 = vrcp.pop %v1150
        %v1161 = vrcp.pop %v1153
        %v1162 = vrcp.pop %v1156
        %v1163 = vrcp.pop %v1159
        %v1164 = vmul.f32 %v1141, %v1160
        %v1165 = vmul.f32 %v1143, %v1161
        %v1166 = vmul.f32 %v1145, %v1162
        %v1167 = vmul.f32 %v1147, %v1163
        %1168 = vrot.lane.b32.xlu0 %v526, 56
        %v1169 = vpop.permute.xlu0 %1168
        %1170 = vrot.lane.b32.xlu0 %v531, 56
        %v1171 = vpop.permute.xlu0 %1170
        %v1175 = vsel %vm723, %v1164, 0
        %v1178 = vsel %vm723, %v1165, 0
        %1180 = vmatprep.subr.mxu0 0.0
        %1181 = vmatpush1.msra.mxu0 0.0
        %1182 = vmatprep.subr.mxu0 0.0
        %1183 = vmatpush1.msra.mxu0 0.0
        %1184 = vmatprep.subr.mxu0 0.0
        %1185 = vmatpush1.msra.mxu0 0.0
        %1186 = vmatprep.subr.mxu0 0.0
        %1187 = vmatpush1.msra.mxu0 0.0
        %1188 = vmatprep.subr.mxu0 0.0
        %1189 = vmatpush1.msra.mxu0 0.0
        %1190 = vmatprep.subr.mxu0 0.0
        %1191 = vmatpush1.msra.mxu0 0.0
        %1192 = vmatprep.subr.mxu0 0.0
        %1193 = vmatpush1.msra.mxu0 0.0
        %1194 = vmatprep.subr.mxu0 0.0
        %1195 = vmatpush1.msra.mxu0 0.0
        %1196 = vmatprep.subr.mxu0 0.0
        %1197 = vmatpush1.msra.mxu0 0.0
        %1198 = vmatprep.subr.mxu0 0.0
        %1199 = vmatpush1.msra.mxu0 0.0
        %1200 = vmatprep.subr.mxu0 0.0
        %1201 = vmatpush1.msra.mxu0 0.0
        %1202 = vmatprep.subr.mxu0 0.0
        %1203 = vmatpush1.msra.mxu0 0.0
        %1204 = vmatprep.subr.mxu0 0.0
        %1205 = vmatpush1.msra.mxu0 0.0
        %1206 = vmatprep.subr.mxu0 0.0
        %1207 = vmatpush1.msra.mxu0 0.0
        %1208 = vmatprep.subr.mxu0 0.0
        %1209 = vmatpush1.msra.mxu0 %v1171
        %1210 = vmatprep.subr.mxu0 0.0
        %1211 = vmatpush1.msra.mxu0 %v1169
        %1212 = vmatprep.subr.mxu0 0.0
        %1213 = vmatpush2.msra.mxu0 0.0
        %1214 = vmatprep.subr.mxu0 0.0
        %1215 = vmatpush2.msra.mxu0 0.0
        %1216 = vmatprep.subr.mxu0 0.0
        %1217 = vmatpush2.msra.mxu0 0.0
        %1218 = vmatprep.subr.mxu0 0.0
        %1219 = vmatpush2.msra.mxu0 0.0
        %1220 = vmatprep.subr.mxu0 0.0
        %1221 = vmatpush2.msra.mxu0 0.0
        %1222 = vmatprep.subr.mxu0 0.0
        %1223 = vmatpush2.msra.mxu0 0.0
        %1224 = vmatprep.subr.mxu0 0.0
        %1225 = vmatpush2.msra.mxu0 0.0
        %1226 = vmatprep.subr.mxu0 0.0
        %1227 = vmatpush2.msra.mxu0 0.0
        %1228 = vmatprep.subr.mxu0 0.0
        %1229 = vmatpush2.msra.mxu0 0.0
        %1230 = vmatprep.subr.mxu0 0.0
        %1231 = vmatpush2.msra.mxu0 0.0
        %1232 = vmatprep.subr.mxu0 0.0
        %1233 = vmatpush2.msra.mxu0 0.0
        %1234 = vmatprep.subr.mxu0 0.0
        %1235 = vmatpush2.msra.mxu0 0.0
        %1236 = vmatprep.subr.mxu0 0.0
        %1237 = vmatpush2.msra.mxu0 0.0
        %1238 = vmatprep.subr.mxu0 0.0
        %1239 = vmatpush2.msra.mxu0 0.0
        %1240 = vmatprep.subr.mxu0 0.0
        %1241 = vmatpush2.msra.mxu0 0.0
        %1242 = vmatprep.subr.mxu0 0.0
        %1243 = vmatpush2.msra.mxu0 0.0
        %1244 = vmatprep.mubr.f32.mxu0 0.0
        %1245 = vmatmul.mubr.f32.gmra.mxu0 %v1175
        %v1246 = vpop.f32.mrf.mxu0
        %v1247 = vadd.f32 0.0, %v1246
        %v1248 = vpop.f32.mrf.mxu0
        %1249 = vmatprep.mubr.f32.mxu0 0.0
        %1250 = vmatmul.mubr.f32.gmra.mxu0 %v1178
        %v1251 = vpop.f32.mrf.mxu0
        %v1252 = vadd.f32 0.0, %v1251
        %v1253 = vpop.f32.mrf.mxu0
        %1254 = vdwg.mxu0
        %1255 = vrot.lane.b32.xlu0 %v536, 56
        %v1256 = vpop.permute.xlu0 %1255
        %1257 = vrot.lane.b32.xlu0 %v541, 56
        %v1258 = vpop.permute.xlu0 %1257
        %v1262 = vsel %vm723, %v1166, 0
        %v1265 = vsel %vm723, %v1167, 0
        %1267 = vmatprep.subr.mxu0 0.0
        %1268 = vmatpush1.msra.mxu0 0.0
        %1269 = vmatprep.subr.mxu0 0.0
        %1270 = vmatpush1.msra.mxu0 0.0
        %1271 = vmatprep.subr.mxu0 0.0
        %1272 = vmatpush1.msra.mxu0 0.0
        %1273 = vmatprep.subr.mxu0 0.0
        %1274 = vmatpush1.msra.mxu0 0.0
        %1275 = vmatprep.subr.mxu0 0.0
        %1276 = vmatpush1.msra.mxu0 0.0
        %1277 = vmatprep.subr.mxu0 0.0
        %1278 = vmatpush1.msra.mxu0 0.0
        %1279 = vmatprep.subr.mxu0 0.0
        %1280 = vmatpush1.msra.mxu0 0.0
        %1281 = vmatprep.subr.mxu0 0.0
        %1282 = vmatpush1.msra.mxu0 0.0
        %1283 = vmatprep.subr.mxu0 0.0
        %1284 = vmatpush1.msra.mxu0 0.0
        %1285 = vmatprep.subr.mxu0 0.0
        %1286 = vmatpush1.msra.mxu0 0.0
        %1287 = vmatprep.subr.mxu0 0.0
        %1288 = vmatpush1.msra.mxu0 0.0
        %1289 = vmatprep.subr.mxu0 0.0
        %1290 = vmatpush1.msra.mxu0 0.0
        %1291 = vmatprep.subr.mxu0 0.0
        %1292 = vmatpush1.msra.mxu0 0.0
        %1293 = vmatprep.subr.mxu0 0.0
        %1294 = vmatpush1.msra.mxu0 0.0
        %1295 = vmatprep.subr.mxu0 0.0
        %1296 = vmatpush1.msra.mxu0 %v1258
        %1297 = vmatprep.subr.mxu0 0.0
        %1298 = vmatpush1.msra.mxu0 %v1256
        %1299 = vmatprep.subr.mxu0 0.0
        %1300 = vmatpush2.msra.mxu0 0.0
        %1301 = vmatprep.subr.mxu0 0.0
        %1302 = vmatpush2.msra.mxu0 0.0
        %1303 = vmatprep.subr.mxu0 0.0
        %1304 = vmatpush2.msra.mxu0 0.0
        %1305 = vmatprep.subr.mxu0 0.0
        %1306 = vmatpush2.msra.mxu0 0.0
        %1307 = vmatprep.subr.mxu0 0.0
        %1308 = vmatpush2.msra.mxu0 0.0
        %1309 = vmatprep.subr.mxu0 0.0
        %1310 = vmatpush2.msra.mxu0 0.0
        %1311 = vmatprep.subr.mxu0 0.0
        %1312 = vmatpush2.msra.mxu0 0.0
        %1313 = vmatprep.subr.mxu0 0.0
        %1314 = vmatpush2.msra.mxu0 0.0
        %1315 = vmatprep.subr.mxu0 0.0
        %1316 = vmatpush2.msra.mxu0 0.0
        %1317 = vmatprep.subr.mxu0 0.0
        %1318 = vmatpush2.msra.mxu0 0.0
        %1319 = vmatprep.subr.mxu0 0.0
        %1320 = vmatpush2.msra.mxu0 0.0
        %1321 = vmatprep.subr.mxu0 0.0
        %1322 = vmatpush2.msra.mxu0 0.0
        %1323 = vmatprep.subr.mxu0 0.0
        %1324 = vmatpush2.msra.mxu0 0.0
        %1325 = vmatprep.subr.mxu0 0.0
        %1326 = vmatpush2.msra.mxu0 0.0
        %1327 = vmatprep.subr.mxu0 0.0
        %1328 = vmatpush2.msra.mxu0 0.0
        %1329 = vmatprep.subr.mxu0 0.0
        %1330 = vmatpush2.msra.mxu0 0.0
        %1331 = vmatprep.mubr.f32.mxu0 0.0
        %1332 = vmatmul.mubr.f32.gmra.mxu0 %v1262
        %v1333 = vpop.f32.mrf.mxu0
        %v1334 = vadd.f32 0.0, %v1333
        %v1335 = vpop.f32.mrf.mxu0
        %1336 = vmatprep.mubr.f32.mxu0 0.0
        %1337 = vmatmul.mubr.f32.gmra.mxu0 %v1265
        %v1338 = vpop.f32.mrf.mxu0
        %v1339 = vadd.f32 0.0, %v1338
        %v1340 = vpop.f32.mrf.mxu0
        %1341 = vdwg.mxu0
        %1342 = vrot.lane.b32.xlu0 %v526, 112
        %v1343 = vpop.permute.xlu0 %1342
        %1344 = vrot.lane.b32.xlu0 %v531, 112
        %v1345 = vpop.permute.xlu0 %1344
        %1346 = vrot.lane.b32.xlu0 %v526, 80
        %v1347 = vpop.permute.xlu0 %1346
        %1348 = vrot.lane.b32.xlu0 %v531, 80
        %v1349 = vpop.permute.xlu0 %1348
        %v1350 = vsel %vm550, %v1343, 0
        %v1352 = vsel %vm550, %v1345, 0
        %v1354 = vsel %vm550, %v1347, 0
        %v1356 = vsel %vm550, %v1349, 0
        %1358 = vmatprep.subr.mxu0 0.0
        %1359 = vmatpush1.xpose.msra.mxu0 0.0
        %1360 = vmatprep.subr.mxu0 0.0
        %1361 = vmatpush1.xpose.msra.mxu0 0.0
        %1362 = vmatprep.subr.mxu0 0.0
        %1363 = vmatpush1.xpose.msra.mxu0 0.0
        %1364 = vmatprep.subr.mxu0 0.0
        %1365 = vmatpush1.xpose.msra.mxu0 0.0
        %1366 = vmatprep.subr.mxu0 0.0
        %1367 = vmatpush1.xpose.msra.mxu0 0.0
        %1368 = vmatprep.subr.mxu0 0.0
        %1369 = vmatpush1.xpose.msra.mxu0 0.0
        %1370 = vmatprep.subr.mxu0 0.0
        %1371 = vmatpush1.xpose.msra.mxu0 0.0
        %1372 = vmatprep.subr.mxu0 0.0
        %1373 = vmatpush1.xpose.msra.mxu0 0.0
        %1374 = vmatprep.subr.mxu0 0.0
        %1375 = vmatpush1.xpose.msra.mxu0 0.0
        %1376 = vmatprep.subr.mxu0 0.0
        %1377 = vmatpush1.xpose.msra.mxu0 0.0
        %1378 = vmatprep.subr.mxu0 0.0
        %1379 = vmatpush1.xpose.msra.mxu0 0.0
        %1380 = vmatprep.subr.mxu0 0.0
        %1381 = vmatpush1.xpose.msra.mxu0 0.0
        %1382 = vmatprep.subr.mxu0 0.0
        %1383 = vmatpush1.xpose.msra.mxu0 0.0
        %1384 = vmatprep.subr.mxu0 0.0
        %1385 = vmatpush1.xpose.msra.mxu0 0.0
        %1386 = vmatprep.subr.mxu0 0.0
        %1387 = vmatpush1.xpose.msra.mxu0 %v1356
        %1388 = vmatprep.subr.mxu0 0.0
        %1389 = vmatpush1.xpose.msra.mxu0 %v1354
        %1390 = vmatprep.subr.mxu0 0.0
        %1391 = vmatpush2.xpose.msra.mxu0 0.0
        %1392 = vmatprep.subr.mxu0 0.0
        %1393 = vmatpush2.xpose.msra.mxu0 0.0
        %1394 = vmatprep.subr.mxu0 0.0
        %1395 = vmatpush2.xpose.msra.mxu0 0.0
        %1396 = vmatprep.subr.mxu0 0.0
        %1397 = vmatpush2.xpose.msra.mxu0 0.0
        %1398 = vmatprep.subr.mxu0 0.0
        %1399 = vmatpush2.xpose.msra.mxu0 0.0
        %1400 = vmatprep.subr.mxu0 0.0
        %1401 = vmatpush2.xpose.msra.mxu0 0.0
        %1402 = vmatprep.subr.mxu0 0.0
        %1403 = vmatpush2.xpose.msra.mxu0 0.0
        %1404 = vmatprep.subr.mxu0 0.0
        %1405 = vmatpush2.xpose.msra.mxu0 0.0
        %1406 = vmatprep.subr.mxu0 0.0
        %1407 = vmatpush2.xpose.msra.mxu0 0.0
        %1408 = vmatprep.subr.mxu0 0.0
        %1409 = vmatpush2.xpose.msra.mxu0 0.0
        %1410 = vmatprep.subr.mxu0 0.0
        %1411 = vmatpush2.xpose.msra.mxu0 0.0
        %1412 = vmatprep.subr.mxu0 0.0
        %1413 = vmatpush2.xpose.msra.mxu0 0.0
        %1414 = vmatprep.subr.mxu0 0.0
        %1415 = vmatpush2.xpose.msra.mxu0 0.0
        %1416 = vmatprep.subr.mxu0 0.0
        %1417 = vmatpush2.xpose.msra.mxu0 0.0
        %1418 = vmatprep.subr.mxu0 0.0
        %1419 = vmatpush2.xpose.msra.mxu0 0.0
        %1420 = vmatprep.subr.mxu0 0.0
        %1421 = vmatpush2.xpose.msra.mxu0 0.0
        %1422 = vmatprep.mubr.f32.mxu0 0.0
        %1423 = vmatmul.mubr.f32.gmra.mxu0 %v1350
        %v1424 = vpop.f32.mrf.mxu0
        %v1425 = vadd.f32 0.0, %v1424
        %v1426 = vpop.f32.mrf.mxu0
        %1427 = vmatprep.mubr.f32.mxu0 0.0
        %1428 = vmatmul.mubr.f32.gmra.mxu0 %v1352
        %v1429 = vpop.f32.mrf.mxu0
        %v1430 = vadd.f32 0.0, %v1429
        %v1431 = vpop.f32.mrf.mxu0
        %1432 = vdwg.mxu0
        %1433 = vrot.lane.b32.xlu0 %v536, 112
        %v1434 = vpop.permute.xlu0 %1433
        %1435 = vrot.lane.b32.xlu0 %v541, 112
        %v1436 = vpop.permute.xlu0 %1435
        %1437 = vrot.lane.b32.xlu0 %v536, 80
        %v1438 = vpop.permute.xlu0 %1437
        %1439 = vrot.lane.b32.xlu0 %v541, 80
        %v1440 = vpop.permute.xlu0 %1439
        %v1441 = vsel %vm550, %v1434, 0
        %v1443 = vsel %vm550, %v1436, 0
        %v1445 = vsel %vm550, %v1438, 0
        %v1447 = vsel %vm550, %v1440, 0
        %1449 = vmatprep.subr.mxu0 0.0
        %1450 = vmatpush1.xpose.msra.mxu0 0.0
        %1451 = vmatprep.subr.mxu0 0.0
        %1452 = vmatpush1.xpose.msra.mxu0 0.0
        %1453 = vmatprep.subr.mxu0 0.0
        %1454 = vmatpush1.xpose.msra.mxu0 0.0
        %1455 = vmatprep.subr.mxu0 0.0
        %1456 = vmatpush1.xpose.msra.mxu0 0.0
        %1457 = vmatprep.subr.mxu0 0.0
        %1458 = vmatpush1.xpose.msra.mxu0 0.0
        %1459 = vmatprep.subr.mxu0 0.0
        %1460 = vmatpush1.xpose.msra.mxu0 0.0
        %1461 = vmatprep.subr.mxu0 0.0
        %1462 = vmatpush1.xpose.msra.mxu0 0.0
        %1463 = vmatprep.subr.mxu0 0.0
        %1464 = vmatpush1.xpose.msra.mxu0 0.0
        %1465 = vmatprep.subr.mxu0 0.0
        %1466 = vmatpush1.xpose.msra.mxu0 0.0
        %1467 = vmatprep.subr.mxu0 0.0
        %1468 = vmatpush1.xpose.msra.mxu0 0.0
        %1469 = vmatprep.subr.mxu0 0.0
        %1470 = vmatpush1.xpose.msra.mxu0 0.0
        %1471 = vmatprep.subr.mxu0 0.0
        %1472 = vmatpush1.xpose.msra.mxu0 0.0
        %1473 = vmatprep.subr.mxu0 0.0
        %1474 = vmatpush1.xpose.msra.mxu0 0.0
        %1475 = vmatprep.subr.mxu0 0.0
        %1476 = vmatpush1.xpose.msra.mxu0 0.0
        %1477 = vmatprep.subr.mxu0 0.0
        %1478 = vmatpush1.xpose.msra.mxu0 %v1447
        %1479 = vmatprep.subr.mxu0 0.0
        %1480 = vmatpush1.xpose.msra.mxu0 %v1445
        %1481 = vmatprep.subr.mxu0 0.0
        %1482 = vmatpush2.xpose.msra.mxu0 0.0
        %1483 = vmatprep.subr.mxu0 0.0
        %1484 = vmatpush2.xpose.msra.mxu0 0.0
        %1485 = vmatprep.subr.mxu0 0.0
        %1486 = vmatpush2.xpose.msra.mxu0 0.0
        %1487 = vmatprep.subr.mxu0 0.0
        %1488 = vmatpush2.xpose.msra.mxu0 0.0
        %1489 = vmatprep.subr.mxu0 0.0
        %1490 = vmatpush2.xpose.msra.mxu0 0.0
        %1491 = vmatprep.subr.mxu0 0.0
        %1492 = vmatpush2.xpose.msra.mxu0 0.0
        %1493 = vmatprep.subr.mxu0 0.0
        %1494 = vmatpush2.xpose.msra.mxu0 0.0
        %1495 = vmatprep.subr.mxu0 0.0
        %1496 = vmatpush2.xpose.msra.mxu0 0.0
        %1497 = vmatprep.subr.mxu0 0.0
        %1498 = vmatpush2.xpose.msra.mxu0 0.0
        %1499 = vmatprep.subr.mxu0 0.0
        %1500 = vmatpush2.xpose.msra.mxu0 0.0
        %1501 = vmatprep.subr.mxu0 0.0
        %1502 = vmatpush2.xpose.msra.mxu0 0.0
        %1503 = vmatprep.subr.mxu0 0.0
        %1504 = vmatpush2.xpose.msra.mxu0 0.0
        %1505 = vmatprep.subr.mxu0 0.0
        %1506 = vmatpush2.xpose.msra.mxu0 0.0
        %1507 = vmatprep.subr.mxu0 0.0
        %1508 = vmatpush2.xpose.msra.mxu0 0.0
        %1509 = vmatprep.subr.mxu0 0.0
        %1510 = vmatpush2.xpose.msra.mxu0 0.0
        %1511 = vmatprep.subr.mxu0 0.0
        %1512 = vmatpush2.xpose.msra.mxu0 0.0
        %1513 = vmatprep.mubr.f32.mxu0 0.0
        %1514 = vmatmul.mubr.f32.gmra.mxu0 %v1441
        %v1515 = vpop.f32.mrf.mxu0
        %v1516 = vadd.f32 0.0, %v1515
        %v1517 = vpop.f32.mrf.mxu0
        %1518 = vmatprep.mubr.f32.mxu0 0.0
        %1519 = vmatmul.mubr.f32.gmra.mxu0 %v1443
        %v1520 = vpop.f32.mrf.mxu0
        %v1521 = vadd.f32 0.0, %v1520
        %v1522 = vpop.f32.mrf.mxu0
        %1523 = vdwg.mxu0
        %v1524 = vsel %vm723, %v1425, -inf
        %1525 = vmax.xlane.f32.xlu0 %v1524
        %v1526 = vpop.xlane.xlu0 %1525
        %v1527 = vsel %vm723, %v1430, -inf
        %1528 = vmax.xlane.f32.xlu0 %v1527
        %v1529 = vpop.xlane.xlu0 %1528
        %v1530 = vsel %vm723, %v1516, -inf
        %1531 = vmax.xlane.f32.xlu0 %v1530
        %v1532 = vpop.xlane.xlu0 %1531
        %v1533 = vsel %vm723, %v1521, -inf
        %1534 = vmax.xlane.f32.xlu0 %v1533
        %v1535 = vpop.xlane.xlu0 %1534
        %v1536 = vsub.f32 %v1425, %v1526
        %v1537 = vsub.f32 %v1430, %v1529
        %v1538 = vsub.f32 %v1516, %v1532
        %v1539 = vsub.f32 %v1521, %v1535
        %v1540 = vmul.f32 %v1536, 1.442695
        %v1541 = vpow.pop %v1540
        %v1542 = vmul.f32 %v1537, 1.442695
        %v1543 = vpow.pop %v1542
        %v1544 = vmul.f32 %v1538, 1.442695
        %v1545 = vpow.pop %v1544
        %v1546 = vmul.f32 %v1539, 1.442695
        %v1547 = vpow.pop %v1546
        %v1548 = vsel %vm723, %v1541, 0.0
        %1549 = vadd.xlane.f32.xlu0 %v1548
        %v1550 = vpop.xlane.xlu0 %1549
        %v1551 = vsel %vm723, %v1543, 0.0
        %1552 = vadd.xlane.f32.xlu0 %v1551
        %v1553 = vpop.xlane.xlu0 %1552
        %v1554 = vsel %vm723, %v1545, 0.0
        %1555 = vadd.xlane.f32.xlu0 %v1554
        %v1556 = vpop.xlane.xlu0 %1555
        %v1557 = vsel %vm723, %v1547, 0.0
        %1558 = vadd.xlane.f32.xlu0 %v1557
        %v1559 = vpop.xlane.xlu0 %1558
        %v1560 = vrcp.pop %v1550
        %v1561 = vrcp.pop %v1553
        %v1562 = vrcp.pop %v1556
        %v1563 = vrcp.pop %v1559
        %v1564 = vmul.f32 %v1541, %v1560
        %v1565 = vmul.f32 %v1543, %v1561
        %v1566 = vmul.f32 %v1545, %v1562
        %v1567 = vmul.f32 %v1547, %v1563
        %1568 = vrot.lane.b32.xlu0 %v526, 48
        %v1569 = vpop.permute.xlu0 %1568
        %1570 = vrot.lane.b32.xlu0 %v531, 48
        %v1571 = vpop.permute.xlu0 %1570
        %v1575 = vsel %vm723, %v1564, 0
        %v1578 = vsel %vm723, %v1565, 0
        %1580 = vmatprep.subr.mxu0 0.0
        %1581 = vmatpush1.msra.mxu0 0.0
        %1582 = vmatprep.subr.mxu0 0.0
        %1583 = vmatpush1.msra.mxu0 0.0
        %1584 = vmatprep.subr.mxu0 0.0
        %1585 = vmatpush1.msra.mxu0 0.0
        %1586 = vmatprep.subr.mxu0 0.0
        %1587 = vmatpush1.msra.mxu0 0.0
        %1588 = vmatprep.subr.mxu0 0.0
        %1589 = vmatpush1.msra.mxu0 0.0
        %1590 = vmatprep.subr.mxu0 0.0
        %1591 = vmatpush1.msra.mxu0 0.0
        %1592 = vmatprep.subr.mxu0 0.0
        %1593 = vmatpush1.msra.mxu0 0.0
        %1594 = vmatprep.subr.mxu0 0.0
        %1595 = vmatpush1.msra.mxu0 0.0
        %1596 = vmatprep.subr.mxu0 0.0
        %1597 = vmatpush1.msra.mxu0 0.0
        %1598 = vmatprep.subr.mxu0 0.0
        %1599 = vmatpush1.msra.mxu0 0.0
        %1600 = vmatprep.subr.mxu0 0.0
        %1601 = vmatpush1.msra.mxu0 0.0
        %1602 = vmatprep.subr.mxu0 0.0
        %1603 = vmatpush1.msra.mxu0 0.0
        %1604 = vmatprep.subr.mxu0 0.0
        %1605 = vmatpush1.msra.mxu0 0.0
        %1606 = vmatprep.subr.mxu0 0.0
        %1607 = vmatpush1.msra.mxu0 0.0
        %1608 = vmatprep.subr.mxu0 0.0
        %1609 = vmatpush1.msra.mxu0 %v1571
        %1610 = vmatprep.subr.mxu0 0.0
        %1611 = vmatpush1.msra.mxu0 %v1569
        %1612 = vmatprep.subr.mxu0 0.0
        %1613 = vmatpush2.msra.mxu0 0.0
        %1614 = vmatprep.subr.mxu0 0.0
        %1615 = vmatpush2.msra.mxu0 0.0
        %1616 = vmatprep.subr.mxu0 0.0
        %1617 = vmatpush2.msra.mxu0 0.0
        %1618 = vmatprep.subr.mxu0 0.0
        %1619 = vmatpush2.msra.mxu0 0.0
        %1620 = vmatprep.subr.mxu0 0.0
        %1621 = vmatpush2.msra.mxu0 0.0
        %1622 = vmatprep.subr.mxu0 0.0
        %1623 = vmatpush2.msra.mxu0 0.0
        %1624 = vmatprep.subr.mxu0 0.0
        %1625 = vmatpush2.msra.mxu0 0.0
        %1626 = vmatprep.subr.mxu0 0.0
        %1627 = vmatpush2.msra.mxu0 0.0
        %1628 = vmatprep.subr.mxu0 0.0
        %1629 = vmatpush2.msra.mxu0 0.0
        %1630 = vmatprep.subr.mxu0 0.0
        %1631 = vmatpush2.msra.mxu0 0.0
        %1632 = vmatprep.subr.mxu0 0.0
        %1633 = vmatpush2.msra.mxu0 0.0
        %1634 = vmatprep.subr.mxu0 0.0
        %1635 = vmatpush2.msra.mxu0 0.0
        %1636 = vmatprep.subr.mxu0 0.0
        %1637 = vmatpush2.msra.mxu0 0.0
        %1638 = vmatprep.subr.mxu0 0.0
        %1639 = vmatpush2.msra.mxu0 0.0
        %1640 = vmatprep.subr.mxu0 0.0
        %1641 = vmatpush2.msra.mxu0 0.0
        %1642 = vmatprep.subr.mxu0 0.0
        %1643 = vmatpush2.msra.mxu0 0.0
        %1644 = vmatprep.mubr.f32.mxu0 0.0
        %1645 = vmatmul.mubr.f32.gmra.mxu0 %v1575
        %v1646 = vpop.f32.mrf.mxu0
        %v1647 = vadd.f32 0.0, %v1646
        %v1648 = vpop.f32.mrf.mxu0
        %1649 = vmatprep.mubr.f32.mxu0 0.0
        %1650 = vmatmul.mubr.f32.gmra.mxu0 %v1578
        %v1651 = vpop.f32.mrf.mxu0
        %v1652 = vadd.f32 0.0, %v1651
        %v1653 = vpop.f32.mrf.mxu0
        %1654 = vdwg.mxu0
        %1655 = vrot.lane.b32.xlu0 %v536, 48
        %v1656 = vpop.permute.xlu0 %1655
        %1657 = vrot.lane.b32.xlu0 %v541, 48
        %v1658 = vpop.permute.xlu0 %1657
        %v1662 = vsel %vm723, %v1566, 0
        %v1665 = vsel %vm723, %v1567, 0
        %1667 = vmatprep.subr.mxu0 0.0
        %1668 = vmatpush1.msra.mxu0 0.0
        %1669 = vmatprep.subr.mxu0 0.0
        %1670 = vmatpush1.msra.mxu0 0.0
        %1671 = vmatprep.subr.mxu0 0.0
        %1672 = vmatpush1.msra.mxu0 0.0
        %1673 = vmatprep.subr.mxu0 0.0
        %1674 = vmatpush1.msra.mxu0 0.0
        %1675 = vmatprep.subr.mxu0 0.0
        %1676 = vmatpush1.msra.mxu0 0.0
        %1677 = vmatprep.subr.mxu0 0.0
        %1678 = vmatpush1.msra.mxu0 0.0
        %1679 = vmatprep.subr.mxu0 0.0
        %1680 = vmatpush1.msra.mxu0 0.0
        %1681 = vmatprep.subr.mxu0 0.0
        %1682 = vmatpush1.msra.mxu0 0.0
        %1683 = vmatprep.subr.mxu0 0.0
        %1684 = vmatpush1.msra.mxu0 0.0
        %1685 = vmatprep.subr.mxu0 0.0
        %1686 = vmatpush1.msra.mxu0 0.0
        %1687 = vmatprep.subr.mxu0 0.0
        %1688 = vmatpush1.msra.mxu0 0.0
        %1689 = vmatprep.subr.mxu0 0.0
        %1690 = vmatpush1.msra.mxu0 0.0
        %1691 = vmatprep.subr.mxu0 0.0
        %1692 = vmatpush1.msra.mxu0 0.0
        %1693 = vmatprep.subr.mxu0 0.0
        %1694 = vmatpush1.msra.mxu0 0.0
        %1695 = vmatprep.subr.mxu0 0.0
        %1696 = vmatpush1.msra.mxu0 %v1658
        %1697 = vmatprep.subr.mxu0 0.0
        %1698 = vmatpush1.msra.mxu0 %v1656
        %1699 = vmatprep.subr.mxu0 0.0
        %1700 = vmatpush2.msra.mxu0 0.0
        %1701 = vmatprep.subr.mxu0 0.0
        %1702 = vmatpush2.msra.mxu0 0.0
        %1703 = vmatprep.subr.mxu0 0.0
        %1704 = vmatpush2.msra.mxu0 0.0
        %1705 = vmatprep.subr.mxu0 0.0
        %1706 = vmatpush2.msra.mxu0 0.0
        %1707 = vmatprep.subr.mxu0 0.0
        %1708 = vmatpush2.msra.mxu0 0.0
        %1709 = vmatprep.subr.mxu0 0.0
        %1710 = vmatpush2.msra.mxu0 0.0
        %1711 = vmatprep.subr.mxu0 0.0
        %1712 = vmatpush2.msra.mxu0 0.0
        %1713 = vmatprep.subr.mxu0 0.0
        %1714 = vmatpush2.msra.mxu0 0.0
        %1715 = vmatprep.subr.mxu0 0.0
        %1716 = vmatpush2.msra.mxu0 0.0
        %1717 = vmatprep.subr.mxu0 0.0
        %1718 = vmatpush2.msra.mxu0 0.0
        %1719 = vmatprep.subr.mxu0 0.0
        %1720 = vmatpush2.msra.mxu0 0.0
        %1721 = vmatprep.subr.mxu0 0.0
        %1722 = vmatpush2.msra.mxu0 0.0
        %1723 = vmatprep.subr.mxu0 0.0
        %1724 = vmatpush2.msra.mxu0 0.0
        %1725 = vmatprep.subr.mxu0 0.0
        %1726 = vmatpush2.msra.mxu0 0.0
        %1727 = vmatprep.subr.mxu0 0.0
        %1728 = vmatpush2.msra.mxu0 0.0
        %1729 = vmatprep.subr.mxu0 0.0
        %1730 = vmatpush2.msra.mxu0 0.0
        %1731 = vmatprep.mubr.f32.mxu0 0.0
        %1732 = vmatmul.mubr.f32.gmra.mxu0 %v1662
        %v1733 = vpop.f32.mrf.mxu0
        %v1734 = vadd.f32 0.0, %v1733
        %v1735 = vpop.f32.mrf.mxu0
        %1736 = vmatprep.mubr.f32.mxu0 0.0
        %1737 = vmatmul.mubr.f32.gmra.mxu0 %v1665
        %v1738 = vpop.f32.mrf.mxu0
        %v1739 = vadd.f32 0.0, %v1738
        %v1740 = vpop.f32.mrf.mxu0
        %1741 = vdwg.mxu0
        %1742 = vrot.lane.b32.xlu0 %v526, 104
        %v1743 = vpop.permute.xlu0 %1742
        %1744 = vrot.lane.b32.xlu0 %v531, 104
        %v1745 = vpop.permute.xlu0 %1744
        %1746 = vrot.lane.b32.xlu0 %v526, 72
        %v1747 = vpop.permute.xlu0 %1746
        %1748 = vrot.lane.b32.xlu0 %v531, 72
        %v1749 = vpop.permute.xlu0 %1748
        %v1750 = vsel %vm550, %v1743, 0
        %v1752 = vsel %vm550, %v1745, 0
        %v1754 = vsel %vm550, %v1747, 0
        %v1756 = vsel %vm550, %v1749, 0
        %1758 = vmatprep.subr.mxu0 0.0
        %1759 = vmatpush1.xpose.msra.mxu0 0.0
        %1760 = vmatprep.subr.mxu0 0.0
        %1761 = vmatpush1.xpose.msra.mxu0 0.0
        %1762 = vmatprep.subr.mxu0 0.0
        %1763 = vmatpush1.xpose.msra.mxu0 0.0
        %1764 = vmatprep.subr.mxu0 0.0
        %1765 = vmatpush1.xpose.msra.mxu0 0.0
        %1766 = vmatprep.subr.mxu0 0.0
        %1767 = vmatpush1.xpose.msra.mxu0 0.0
        %1768 = vmatprep.subr.mxu0 0.0
        %1769 = vmatpush1.xpose.msra.mxu0 0.0
        %1770 = vmatprep.subr.mxu0 0.0
        %1771 = vmatpush1.xpose.msra.mxu0 0.0
        %1772 = vmatprep.subr.mxu0 0.0
        %1773 = vmatpush1.xpose.msra.mxu0 0.0
        %1774 = vmatprep.subr.mxu0 0.0
        %1775 = vmatpush1.xpose.msra.mxu0 0.0
        %1776 = vmatprep.subr.mxu0 0.0
        %1777 = vmatpush1.xpose.msra.mxu0 0.0
        %1778 = vmatprep.subr.mxu0 0.0
        %1779 = vmatpush1.xpose.msra.mxu0 0.0
        %1780 = vmatprep.subr.mxu0 0.0
        %1781 = vmatpush1.xpose.msra.mxu0 0.0
        %1782 = vmatprep.subr.mxu0 0.0
        %1783 = vmatpush1.xpose.msra.mxu0 0.0
        %1784 = vmatprep.subr.mxu0 0.0
        %1785 = vmatpush1.xpose.msra.mxu0 0.0
        %1786 = vmatprep.subr.mxu0 0.0
        %1787 = vmatpush1.xpose.msra.mxu0 %v1756
        %1788 = vmatprep.subr.mxu0 0.0
        %1789 = vmatpush1.xpose.msra.mxu0 %v1754
        %1790 = vmatprep.subr.mxu0 0.0
        %1791 = vmatpush2.xpose.msra.mxu0 0.0
        %1792 = vmatprep.subr.mxu0 0.0
        %1793 = vmatpush2.xpose.msra.mxu0 0.0
        %1794 = vmatprep.subr.mxu0 0.0
        %1795 = vmatpush2.xpose.msra.mxu0 0.0
        %1796 = vmatprep.subr.mxu0 0.0
        %1797 = vmatpush2.xpose.msra.mxu0 0.0
        %1798 = vmatprep.subr.mxu0 0.0
        %1799 = vmatpush2.xpose.msra.mxu0 0.0
        %1800 = vmatprep.subr.mxu0 0.0
        %1801 = vmatpush2.xpose.msra.mxu0 0.0
        %1802 = vmatprep.subr.mxu0 0.0
        %1803 = vmatpush2.xpose.msra.mxu0 0.0
        %1804 = vmatprep.subr.mxu0 0.0
        %1805 = vmatpush2.xpose.msra.mxu0 0.0
        %1806 = vmatprep.subr.mxu0 0.0
        %1807 = vmatpush2.xpose.msra.mxu0 0.0
        %1808 = vmatprep.subr.mxu0 0.0
        %1809 = vmatpush2.xpose.msra.mxu0 0.0
        %1810 = vmatprep.subr.mxu0 0.0
        %1811 = vmatpush2.xpose.msra.mxu0 0.0
        %1812 = vmatprep.subr.mxu0 0.0
        %1813 = vmatpush2.xpose.msra.mxu0 0.0
        %1814 = vmatprep.subr.mxu0 0.0
        %1815 = vmatpush2.xpose.msra.mxu0 0.0
        %1816 = vmatprep.subr.mxu0 0.0
        %1817 = vmatpush2.xpose.msra.mxu0 0.0
        %1818 = vmatprep.subr.mxu0 0.0
        %1819 = vmatpush2.xpose.msra.mxu0 0.0
        %1820 = vmatprep.subr.mxu0 0.0
        %1821 = vmatpush2.xpose.msra.mxu0 0.0
        %1822 = vmatprep.mubr.f32.mxu0 0.0
        %1823 = vmatmul.mubr.f32.gmra.mxu0 %v1750
        %v1824 = vpop.f32.mrf.mxu0
        %v1825 = vadd.f32 0.0, %v1824
        %v1826 = vpop.f32.mrf.mxu0
        %1827 = vmatprep.mubr.f32.mxu0 0.0
        %1828 = vmatmul.mubr.f32.gmra.mxu0 %v1752
        %v1829 = vpop.f32.mrf.mxu0
        %v1830 = vadd.f32 0.0, %v1829
        %v1831 = vpop.f32.mrf.mxu0
        %1832 = vdwg.mxu0
        %1833 = vrot.lane.b32.xlu0 %v536, 104
        %v1834 = vpop.permute.xlu0 %1833
        %1835 = vrot.lane.b32.xlu0 %v541, 104
        %v1836 = vpop.permute.xlu0 %1835
        %1837 = vrot.lane.b32.xlu0 %v536, 72
        %v1838 = vpop.permute.xlu0 %1837
        %1839 = vrot.lane.b32.xlu0 %v541, 72
        %v1840 = vpop.permute.xlu0 %1839
        %v1841 = vsel %vm550, %v1834, 0
        %v1843 = vsel %vm550, %v1836, 0
        %v1845 = vsel %vm550, %v1838, 0
        %v1847 = vsel %vm550, %v1840, 0
        %1849 = vmatprep.subr.mxu0 0.0
        %1850 = vmatpush1.xpose.msra.mxu0 0.0
        %1851 = vmatprep.subr.mxu0 0.0
        %1852 = vmatpush1.xpose.msra.mxu0 0.0
        %1853 = vmatprep.subr.mxu0 0.0
        %1854 = vmatpush1.xpose.msra.mxu0 0.0
        %1855 = vmatprep.subr.mxu0 0.0
        %1856 = vmatpush1.xpose.msra.mxu0 0.0
        %1857 = vmatprep.subr.mxu0 0.0
        %1858 = vmatpush1.xpose.msra.mxu0 0.0
        %1859 = vmatprep.subr.mxu0 0.0
        %1860 = vmatpush1.xpose.msra.mxu0 0.0
        %1861 = vmatprep.subr.mxu0 0.0
        %1862 = vmatpush1.xpose.msra.mxu0 0.0
        %1863 = vmatprep.subr.mxu0 0.0
        %1864 = vmatpush1.xpose.msra.mxu0 0.0
        %1865 = vmatprep.subr.mxu0 0.0
        %1866 = vmatpush1.xpose.msra.mxu0 0.0
        %1867 = vmatprep.subr.mxu0 0.0
        %1868 = vmatpush1.xpose.msra.mxu0 0.0
        %1869 = vmatprep.subr.mxu0 0.0
        %1870 = vmatpush1.xpose.msra.mxu0 0.0
        %1871 = vmatprep.subr.mxu0 0.0
        %1872 = vmatpush1.xpose.msra.mxu0 0.0
        %1873 = vmatprep.subr.mxu0 0.0
        %1874 = vmatpush1.xpose.msra.mxu0 0.0
        %1875 = vmatprep.subr.mxu0 0.0
        %1876 = vmatpush1.xpose.msra.mxu0 0.0
        %1877 = vmatprep.subr.mxu0 0.0
        %1878 = vmatpush1.xpose.msra.mxu0 %v1847
        %1879 = vmatprep.subr.mxu0 0.0
        %1880 = vmatpush1.xpose.msra.mxu0 %v1845
        %1881 = vmatprep.subr.mxu0 0.0
        %1882 = vmatpush2.xpose.msra.mxu0 0.0
        %1883 = vmatprep.subr.mxu0 0.0
        %1884 = vmatpush2.xpose.msra.mxu0 0.0
        %1885 = vmatprep.subr.mxu0 0.0
        %1886 = vmatpush2.xpose.msra.mxu0 0.0
        %1887 = vmatprep.subr.mxu0 0.0
        %1888 = vmatpush2.xpose.msra.mxu0 0.0
        %1889 = vmatprep.subr.mxu0 0.0
        %1890 = vmatpush2.xpose.msra.mxu0 0.0
        %1891 = vmatprep.subr.mxu0 0.0
        %1892 = vmatpush2.xpose.msra.mxu0 0.0
        %1893 = vmatprep.subr.mxu0 0.0
        %1894 = vmatpush2.xpose.msra.mxu0 0.0
        %1895 = vmatprep.subr.mxu0 0.0
        %1896 = vmatpush2.xpose.msra.mxu0 0.0
        %1897 = vmatprep.subr.mxu0 0.0
        %1898 = vmatpush2.xpose.msra.mxu0 0.0
        %1899 = vmatprep.subr.mxu0 0.0
        %1900 = vmatpush2.xpose.msra.mxu0 0.0
        %1901 = vmatprep.subr.mxu0 0.0
        %1902 = vmatpush2.xpose.msra.mxu0 0.0
        %1903 = vmatprep.subr.mxu0 0.0
        %1904 = vmatpush2.xpose.msra.mxu0 0.0
        %1905 = vmatprep.subr.mxu0 0.0
        %1906 = vmatpush2.xpose.msra.mxu0 0.0
        %1907 = vmatprep.subr.mxu0 0.0
        %1908 = vmatpush2.xpose.msra.mxu0 0.0
        %1909 = vmatprep.subr.mxu0 0.0
        %1910 = vmatpush2.xpose.msra.mxu0 0.0
        %1911 = vmatprep.subr.mxu0 0.0
        %1912 = vmatpush2.xpose.msra.mxu0 0.0
        %1913 = vmatprep.mubr.f32.mxu0 0.0
        %1914 = vmatmul.mubr.f32.gmra.mxu0 %v1841
        %v1915 = vpop.f32.mrf.mxu0
        %v1916 = vadd.f32 0.0, %v1915
        %v1917 = vpop.f32.mrf.mxu0
        %1918 = vmatprep.mubr.f32.mxu0 0.0
        %1919 = vmatmul.mubr.f32.gmra.mxu0 %v1843
        %v1920 = vpop.f32.mrf.mxu0
        %v1921 = vadd.f32 0.0, %v1920
        %v1922 = vpop.f32.mrf.mxu0
        %1923 = vdwg.mxu0
        %v1924 = vsel %vm723, %v1825, -inf
        %1925 = vmax.xlane.f32.xlu0 %v1924
        %v1926 = vpop.xlane.xlu0 %1925
        %v1927 = vsel %vm723, %v1830, -inf
        %1928 = vmax.xlane.f32.xlu0 %v1927
        %v1929 = vpop.xlane.xlu0 %1928
        %v1930 = vsel %vm723, %v1916, -inf
        %1931 = vmax.xlane.f32.xlu0 %v1930
        %v1932 = vpop.xlane.xlu0 %1931
        %v1933 = vsel %vm723, %v1921, -inf
        %1934 = vmax.xlane.f32.xlu0 %v1933
        %v1935 = vpop.xlane.xlu0 %1934
        %v1936 = vsub.f32 %v1825, %v1926
        %v1937 = vsub.f32 %v1830, %v1929
        %v1938 = vsub.f32 %v1916, %v1932
        %v1939 = vsub.f32 %v1921, %v1935
        %v1940 = vmul.f32 %v1936, 1.442695
        %v1941 = vpow.pop %v1940
        %v1942 = vmul.f32 %v1937, 1.442695
        %v1943 = vpow.pop %v1942
        %v1944 = vmul.f32 %v1938, 1.442695
        %v1945 = vpow.pop %v1944
        %v1946 = vmul.f32 %v1939, 1.442695
        %v1947 = vpow.pop %v1946
        %v1948 = vsel %vm723, %v1941, 0.0
        %1949 = vadd.xlane.f32.xlu0 %v1948
        %v1950 = vpop.xlane.xlu0 %1949
        %v1951 = vsel %vm723, %v1943, 0.0
        %1952 = vadd.xlane.f32.xlu0 %v1951
        %v1953 = vpop.xlane.xlu0 %1952
        %v1954 = vsel %vm723, %v1945, 0.0
        %1955 = vadd.xlane.f32.xlu0 %v1954
        %v1956 = vpop.xlane.xlu0 %1955
        %v1957 = vsel %vm723, %v1947, 0.0
        %1958 = vadd.xlane.f32.xlu0 %v1957
        %v1959 = vpop.xlane.xlu0 %1958
        %v1960 = vrcp.pop %v1950
        %v1961 = vrcp.pop %v1953
        %v1962 = vrcp.pop %v1956
        %v1963 = vrcp.pop %v1959
        %v1964 = vmul.f32 %v1941, %v1960
        %v1965 = vmul.f32 %v1943, %v1961
        %v1966 = vmul.f32 %v1945, %v1962
        %v1967 = vmul.f32 %v1947, %v1963
        %1968 = vrot.lane.b32.xlu0 %v526, 40
        %v1969 = vpop.permute.xlu0 %1968
        %1970 = vrot.lane.b32.xlu0 %v531, 40
        %v1971 = vpop.permute.xlu0 %1970
        %v1975 = vsel %vm723, %v1964, 0
        %v1978 = vsel %vm723, %v1965, 0
        %1980 = vmatprep.subr.mxu0 0.0
        %1981 = vmatpush1.msra.mxu0 0.0
        %1982 = vmatprep.subr.mxu0 0.0
        %1983 = vmatpush1.msra.mxu0 0.0
        %1984 = vmatprep.subr.mxu0 0.0
        %1985 = vmatpush1.msra.mxu0 0.0
        %1986 = vmatprep.subr.mxu0 0.0
        %1987 = vmatpush1.msra.mxu0 0.0
        %1988 = vmatprep.subr.mxu0 0.0
        %1989 = vmatpush1.msra.mxu0 0.0
        %1990 = vmatprep.subr.mxu0 0.0
        %1991 = vmatpush1.msra.mxu0 0.0
        %1992 = vmatprep.subr.mxu0 0.0
        %1993 = vmatpush1.msra.mxu0 0.0
        %1994 = vmatprep.subr.mxu0 0.0
        %1995 = vmatpush1.msra.mxu0 0.0
        %1996 = vmatprep.subr.mxu0 0.0
        %1997 = vmatpush1.msra.mxu0 0.0
        %1998 = vmatprep.subr.mxu0 0.0
        %1999 = vmatpush1.msra.mxu0 0.0
        %2000 = vmatprep.subr.mxu0 0.0
        %2001 = vmatpush1.msra.mxu0 0.0
        %2002 = vmatprep.subr.mxu0 0.0
        %2003 = vmatpush1.msra.mxu0 0.0
        %2004 = vmatprep.subr.mxu0 0.0
        %2005 = vmatpush1.msra.mxu0 0.0
        %2006 = vmatprep.subr.mxu0 0.0
        %2007 = vmatpush1.msra.mxu0 0.0
        %2008 = vmatprep.subr.mxu0 0.0
        %2009 = vmatpush1.msra.mxu0 %v1971
        %2010 = vmatprep.subr.mxu0 0.0
        %2011 = vmatpush1.msra.mxu0 %v1969
        %2012 = vmatprep.subr.mxu0 0.0
        %2013 = vmatpush2.msra.mxu0 0.0
        %2014 = vmatprep.subr.mxu0 0.0
        %2015 = vmatpush2.msra.mxu0 0.0
        %2016 = vmatprep.subr.mxu0 0.0
        %2017 = vmatpush2.msra.mxu0 0.0
        %2018 = vmatprep.subr.mxu0 0.0
        %2019 = vmatpush2.msra.mxu0 0.0
        %2020 = vmatprep.subr.mxu0 0.0
        %2021 = vmatpush2.msra.mxu0 0.0
        %2022 = vmatprep.subr.mxu0 0.0
        %2023 = vmatpush2.msra.mxu0 0.0
        %2024 = vmatprep.subr.mxu0 0.0
        %2025 = vmatpush2.msra.mxu0 0.0
        %2026 = vmatprep.subr.mxu0 0.0
        %2027 = vmatpush2.msra.mxu0 0.0
        %2028 = vmatprep.subr.mxu0 0.0
        %2029 = vmatpush2.msra.mxu0 0.0
        %2030 = vmatprep.subr.mxu0 0.0
        %2031 = vmatpush2.msra.mxu0 0.0
        %2032 = vmatprep.subr.mxu0 0.0
        %2033 = vmatpush2.msra.mxu0 0.0
        %2034 = vmatprep.subr.mxu0 0.0
        %2035 = vmatpush2.msra.mxu0 0.0
        %2036 = vmatprep.subr.mxu0 0.0
        %2037 = vmatpush2.msra.mxu0 0.0
        %2038 = vmatprep.subr.mxu0 0.0
        %2039 = vmatpush2.msra.mxu0 0.0
        %2040 = vmatprep.subr.mxu0 0.0
        %2041 = vmatpush2.msra.mxu0 0.0
        %2042 = vmatprep.subr.mxu0 0.0
        %2043 = vmatpush2.msra.mxu0 0.0
        %2044 = vmatprep.mubr.f32.mxu0 0.0
        %2045 = vmatmul.mubr.f32.gmra.mxu0 %v1975
        %v2046 = vpop.f32.mrf.mxu0
        %v2047 = vadd.f32 0.0, %v2046
        %v2048 = vpop.f32.mrf.mxu0
        %2049 = vmatprep.mubr.f32.mxu0 0.0
        %2050 = vmatmul.mubr.f32.gmra.mxu0 %v1978
        %v2051 = vpop.f32.mrf.mxu0
        %v2052 = vadd.f32 0.0, %v2051
        %v2053 = vpop.f32.mrf.mxu0
        %2054 = vdwg.mxu0
        %2055 = vrot.lane.b32.xlu0 %v536, 40
        %v2056 = vpop.permute.xlu0 %2055
        %2057 = vrot.lane.b32.xlu0 %v541, 40
        %v2058 = vpop.permute.xlu0 %2057
        %v2062 = vsel %vm723, %v1966, 0
        %v2065 = vsel %vm723, %v1967, 0
        %2067 = vmatprep.subr.mxu0 0.0
        %2068 = vmatpush1.msra.mxu0 0.0
        %2069 = vmatprep.subr.mxu0 0.0
        %2070 = vmatpush1.msra.mxu0 0.0
        %2071 = vmatprep.subr.mxu0 0.0
        %2072 = vmatpush1.msra.mxu0 0.0
        %2073 = vmatprep.subr.mxu0 0.0
        %2074 = vmatpush1.msra.mxu0 0.0
        %2075 = vmatprep.subr.mxu0 0.0
        %2076 = vmatpush1.msra.mxu0 0.0
        %2077 = vmatprep.subr.mxu0 0.0
        %2078 = vmatpush1.msra.mxu0 0.0
        %2079 = vmatprep.subr.mxu0 0.0
        %2080 = vmatpush1.msra.mxu0 0.0
        %2081 = vmatprep.subr.mxu0 0.0
        %2082 = vmatpush1.msra.mxu0 0.0
        %2083 = vmatprep.subr.mxu0 0.0
        %2084 = vmatpush1.msra.mxu0 0.0
        %2085 = vmatprep.subr.mxu0 0.0
        %2086 = vmatpush1.msra.mxu0 0.0
        %2087 = vmatprep.subr.mxu0 0.0
        %2088 = vmatpush1.msra.mxu0 0.0
        %2089 = vmatprep.subr.mxu0 0.0
        %2090 = vmatpush1.msra.mxu0 0.0
        %2091 = vmatprep.subr.mxu0 0.0
        %2092 = vmatpush1.msra.mxu0 0.0
        %2093 = vmatprep.subr.mxu0 0.0
        %2094 = vmatpush1.msra.mxu0 0.0
        %2095 = vmatprep.subr.mxu0 0.0
        %2096 = vmatpush1.msra.mxu0 %v2058
        %2097 = vmatprep.subr.mxu0 0.0
        %2098 = vmatpush1.msra.mxu0 %v2056
        %2099 = vmatprep.subr.mxu0 0.0
        %2100 = vmatpush2.msra.mxu0 0.0
        %2101 = vmatprep.subr.mxu0 0.0
        %2102 = vmatpush2.msra.mxu0 0.0
        %2103 = vmatprep.subr.mxu0 0.0
        %2104 = vmatpush2.msra.mxu0 0.0
        %2105 = vmatprep.subr.mxu0 0.0
        %2106 = vmatpush2.msra.mxu0 0.0
        %2107 = vmatprep.subr.mxu0 0.0
        %2108 = vmatpush2.msra.mxu0 0.0
        %2109 = vmatprep.subr.mxu0 0.0
        %2110 = vmatpush2.msra.mxu0 0.0
        %2111 = vmatprep.subr.mxu0 0.0
        %2112 = vmatpush2.msra.mxu0 0.0
        %2113 = vmatprep.subr.mxu0 0.0
        %2114 = vmatpush2.msra.mxu0 0.0
        %2115 = vmatprep.subr.mxu0 0.0
        %2116 = vmatpush2.msra.mxu0 0.0
        %2117 = vmatprep.subr.mxu0 0.0
        %2118 = vmatpush2.msra.mxu0 0.0
        %2119 = vmatprep.subr.mxu0 0.0
        %2120 = vmatpush2.msra.mxu0 0.0
        %2121 = vmatprep.subr.mxu0 0.0
        %2122 = vmatpush2.msra.mxu0 0.0
        %2123 = vmatprep.subr.mxu0 0.0
        %2124 = vmatpush2.msra.mxu0 0.0
        %2125 = vmatprep.subr.mxu0 0.0
        %2126 = vmatpush2.msra.mxu0 0.0
        %2127 = vmatprep.subr.mxu0 0.0
        %2128 = vmatpush2.msra.mxu0 0.0
        %2129 = vmatprep.subr.mxu0 0.0
        %2130 = vmatpush2.msra.mxu0 0.0
        %2131 = vmatprep.mubr.f32.mxu0 0.0
        %2132 = vmatmul.mubr.f32.gmra.mxu0 %v2062
        %v2133 = vpop.f32.mrf.mxu0
        %v2134 = vadd.f32 0.0, %v2133
        %v2135 = vpop.f32.mrf.mxu0
        %2136 = vmatprep.mubr.f32.mxu0 0.0
        %2137 = vmatmul.mubr.f32.gmra.mxu0 %v2065
        %v2138 = vpop.f32.mrf.mxu0
        %v2139 = vadd.f32 0.0, %v2138
        %v2140 = vpop.f32.mrf.mxu0
        %2141 = vdwg.mxu0
        %2146 = vrot.lane.b32.xlu0 %v1247, 8
        %v2147 = vpop.permute.xlu0 %2146
        %2148 = vrot.lane.b32.xlu0 %v1252, 8
        %v2149 = vpop.permute.xlu0 %2148
        %2150 = vrot.lane.b32.xlu0 %v1334, 8
        %v2151 = vpop.permute.xlu0 %2150
        %2152 = vrot.lane.b32.xlu0 %v1339, 8
        %v2153 = vpop.permute.xlu0 %2152
        %2162 = vrot.lane.b32.xlu0 %v1647, 16
        %v2163 = vpop.permute.xlu0 %2162
        %2164 = vrot.lane.b32.xlu0 %v1652, 16
        %v2165 = vpop.permute.xlu0 %2164
        %2166 = vrot.lane.b32.xlu0 %v1734, 16
        %v2167 = vpop.permute.xlu0 %2166
        %2168 = vrot.lane.b32.xlu0 %v1739, 16
        %v2169 = vpop.permute.xlu0 %2168
        %2178 = vrot.lane.b32.xlu0 %v2047, 24
        %v2179 = vpop.permute.xlu0 %2178
        %2180 = vrot.lane.b32.xlu0 %v2052, 24
        %v2181 = vpop.permute.xlu0 %2180
        %2182 = vrot.lane.b32.xlu0 %v2134, 24
        %v2183 = vpop.permute.xlu0 %2182
        %2184 = vrot.lane.b32.xlu0 %v2139, 24
        %v2185 = vpop.permute.xlu0 %2184
        %v2190 = vsel %vm550, %v847, %v2147
        %v2191 = vsel %vm550, %v852, %v2149
        %v2192 = vsel %vm550, %v934, %v2151
        %v2193 = vsel %vm550, %v939, %v2153
        %v2194 = vsel %vm723, %v2190, %v2163
        %v2195 = vsel %vm723, %v2191, %v2165
        %v2196 = vsel %vm723, %v2192, %v2167
        %v2197 = vsel %vm723, %v2193, %v2169
        %vm2198 = vcmask 195584
        %v2199 = vsel %vm2198, %v2194, %v2179
        %v2200 = vsel %vm2198, %v2195, %v2181
        %v2201 = vsel %vm2198, %v2196, %v2183
        %v2202 = vsel %vm2198, %v2197, %v2185
        %v2203 = vld [vmem:[#allocation6] sm:$0xff]
        %v2204 = vld [vmem:[#allocation6 + $0x8] sm:$0xff]
        %v2205 = vld [vmem:[#allocation6 + $0x10] sm:$0xff]
        %v2206 = vld [vmem:[#allocation6 + $0x18] sm:$0xff]
        %v2207 = vld [vmem:[#allocation9 + $0x2] sm:$0x1]
        %v2208 = vlaneseq
        %v2209 = vshrl.u32 %v2208, 7
        %v2210 = vsub.s32 0, %v2209
        %v2211 = vrot.slane %v2207, %v2210
        %v2213 = vsel %vm446, %v2199, 0
        %v2216 = vsel %vm446, %v2200, 0
        %v2219 = vsel %vm446, %v2201, 0
        %v2222 = vsel %vm446, %v2202, 0
        %2224 = vmatprep.subr.mxu0 0.0
        %2225 = vmatpush1.msra.mxu0 0.0
        %2226 = vmatprep.subr.mxu0 0.0
        %2227 = vmatpush1.msra.mxu0 0.0
        %2228 = vmatprep.subr.mxu0 0.0
        %2229 = vmatpush1.msra.mxu0 0.0
        %2230 = vmatprep.subr.mxu0 0.0
        %2231 = vmatpush1.msra.mxu0 0.0
        %2232 = vmatprep.subr.mxu0 0.0
        %2233 = vmatpush1.msra.mxu0 0.0
        %2234 = vmatprep.subr.mxu0 0.0
        %2235 = vmatpush1.msra.mxu0 0.0
        %2236 = vmatprep.subr.mxu0 0.0
        %2237 = vmatpush1.msra.mxu0 0.0
        %2238 = vmatprep.subr.mxu0 0.0
        %2239 = vmatpush1.msra.mxu0 0.0
        %2240 = vmatprep.subr.mxu0 0.0
        %2241 = vmatpush1.msra.mxu0 0.0
        %2242 = vmatprep.subr.mxu0 0.0
        %2243 = vmatpush1.msra.mxu0 0.0
        %2244 = vmatprep.subr.mxu0 0.0
        %2245 = vmatpush1.msra.mxu0 0.0
        %2246 = vmatprep.subr.mxu0 0.0
        %2247 = vmatpush1.msra.mxu0 0.0
        %2248 = vmatprep.subr.mxu0 0.0
        %2249 = vmatpush1.msra.mxu0 %v2206
        %2250 = vmatprep.subr.mxu0 0.0
        %2251 = vmatpush1.msra.mxu0 %v2205
        %2252 = vmatprep.subr.mxu0 0.0
        %2253 = vmatpush1.msra.mxu0 %v2204
        %2254 = vmatprep.subr.mxu0 0.0
        %2255 = vmatpush1.msra.mxu0 %v2203
        %2256 = vmatprep.subr.mxu0 0.0
        %2257 = vmatpush2.msra.mxu0 0.0
        %2258 = vmatprep.subr.mxu0 0.0
        %2259 = vmatpush2.msra.mxu0 0.0
        %2260 = vmatprep.subr.mxu0 0.0
        %2261 = vmatpush2.msra.mxu0 0.0
        %2262 = vmatprep.subr.mxu0 0.0
        %2263 = vmatpush2.msra.mxu0 0.0
        %2264 = vmatprep.subr.mxu0 0.0
        %2265 = vmatpush2.msra.mxu0 0.0
        %2266 = vmatprep.subr.mxu0 0.0
        %2267 = vmatpush2.msra.mxu0 0.0
        %2268 = vmatprep.subr.mxu0 0.0
        %2269 = vmatpush2.msra.mxu0 0.0
        %2270 = vmatprep.subr.mxu0 0.0
        %2271 = vmatpush2.msra.mxu0 0.0
        %2272 = vmatprep.subr.mxu0 0.0
        %2273 = vmatpush2.msra.mxu0 0.0
        %2274 = vmatprep.subr.mxu0 0.0
        %2275 = vmatpush2.msra.mxu0 0.0
        %2276 = vmatprep.subr.mxu0 0.0
        %2277 = vmatpush2.msra.mxu0 0.0
        %2278 = vmatprep.subr.mxu0 0.0
        %2279 = vmatpush2.msra.mxu0 0.0
        %2280 = vmatprep.subr.mxu0 0.0
        %2281 = vmatpush2.msra.mxu0 0.0
        %2282 = vmatprep.subr.mxu0 0.0
        %2283 = vmatpush2.msra.mxu0 0.0
        %2284 = vmatprep.subr.mxu0 0.0
        %2285 = vmatpush2.msra.mxu0 0.0
        %2286 = vmatprep.subr.mxu0 0.0
        %2287 = vmatpush2.msra.mxu0 0.0
        %2288 = vmatprep.mubr.f32.mxu0 0.0
        %2289 = vmatmul.mubr.f32.gmra.mxu0 %v2213
        %v2290 = vpop.f32.mrf.mxu0
        %v2291 = vadd.f32 %v2211, %v2290
        %v2292 = vpop.f32.mrf.mxu0
        %2293 = vmatprep.mubr.f32.mxu0 0.0
        %2294 = vmatmul.mubr.f32.gmra.mxu0 %v2216
        %v2295 = vpop.f32.mrf.mxu0
        %v2296 = vadd.f32 %v2211, %v2295
        %v2297 = vpop.f32.mrf.mxu0
        %2298 = vmatprep.mubr.f32.mxu0 0.0
        %2299 = vmatmul.mubr.f32.gmra.mxu0 %v2219
        %v2300 = vpop.f32.mrf.mxu0
        %v2301 = vadd.f32 %v2211, %v2300
        %v2302 = vpop.f32.mrf.mxu0
        %2303 = vmatprep.mubr.f32.mxu0 0.0
        %2304 = vmatmul.mubr.f32.gmra.mxu0 %v2222
        %v2305 = vpop.f32.mrf.mxu0
        %v2306 = vadd.f32 %v2211, %v2305
        %v2307 = vpop.f32.mrf.mxu0
        %2308 = vdwg.mxu0
        %v2309 = vadd.f32 %v433, %v2291
        %v2310 = vadd.f32 %v434, %v2296
        %v2311 = vadd.f32 %v435, %v2301
        %v2312 = vadd.f32 %v436, %v2306
        %v2313 = vld [vmem:[#allocation9 + $0x3] sm:$0x1]
        %v2314 = vld [vmem:[#allocation9 + $0x4] sm:$0x1]
        %v2315 = vsel %vm446, %v2309, 0.0
        %2316 = vadd.xlane.f32.xlu0 %v2315
        %v2317 = vpop.xlane.xlu0 %2316
        %v2318 = vsel %vm446, %v2310, 0.0
        %2319 = vadd.xlane.f32.xlu0 %v2318
        %v2320 = vpop.xlane.xlu0 %2319
        %v2321 = vsel %vm446, %v2311, 0.0
        %2322 = vadd.xlane.f32.xlu0 %v2321
        %v2323 = vpop.xlane.xlu0 %2322
        %v2324 = vsel %vm446, %v2312, 0.0
        %2325 = vadd.xlane.f32.xlu0 %v2324
        %v2326 = vpop.xlane.xlu0 %2325
        %v2327 = vrcp.pop 32.0
        %v2328 = vmul.f32 %v2317, %v2327
        %v2329 = vmul.f32 %v2320, %v2327
        %v2330 = vmul.f32 %v2323, %v2327
        %v2331 = vmul.f32 %v2326, %v2327
        %v2332 = vsub.f32 %v2309, %v2328
        %v2333 = vsub.f32 %v2310, %v2329
        %v2334 = vsub.f32 %v2311, %v2330
        %v2335 = vsub.f32 %v2312, %v2331
        %v2336 = vmul.f32 %v2332, %v2332
        %v2337 = vmul.f32 %v2333, %v2333
        %v2338 = vmul.f32 %v2334, %v2334
        %v2339 = vmul.f32 %v2335, %v2335
        %v2340 = vsel %vm446, %v2336, 0.0
        %2341 = vadd.xlane.f32.xlu0 %v2340
        %v2342 = vpop.xlane.xlu0 %2341
        %v2343 = vsel %vm446, %v2337, 0.0
        %2344 = vadd.xlane.f32.xlu0 %v2343
        %v2345 = vpop.xlane.xlu0 %2344
        %v2346 = vsel %vm446, %v2338, 0.0
        %2347 = vadd.xlane.f32.xlu0 %v2346
        %v2348 = vpop.xlane.xlu0 %2347
        %v2349 = vsel %vm446, %v2339, 0.0
        %2350 = vadd.xlane.f32.xlu0 %v2349
        %v2351 = vpop.xlane.xlu0 %2350
        %v2352 = vmul.f32 %v2342, %v2327
        %v2353 = vmul.f32 %v2345, %v2327
        %v2354 = vmul.f32 %v2348, %v2327
        %v2355 = vmul.f32 %v2351, %v2327
        %v2356 = vadd.f32 %v2352, 1e-05
        %v2357 = vadd.f32 %v2353, 1e-05
        %v2358 = vadd.f32 %v2354, 1e-05
        %v2359 = vadd.f32 %v2355, 1e-05
        %v2360 = vrsqrt.pop %v2356
        %v2361 = vrsqrt.pop %v2357
        %v2362 = vrsqrt.pop %v2358
        %v2363 = vrsqrt.pop %v2359
        %v2364 = vmul.f32 %v2332, %v2360
        %v2365 = vmul.f32 %v2333, %v2361
        %v2366 = vmul.f32 %v2334, %v2362
        %v2367 = vmul.f32 %v2335, %v2363
        %v2368 = vlaneseq
        %v2369 = vshrl.u32 %v2368, 7
        %v2370 = vsub.s32 0, %v2369
        %v2371 = vrot.slane %v2313, %v2370
        %v2372 = vmul.f32 %v2364, %v2371
        %v2373 = vmul.f32 %v2365, %v2371
        %v2374 = vmul.f32 %v2366, %v2371
        %v2375 = vmul.f32 %v2367, %v2371
        %v2376 = vlaneseq
        %v2377 = vshrl.u32 %v2376, 7
        %v2378 = vsub.s32 0, %v2377
        %v2379 = vrot.slane %v2314, %v2378
        %v2380 = vadd.f32 %v2372, %v2379
        %v2381 = vadd.f32 %v2373, %v2379
        %v2382 = vadd.f32 %v2374, %v2379
        %v2383 = vadd.f32 %v2375, %v2379
        %v2384 = vld [vmem:[#allocation7] sm:$0xff]
        %v2385 = vld [vmem:[#allocation7 + $0x8] sm:$0xff]
        %v2386 = vld [vmem:[#allocation7 + $0x10] sm:$0xff]
        %v2387 = vld [vmem:[#allocation7 + $0x18] sm:$0xff]
        %v2388 = vld [vmem:[#allocation9 + $0x1] sm:$0x1]
        %v2389 = vlaneseq
        %v2390 = vshrl.u32 %v2389, 7
        %v2391 = vsub.s32 0, %v2390
        %v2392 = vrot.slane %v2388, %v2391
        %v2394 = vsel %vm446, %v2380, 0
        %v2397 = vsel %vm446, %v2381, 0
        %v2400 = vsel %vm446, %v2382, 0
        %v2403 = vsel %vm446, %v2383, 0
        %2405 = vmatprep.subr.mxu0 0.0
        %2406 = vmatpush1.msra.mxu0 0.0
        %2407 = vmatprep.subr.mxu0 0.0
        %2408 = vmatpush1.msra.mxu0 0.0
        %2409 = vmatprep.subr.mxu0 0.0
        %2410 = vmatpush1.msra.mxu0 0.0
        %2411 = vmatprep.subr.mxu0 0.0
        %2412 = vmatpush1.msra.mxu0 0.0
        %2413 = vmatprep.subr.mxu0 0.0
        %2414 = vmatpush1.msra.mxu0 0.0
        %2415 = vmatprep.subr.mxu0 0.0
        %2416 = vmatpush1.msra.mxu0 0.0
        %2417 = vmatprep.subr.mxu0 0.0
        %2418 = vmatpush1.msra.mxu0 0.0
        %2419 = vmatprep.subr.mxu0 0.0
        %2420 = vmatpush1.msra.mxu0 0.0
        %2421 = vmatprep.subr.mxu0 0.0
        %2422 = vmatpush1.msra.mxu0 0.0
        %2423 = vmatprep.subr.mxu0 0.0
        %2424 = vmatpush1.msra.mxu0 0.0
        %2425 = vmatprep.subr.mxu0 0.0
        %2426 = vmatpush1.msra.mxu0 0.0
        %2427 = vmatprep.subr.mxu0 0.0
        %2428 = vmatpush1.msra.mxu0 0.0
        %2429 = vmatprep.subr.mxu0 0.0
        %2430 = vmatpush1.msra.mxu0 %v2387
        %2431 = vmatprep.subr.mxu0 0.0
        %2432 = vmatpush1.msra.mxu0 %v2386
        %2433 = vmatprep.subr.mxu0 0.0
        %2434 = vmatpush1.msra.mxu0 %v2385
        %2435 = vmatprep.subr.mxu0 0.0
        %2436 = vmatpush1.msra.mxu0 %v2384
        %2437 = vmatprep.subr.mxu0 0.0
        %2438 = vmatpush2.msra.mxu0 0.0
        %2439 = vmatprep.subr.mxu0 0.0
        %2440 = vmatpush2.msra.mxu0 0.0
        %2441 = vmatprep.subr.mxu0 0.0
        %2442 = vmatpush2.msra.mxu0 0.0
        %2443 = vmatprep.subr.mxu0 0.0
        %2444 = vmatpush2.msra.mxu0 0.0
        %2445 = vmatprep.subr.mxu0 0.0
        %2446 = vmatpush2.msra.mxu0 0.0
        %2447 = vmatprep.subr.mxu0 0.0
        %2448 = vmatpush2.msra.mxu0 0.0
        %2449 = vmatprep.subr.mxu0 0.0
        %2450 = vmatpush2.msra.mxu0 0.0
        %2451 = vmatprep.subr.mxu0 0.0
        %2452 = vmatpush2.msra.mxu0 0.0
        %2453 = vmatprep.subr.mxu0 0.0
        %2454 = vmatpush2.msra.mxu0 0.0
        %2455 = vmatprep.subr.mxu0 0.0
        %2456 = vmatpush2.msra.mxu0 0.0
        %2457 = vmatprep.subr.mxu0 0.0
        %2458 = vmatpush2.msra.mxu0 0.0
        %2459 = vmatprep.subr.mxu0 0.0
        %2460 = vmatpush2.msra.mxu0 0.0
        %2461 = vmatprep.subr.mxu0 0.0
        %2462 = vmatpush2.msra.mxu0 0.0
        %2463 = vmatprep.subr.mxu0 0.0
        %2464 = vmatpush2.msra.mxu0 0.0
        %2465 = vmatprep.subr.mxu0 0.0
        %2466 = vmatpush2.msra.mxu0 0.0
        %2467 = vmatprep.subr.mxu0 0.0
        %2468 = vmatpush2.msra.mxu0 0.0
        %2469 = vmatprep.mubr.f32.mxu0 0.0
        %2470 = vmatmul.mubr.f32.gmra.mxu0 %v2394
        %v2471 = vpop.f32.mrf.mxu0
        %v2472 = vadd.f32 %v2392, %v2471
        %v2473 = vpop.f32.mrf.mxu0
        %2474 = vmatprep.mubr.f32.mxu0 0.0
        %2475 = vmatmul.mubr.f32.gmra.mxu0 %v2397
        %v2476 = vpop.f32.mrf.mxu0
        %v2477 = vadd.f32 %v2392, %v2476
        %v2478 = vpop.f32.mrf.mxu0
        %2479 = vmatprep.mubr.f32.mxu0 0.0
        %2480 = vmatmul.mubr.f32.gmra.mxu0 %v2400
        %v2481 = vpop.f32.mrf.mxu0
        %v2482 = vadd.f32 %v2392, %v2481
        %v2483 = vpop.f32.mrf.mxu0
        %2484 = vmatprep.mubr.f32.mxu0 0.0
        %2485 = vmatmul.mubr.f32.gmra.mxu0 %v2403
        %v2486 = vpop.f32.mrf.mxu0
        %v2487 = vadd.f32 %v2392, %v2486
        %v2488 = vpop.f32.mrf.mxu0
        %2489 = vdwg.mxu0
        %v2490 = vmax.f32 %v2472, 0.0
        %v2491 = vmax.f32 %v2477, 0.0
        %v2492 = vmax.f32 %v2482, 0.0
        %v2493 = vmax.f32 %v2487, 0.0
        %v2494 = vld [vmem:[%s6] sm:$0xff]
        %v2495 = vld [vmem:[%s6 + $0x8] sm:$0xff]
        %v2496 = vld [vmem:[%s6 + $0x10] sm:$0xff]
        %v2497 = vld [vmem:[%s6 + $0x18] sm:$0xff]
        %v2498 = vld [vmem:[%s6 + $0x20] sm:$0xff]
        %v2499 = vld [vmem:[%s6 + $0x28] sm:$0xff]
        %v2500 = vld [vmem:[%s6 + $0x30] sm:$0xff]
        %v2501 = vld [vmem:[%s6 + $0x38] sm:$0xff]
        %v2502 = vld [vmem:[#allocation9 + $0x5] sm:$0x1]
        %v2503 = vlaneseq
        %v2504 = vshrl.u32 %v2503, 7
        %v2505 = vsub.s32 0, %v2504
        %v2506 = vrot.slane %v2502, %v2505
        %vm2507 = vcmask 523264
        %v2509 = vsel %vm2507, %v2490, 0
        %v2512 = vsel %vm2507, %v2491, 0
        %v2515 = vsel %vm2507, %v2492, 0
        %v2518 = vsel %vm2507, %v2493, 0
        %2520 = vmatprep.subr.mxu0 0.0
        %2521 = vmatpush1.msra.mxu0 0.0
        %2522 = vmatprep.subr.mxu0 0.0
        %2523 = vmatpush1.msra.mxu0 0.0
        %2524 = vmatprep.subr.mxu0 0.0
        %2525 = vmatpush1.msra.mxu0 0.0
        %2526 = vmatprep.subr.mxu0 0.0
        %2527 = vmatpush1.msra.mxu0 0.0
        %2528 = vmatprep.subr.mxu0 0.0
        %2529 = vmatpush1.msra.mxu0 0.0
        %2530 = vmatprep.subr.mxu0 0.0
        %2531 = vmatpush1.msra.mxu0 0.0
        %2532 = vmatprep.subr.mxu0 0.0
        %2533 = vmatpush1.msra.mxu0 0.0
        %2534 = vmatprep.subr.mxu0 0.0
        %2535 = vmatpush1.msra.mxu0 0.0
        %2536 = vmatprep.subr.mxu0 0.0
        %2537 = vmatpush1.msra.mxu0 %v2501
        %2538 = vmatprep.subr.mxu0 0.0
        %2539 = vmatpush1.msra.mxu0 %v2500
        %2540 = vmatprep.subr.mxu0 0.0
        %2541 = vmatpush1.msra.mxu0 %v2499
        %2542 = vmatprep.subr.mxu0 0.0
        %2543 = vmatpush1.msra.mxu0 %v2498
        %2544 = vmatprep.subr.mxu0 0.0
        %2545 = vmatpush1.msra.mxu0 %v2497
        %2546 = vmatprep.subr.mxu0 0.0
        %2547 = vmatpush1.msra.mxu0 %v2496
        %2548 = vmatprep.subr.mxu0 0.0
        %2549 = vmatpush1.msra.mxu0 %v2495
        %2550 = vmatprep.subr.mxu0 0.0
        %2551 = vmatpush1.msra.mxu0 %v2494
        %2552 = vmatprep.subr.mxu0 0.0
        %2553 = vmatpush2.msra.mxu0 0.0
        %2554 = vmatprep.subr.mxu0 0.0
        %2555 = vmatpush2.msra.mxu0 0.0
        %2556 = vmatprep.subr.mxu0 0.0
        %2557 = vmatpush2.msra.mxu0 0.0
        %2558 = vmatprep.subr.mxu0 0.0
        %2559 = vmatpush2.msra.mxu0 0.0
        %2560 = vmatprep.subr.mxu0 0.0
        %2561 = vmatpush2.msra.mxu0 0.0
        %2562 = vmatprep.subr.mxu0 0.0
        %2563 = vmatpush2.msra.mxu0 0.0
        %2564 = vmatprep.subr.mxu0 0.0
        %2565 = vmatpush2.msra.mxu0 0.0
        %2566 = vmatprep.subr.mxu0 0.0
        %2567 = vmatpush2.msra.mxu0 0.0
        %2568 = vmatprep.subr.mxu0 0.0
        %2569 = vmatpush2.msra.mxu0 0.0
        %2570 = vmatprep.subr.mxu0 0.0
        %2571 = vmatpush2.msra.mxu0 0.0
        %2572 = vmatprep.subr.mxu0 0.0
        %2573 = vmatpush2.msra.mxu0 0.0
        %2574 = vmatprep.subr.mxu0 0.0
        %2575 = vmatpush2.msra.mxu0 0.0
        %2576 = vmatprep.subr.mxu0 0.0
        %2577 = vmatpush2.msra.mxu0 0.0
        %2578 = vmatprep.subr.mxu0 0.0
        %2579 = vmatpush2.msra.mxu0 0.0
        %2580 = vmatprep.subr.mxu0 0.0
        %2581 = vmatpush2.msra.mxu0 0.0
        %2582 = vmatprep.subr.mxu0 0.0
        %2583 = vmatpush2.msra.mxu0 0.0
        %2584 = vmatprep.mubr.f32.mxu0 0.0
        %2585 = vmatmul.mubr.f32.gmra.mxu0 %v2509
        %v2586 = vpop.f32.mrf.mxu0
        %v2587 = vadd.f32 %v2506, %v2586
        %v2588 = vpop.f32.mrf.mxu0
        %2589 = vmatprep.mubr.f32.mxu0 0.0
        %2590 = vmatmul.mubr.f32.gmra.mxu0 %v2512
        %v2591 = vpop.f32.mrf.mxu0
        %v2592 = vadd.f32 %v2506, %v2591
        %v2593 = vpop.f32.mrf.mxu0
        %2594 = vmatprep.mubr.f32.mxu0 0.0
        %2595 = vmatmul.mubr.f32.gmra.mxu0 %v2515
        %v2596 = vpop.f32.mrf.mxu0
        %v2597 = vadd.f32 %v2506, %v2596
        %v2598 = vpop.f32.mrf.mxu0
        %2599 = vmatprep.mubr.f32.mxu0 0.0
        %2600 = vmatmul.mubr.f32.gmra.mxu0 %v2518
        %v2601 = vpop.f32.mrf.mxu0
        %v2602 = vadd.f32 %v2506, %v2601
        %v2603 = vpop.f32.mrf.mxu0
        %2604 = vdwg.mxu0
        %v2605 = vadd.f32 %v2380, %v2587
        %v2606 = vadd.f32 %v2381, %v2592
        %v2607 = vadd.f32 %v2382, %v2597
        %v2608 = vadd.f32 %v2383, %v2602
        %v2609 = vld [vmem:[#allocation9 + $0x6] sm:$0x1]
        %v2610 = vld [vmem:[#allocation9 + $0x7] sm:$0x1]
        %v2611 = vsel %vm446, %v2605, 0.0
        %2612 = vadd.xlane.f32.xlu0 %v2611
        %v2613 = vpop.xlane.xlu0 %2612
        %v2614 = vsel %vm446, %v2606, 0.0
        %2615 = vadd.xlane.f32.xlu0 %v2614
        %v2616 = vpop.xlane.xlu0 %2615
        %v2617 = vsel %vm446, %v2607, 0.0
        %2618 = vadd.xlane.f32.xlu0 %v2617
        %v2619 = vpop.xlane.xlu0 %2618
        %v2620 = vsel %vm446, %v2608, 0.0
        %2621 = vadd.xlane.f32.xlu0 %v2620
        %v2622 = vpop.xlane.xlu0 %2621
        %v2623 = vmul.f32 %v2613, %v2327
        %v2624 = vmul.f32 %v2616, %v2327
        %v2625 = vmul.f32 %v2619, %v2327
        %v2626 = vmul.f32 %v2622, %v2327
        %v2627 = vsub.f32 %v2605, %v2623
        %v2628 = vsub.f32 %v2606, %v2624
        %v2629 = vsub.f32 %v2607, %v2625
        %v2630 = vsub.f32 %v2608, %v2626
        %v2631 = vmul.f32 %v2627, %v2627
        %v2632 = vmul.f32 %v2628, %v2628
        %v2633 = vmul.f32 %v2629, %v2629
        %v2634 = vmul.f32 %v2630, %v2630
        %v2635 = vsel %vm446, %v2631, 0.0
        %2636 = vadd.xlane.f32.xlu0 %v2635
        %v2637 = vpop.xlane.xlu0 %2636
        %v2638 = vsel %vm446, %v2632, 0.0
        %2639 = vadd.xlane.f32.xlu0 %v2638
        %v2640 = vpop.xlane.xlu0 %2639
        %v2641 = vsel %vm446, %v2633, 0.0
        %2642 = vadd.xlane.f32.xlu0 %v2641
        %v2643 = vpop.xlane.xlu0 %2642
        %v2644 = vsel %vm446, %v2634, 0.0
        %2645 = vadd.xlane.f32.xlu0 %v2644
        %v2646 = vpop.xlane.xlu0 %2645
        %v2647 = vmul.f32 %v2637, %v2327
        %v2648 = vmul.f32 %v2640, %v2327
        %v2649 = vmul.f32 %v2643, %v2327
        %v2650 = vmul.f32 %v2646, %v2327
        %v2651 = vadd.f32 %v2647, 1e-05
        %v2652 = vadd.f32 %v2648, 1e-05
        %v2653 = vadd.f32 %v2649, 1e-05
        %v2654 = vadd.f32 %v2650, 1e-05
        %v2655 = vrsqrt.pop %v2651
        %v2656 = vrsqrt.pop %v2652
        %v2657 = vrsqrt.pop %v2653
        %v2658 = vrsqrt.pop %v2654
        %v2659 = vmul.f32 %v2627, %v2655
        %v2660 = vmul.f32 %v2628, %v2656
        %v2661 = vmul.f32 %v2629, %v2657
        %v2662 = vmul.f32 %v2630, %v2658
        %v2663 = vlaneseq
        %v2664 = vshrl.u32 %v2663, 7
        %v2665 = vsub.s32 0, %v2664
        %v2666 = vrot.slane %v2609, %v2665
        %v2667 = vmul.f32 %v2659, %v2666
        %v2668 = vmul.f32 %v2660, %v2666
        %v2669 = vmul.f32 %v2661, %v2666
        %v2670 = vmul.f32 %v2662, %v2666
        %v2671 = vlaneseq
        %v2672 = vshrl.u32 %v2671, 7
        %v2673 = vsub.s32 0, %v2672
        %v2674 = vrot.slane %v2610, %v2673
        %v2675 = vadd.f32 %v2667, %v2674
        %v2676 = vadd.f32 %v2668, %v2674
        %v2677 = vadd.f32 %v2669, %v2674
        %v2678 = vadd.f32 %v2670, %v2674
        %s2679 = scalar_lea.vmem [#allocation4], 32
        %v2680 = vld [vmem:[%s2679] sm:$0xff]
        %v2681 = vld [vmem:[%s2679 + $0x8] sm:$0xff]
        %v2682 = vld [vmem:[%s2679 + $0x10] sm:$0xff]
        %v2683 = vld [vmem:[%s2679 + $0x18] sm:$0xff]
        %s2684 = scalar_lea.vmem [#allocation9], 8
        %v2685 = vld [vmem:[%s2684] sm:$0x1]
        %v2686 = vlaneseq
        %v2687 = vshrl.u32 %v2686, 7
        %v2688 = vsub.s32 0, %v2687
        %v2689 = vrot.slane %v2685, %v2688
        %v2691 = vsel %vm446, %v2675, 0
        %v2694 = vsel %vm446, %v2676, 0
        %v2697 = vsel %vm446, %v2677, 0
        %v2700 = vsel %vm446, %v2678, 0
        %2702 = vmatprep.subr.mxu0 0.0
        %2703 = vmatpush1.msra.mxu0 0.0
        %2704 = vmatprep.subr.mxu0 0.0
        %2705 = vmatpush1.msra.mxu0 0.0
        %2706 = vmatprep.subr.mxu0 0.0
        %2707 = vmatpush1.msra.mxu0 0.0
        %2708 = vmatprep.subr.mxu0 0.0
        %2709 = vmatpush1.msra.mxu0 0.0
        %2710 = vmatprep.subr.mxu0 0.0
        %2711 = vmatpush1.msra.mxu0 0.0
        %2712 = vmatprep.subr.mxu0 0.0
        %2713 = vmatpush1.msra.mxu0 0.0
        %2714 = vmatprep.subr.mxu0 0.0
        %2715 = vmatpush1.msra.mxu0 0.0
        %2716 = vmatprep.subr.mxu0 0.0
        %2717 = vmatpush1.msra.mxu0 0.0
        %2718 = vmatprep.subr.mxu0 0.0
        %2719 = vmatpush1.msra.mxu0 0.0
        %2720 = vmatprep.subr.mxu0 0.0
        %2721 = vmatpush1.msra.mxu0 0.0
        %2722 = vmatprep.subr.mxu0 0.0
        %2723 = vmatpush1.msra.mxu0 0.0
        %2724 = vmatprep.subr.mxu0 0.0
        %2725 = vmatpush1.msra.mxu0 0.0
        %2726 = vmatprep.subr.mxu0 0.0
        %2727 = vmatpush1.msra.mxu0 %v2683
        %2728 = vmatprep.subr.mxu0 0.0
        %2729 = vmatpush1.msra.mxu0 %v2682
        %2730 = vmatprep.subr.mxu0 0.0
        %2731 = vmatpush1.msra.mxu0 %v2681
        %2732 = vmatprep.subr.mxu0 0.0
        %2733 = vmatpush1.msra.mxu0 %v2680
        %2734 = vmatprep.subr.mxu0 0.0
        %2735 = vmatpush2.msra.mxu0 0.0
        %2736 = vmatprep.subr.mxu0 0.0
        %2737 = vmatpush2.msra.mxu0 0.0
        %2738 = vmatprep.subr.mxu0 0.0
        %2739 = vmatpush2.msra.mxu0 0.0
        %2740 = vmatprep.subr.mxu0 0.0
        %2741 = vmatpush2.msra.mxu0 0.0
        %2742 = vmatprep.subr.mxu0 0.0
        %2743 = vmatpush2.msra.mxu0 0.0
        %2744 = vmatprep.subr.mxu0 0.0
        %2745 = vmatpush2.msra.mxu0 0.0
        %2746 = vmatprep.subr.mxu0 0.0
        %2747 = vmatpush2.msra.mxu0 0.0
        %2748 = vmatprep.subr.mxu0 0.0
        %2749 = vmatpush2.msra.mxu0 0.0
        %2750 = vmatprep.subr.mxu0 0.0
        %2751 = vmatpush2.msra.mxu0 0.0
        %2752 = vmatprep.subr.mxu0 0.0
        %2753 = vmatpush2.msra.mxu0 0.0
        %2754 = vmatprep.subr.mxu0 0.0
        %2755 = vmatpush2.msra.mxu0 0.0
        %2756 = vmatprep.subr.mxu0 0.0
        %2757 = vmatpush2.msra.mxu0 0.0
        %2758 = vmatprep.subr.mxu0 0.0
        %2759 = vmatpush2.msra.mxu0 0.0
        %2760 = vmatprep.subr.mxu0 0.0
        %2761 = vmatpush2.msra.mxu0 0.0
        %2762 = vmatprep.subr.mxu0 0.0
        %2763 = vmatpush2.msra.mxu0 0.0
        %2764 = vmatprep.subr.mxu0 0.0
        %2765 = vmatpush2.msra.mxu0 0.0
        %2766 = vmatprep.mubr.f32.mxu0 0.0
        %2767 = vmatmul.mubr.f32.gmra.mxu0 %v2691
        %v2768 = vpop.f32.mrf.mxu0
        %v2769 = vadd.f32 %v2689, %v2768
        %v2770 = vpop.f32.mrf.mxu0
        %2771 = vmatprep.mubr.f32.mxu0 0.0
        %2772 = vmatmul.mubr.f32.gmra.mxu0 %v2694
        %v2773 = vpop.f32.mrf.mxu0
        %v2774 = vadd.f32 %v2689, %v2773
        %v2775 = vpop.f32.mrf.mxu0
        %2776 = vmatprep.mubr.f32.mxu0 0.0
        %2777 = vmatmul.mubr.f32.gmra.mxu0 %v2697
        %v2778 = vpop.f32.mrf.mxu0
        %v2779 = vadd.f32 %v2689, %v2778
        %v2780 = vpop.f32.mrf.mxu0
        %2781 = vmatprep.mubr.f32.mxu0 0.0
        %2782 = vmatmul.mubr.f32.gmra.mxu0 %v2700
        %v2783 = vpop.f32.mrf.mxu0
        %v2784 = vadd.f32 %v2689, %v2783
        %v2785 = vpop.f32.mrf.mxu0
        %2786 = vdwg.mxu0
        %2789 = vrot.lane.b32.xlu0 %v2769, 96
        %v2790 = vpop.permute.xlu0 %2789
        %2791 = vrot.lane.b32.xlu0 %v2774, 96
        %v2792 = vpop.permute.xlu0 %2791
        %v2793 = vsel %vm550, %v2769, 0
        %v2795 = vsel %vm550, %v2774, 0
        %v2797 = vsel %vm550, %v2790, 0
        %v2799 = vsel %vm550, %v2792, 0
        %2801 = vmatprep.subr.mxu0 0.0
        %2802 = vmatpush1.xpose.msra.mxu0 0.0
        %2803 = vmatprep.subr.mxu0 0.0
        %2804 = vmatpush1.xpose.msra.mxu0 0.0
        %2805 = vmatprep.subr.mxu0 0.0
        %2806 = vmatpush1.xpose.msra.mxu0 0.0
        %2807 = vmatprep.subr.mxu0 0.0
        %2808 = vmatpush1.xpose.msra.mxu0 0.0
        %2809 = vmatprep.subr.mxu0 0.0
        %2810 = vmatpush1.xpose.msra.mxu0 0.0
        %2811 = vmatprep.subr.mxu0 0.0
        %2812 = vmatpush1.xpose.msra.mxu0 0.0
        %2813 = vmatprep.subr.mxu0 0.0
        %2814 = vmatpush1.xpose.msra.mxu0 0.0
        %2815 = vmatprep.subr.mxu0 0.0
        %2816 = vmatpush1.xpose.msra.mxu0 0.0
        %2817 = vmatprep.subr.mxu0 0.0
        %2818 = vmatpush1.xpose.msra.mxu0 0.0
        %2819 = vmatprep.subr.mxu0 0.0
        %2820 = vmatpush1.xpose.msra.mxu0 0.0
        %2821 = vmatprep.subr.mxu0 0.0
        %2822 = vmatpush1.xpose.msra.mxu0 0.0
        %2823 = vmatprep.subr.mxu0 0.0
        %2824 = vmatpush1.xpose.msra.mxu0 0.0
        %2825 = vmatprep.subr.mxu0 0.0
        %2826 = vmatpush1.xpose.msra.mxu0 0.0
        %2827 = vmatprep.subr.mxu0 0.0
        %2828 = vmatpush1.xpose.msra.mxu0 0.0
        %2829 = vmatprep.subr.mxu0 0.0
        %2830 = vmatpush1.xpose.msra.mxu0 %v2799
        %2831 = vmatprep.subr.mxu0 0.0
        %2832 = vmatpush1.xpose.msra.mxu0 %v2797
        %2833 = vmatprep.subr.mxu0 0.0
        %2834 = vmatpush2.xpose.msra.mxu0 0.0
        %2835 = vmatprep.subr.mxu0 0.0
        %2836 = vmatpush2.xpose.msra.mxu0 0.0
        %2837 = vmatprep.subr.mxu0 0.0
        %2838 = vmatpush2.xpose.msra.mxu0 0.0
        %2839 = vmatprep.subr.mxu0 0.0
        %2840 = vmatpush2.xpose.msra.mxu0 0.0
        %2841 = vmatprep.subr.mxu0 0.0
        %2842 = vmatpush2.xpose.msra.mxu0 0.0
        %2843 = vmatprep.subr.mxu0 0.0
        %2844 = vmatpush2.xpose.msra.mxu0 0.0
        %2845 = vmatprep.subr.mxu0 0.0
        %2846 = vmatpush2.xpose.msra.mxu0 0.0
        %2847 = vmatprep.subr.mxu0 0.0
        %2848 = vmatpush2.xpose.msra.mxu0 0.0
        %2849 = vmatprep.subr.mxu0 0.0
        %2850 = vmatpush2.xpose.msra.mxu0 0.0
        %2851 = vmatprep.subr.mxu0 0.0
        %2852 = vmatpush2.xpose.msra.mxu0 0.0
        %2853 = vmatprep.subr.mxu0 0.0
        %2854 = vmatpush2.xpose.msra.mxu0 0.0
        %2855 = vmatprep.subr.mxu0 0.0
        %2856 = vmatpush2.xpose.msra.mxu0 0.0
        %2857 = vmatprep.subr.mxu0 0.0
        %2858 = vmatpush2.xpose.msra.mxu0 0.0
        %2859 = vmatprep.subr.mxu0 0.0
        %2860 = vmatpush2.xpose.msra.mxu0 0.0
        %2861 = vmatprep.subr.mxu0 0.0
        %2862 = vmatpush2.xpose.msra.mxu0 0.0
        %2863 = vmatprep.subr.mxu0 0.0
        %2864 = vmatpush2.xpose.msra.mxu0 0.0
        %2865 = vmatprep.mubr.f32.mxu0 0.0
        %2866 = vmatmul.mubr.f32.gmra.mxu0 %v2793
        %v2867 = vpop.f32.mrf.mxu0
        %v2868 = vadd.f32 0.0, %v2867
        %v2869 = vpop.f32.mrf.mxu0
        %2870 = vmatprep.mubr.f32.mxu0 0.0
        %2871 = vmatmul.mubr.f32.gmra.mxu0 %v2795
        %v2872 = vpop.f32.mrf.mxu0
        %v2873 = vadd.f32 0.0, %v2872
        %v2874 = vpop.f32.mrf.mxu0
        %2875 = vdwg.mxu0
        %2878 = vrot.lane.b32.xlu0 %v2779, 96
        %v2879 = vpop.permute.xlu0 %2878
        %2880 = vrot.lane.b32.xlu0 %v2784, 96
        %v2881 = vpop.permute.xlu0 %2880
        %v2882 = vsel %vm550, %v2779, 0
        %v2884 = vsel %vm550, %v2784, 0
        %v2886 = vsel %vm550, %v2879, 0
        %v2888 = vsel %vm550, %v2881, 0
        %2890 = vmatprep.subr.mxu0 0.0
        %2891 = vmatpush1.xpose.msra.mxu0 0.0
        %2892 = vmatprep.subr.mxu0 0.0
        %2893 = vmatpush1.xpose.msra.mxu0 0.0
        %2894 = vmatprep.subr.mxu0 0.0
        %2895 = vmatpush1.xpose.msra.mxu0 0.0
        %2896 = vmatprep.subr.mxu0 0.0
        %2897 = vmatpush1.xpose.msra.mxu0 0.0
        %2898 = vmatprep.subr.mxu0 0.0
        %2899 = vmatpush1.xpose.msra.mxu0 0.0
        %2900 = vmatprep.subr.mxu0 0.0
        %2901 = vmatpush1.xpose.msra.mxu0 0.0
        %2902 = vmatprep.subr.mxu0 0.0
        %2903 = vmatpush1.xpose.msra.mxu0 0.0
        %2904 = vmatprep.subr.mxu0 0.0
        %2905 = vmatpush1.xpose.msra.mxu0 0.0
        %2906 = vmatprep.subr.mxu0 0.0
        %2907 = vmatpush1.xpose.msra.mxu0 0.0
        %2908 = vmatprep.subr.mxu0 0.0
        %2909 = vmatpush1.xpose.msra.mxu0 0.0
        %2910 = vmatprep.subr.mxu0 0.0
        %2911 = vmatpush1.xpose.msra.mxu0 0.0
        %2912 = vmatprep.subr.mxu0 0.0
        %2913 = vmatpush1.xpose.msra.mxu0 0.0
        %2914 = vmatprep.subr.mxu0 0.0
        %2915 = vmatpush1.xpose.msra.mxu0 0.0
        %2916 = vmatprep.subr.mxu0 0.0
        %2917 = vmatpush1.xpose.msra.mxu0 0.0
        %2918 = vmatprep.subr.mxu0 0.0
        %2919 = vmatpush1.xpose.msra.mxu0 %v2888
        %2920 = vmatprep.subr.mxu0 0.0
        %2921 = vmatpush1.xpose.msra.mxu0 %v2886
        %2922 = vmatprep.subr.mxu0 0.0
        %2923 = vmatpush2.xpose.msra.mxu0 0.0
        %2924 = vmatprep.subr.mxu0 0.0
        %2925 = vmatpush2.xpose.msra.mxu0 0.0
        %2926 = vmatprep.subr.mxu0 0.0
        %2927 = vmatpush2.xpose.msra.mxu0 0.0
        %2928 = vmatprep.subr.mxu0 0.0
        %2929 = vmatpush2.xpose.msra.mxu0 0.0
        %2930 = vmatprep.subr.mxu0 0.0
        %2931 = vmatpush2.xpose.msra.mxu0 0.0
        %2932 = vmatprep.subr.mxu0 0.0
        %2933 = vmatpush2.xpose.msra.mxu0 0.0
        %2934 = vmatprep.subr.mxu0 0.0
        %2935 = vmatpush2.xpose.msra.mxu0 0.0
        %2936 = vmatprep.subr.mxu0 0.0
        %2937 = vmatpush2.xpose.msra.mxu0 0.0
        %2938 = vmatprep.subr.mxu0 0.0
        %2939 = vmatpush2.xpose.msra.mxu0 0.0
        %2940 = vmatprep.subr.mxu0 0.0
        %2941 = vmatpush2.xpose.msra.mxu0 0.0
        %2942 = vmatprep.subr.mxu0 0.0
        %2943 = vmatpush2.xpose.msra.mxu0 0.0
        %2944 = vmatprep.subr.mxu0 0.0
        %2945 = vmatpush2.xpose.msra.mxu0 0.0
        %2946 = vmatprep.subr.mxu0 0.0
        %2947 = vmatpush2.xpose.msra.mxu0 0.0
        %2948 = vmatprep.subr.mxu0 0.0
        %2949 = vmatpush2.xpose.msra.mxu0 0.0
        %2950 = vmatprep.subr.mxu0 0.0
        %2951 = vmatpush2.xpose.msra.mxu0 0.0
        %2952 = vmatprep.subr.mxu0 0.0
        %2953 = vmatpush2.xpose.msra.mxu0 0.0
        %2954 = vmatprep.mubr.f32.mxu0 0.0
        %2955 = vmatmul.mubr.f32.gmra.mxu0 %v2882
        %v2956 = vpop.f32.mrf.mxu0
        %v2957 = vadd.f32 0.0, %v2956
        %v2958 = vpop.f32.mrf.mxu0
        %2959 = vmatprep.mubr.f32.mxu0 0.0
        %2960 = vmatmul.mubr.f32.gmra.mxu0 %v2884
        %v2961 = vpop.f32.mrf.mxu0
        %v2962 = vadd.f32 0.0, %v2961
        %v2963 = vpop.f32.mrf.mxu0
        %2964 = vdwg.mxu0
        %v2965 = vsel %vm723, %v2868, -inf
        %2966 = vmax.xlane.f32.xlu0 %v2965
        %v2967 = vpop.xlane.xlu0 %2966
        %v2968 = vsel %vm723, %v2873, -inf
        %2969 = vmax.xlane.f32.xlu0 %v2968
        %v2970 = vpop.xlane.xlu0 %2969
        %v2971 = vsel %vm723, %v2957, -inf
        %2972 = vmax.xlane.f32.xlu0 %v2971
        %v2973 = vpop.xlane.xlu0 %2972
        %v2974 = vsel %vm723, %v2962, -inf
        %2975 = vmax.xlane.f32.xlu0 %v2974
        %v2976 = vpop.xlane.xlu0 %2975
        %v2977 = vsub.f32 %v2868, %v2967
        %v2978 = vsub.f32 %v2873, %v2970
        %v2979 = vsub.f32 %v2957, %v2973
        %v2980 = vsub.f32 %v2962, %v2976
        %v2981 = vmul.f32 %v2977, 1.442695
        %v2982 = vpow.pop %v2981
        %v2983 = vmul.f32 %v2978, 1.442695
        %v2984 = vpow.pop %v2983
        %v2985 = vmul.f32 %v2979, 1.442695
        %v2986 = vpow.pop %v2985
        %v2987 = vmul.f32 %v2980, 1.442695
        %v2988 = vpow.pop %v2987
        %v2989 = vsel %vm723, %v2982, 0.0
        %2990 = vadd.xlane.f32.xlu0 %v2989
        %v2991 = vpop.xlane.xlu0 %2990
        %v2992 = vsel %vm723, %v2984, 0.0
        %2993 = vadd.xlane.f32.xlu0 %v2992
        %v2994 = vpop.xlane.xlu0 %2993
        %v2995 = vsel %vm723, %v2986, 0.0
        %2996 = vadd.xlane.f32.xlu0 %v2995
        %v2997 = vpop.xlane.xlu0 %2996
        %v2998 = vsel %vm723, %v2988, 0.0
        %2999 = vadd.xlane.f32.xlu0 %v2998
        %v3000 = vpop.xlane.xlu0 %2999
        %v3001 = vrcp.pop %v2991
        %v3002 = vrcp.pop %v2994
        %v3003 = vrcp.pop %v2997
        %v3004 = vrcp.pop %v3000
        %v3005 = vmul.f32 %v2982, %v3001
        %v3006 = vmul.f32 %v2984, %v3002
        %v3007 = vmul.f32 %v2986, %v3003
        %v3008 = vmul.f32 %v2988, %v3004
        %3009 = vrot.lane.b32.xlu0 %v2769, 64
        %v3010 = vpop.permute.xlu0 %3009
        %3011 = vrot.lane.b32.xlu0 %v2774, 64
        %v3012 = vpop.permute.xlu0 %3011
        %v3016 = vsel %vm723, %v3005, 0
        %v3019 = vsel %vm723, %v3006, 0
        %3021 = vmatprep.subr.mxu0 0.0
        %3022 = vmatpush1.msra.mxu0 0.0
        %3023 = vmatprep.subr.mxu0 0.0
        %3024 = vmatpush1.msra.mxu0 0.0
        %3025 = vmatprep.subr.mxu0 0.0
        %3026 = vmatpush1.msra.mxu0 0.0
        %3027 = vmatprep.subr.mxu0 0.0
        %3028 = vmatpush1.msra.mxu0 0.0
        %3029 = vmatprep.subr.mxu0 0.0
        %3030 = vmatpush1.msra.mxu0 0.0
        %3031 = vmatprep.subr.mxu0 0.0
        %3032 = vmatpush1.msra.mxu0 0.0
        %3033 = vmatprep.subr.mxu0 0.0
        %3034 = vmatpush1.msra.mxu0 0.0
        %3035 = vmatprep.subr.mxu0 0.0
        %3036 = vmatpush1.msra.mxu0 0.0
        %3037 = vmatprep.subr.mxu0 0.0
        %3038 = vmatpush1.msra.mxu0 0.0
        %3039 = vmatprep.subr.mxu0 0.0
        %3040 = vmatpush1.msra.mxu0 0.0
        %3041 = vmatprep.subr.mxu0 0.0
        %3042 = vmatpush1.msra.mxu0 0.0
        %3043 = vmatprep.subr.mxu0 0.0
        %3044 = vmatpush1.msra.mxu0 0.0
        %3045 = vmatprep.subr.mxu0 0.0
        %3046 = vmatpush1.msra.mxu0 0.0
        %3047 = vmatprep.subr.mxu0 0.0
        %3048 = vmatpush1.msra.mxu0 0.0
        %3049 = vmatprep.subr.mxu0 0.0
        %3050 = vmatpush1.msra.mxu0 %v3012
        %3051 = vmatprep.subr.mxu0 0.0
        %3052 = vmatpush1.msra.mxu0 %v3010
        %3053 = vmatprep.subr.mxu0 0.0
        %3054 = vmatpush2.msra.mxu0 0.0
        %3055 = vmatprep.subr.mxu0 0.0
        %3056 = vmatpush2.msra.mxu0 0.0
        %3057 = vmatprep.subr.mxu0 0.0
        %3058 = vmatpush2.msra.mxu0 0.0
        %3059 = vmatprep.subr.mxu0 0.0
        %3060 = vmatpush2.msra.mxu0 0.0
        %3061 = vmatprep.subr.mxu0 0.0
        %3062 = vmatpush2.msra.mxu0 0.0
        %3063 = vmatprep.subr.mxu0 0.0
        %3064 = vmatpush2.msra.mxu0 0.0
        %3065 = vmatprep.subr.mxu0 0.0
        %3066 = vmatpush2.msra.mxu0 0.0
        %3067 = vmatprep.subr.mxu0 0.0
        %3068 = vmatpush2.msra.mxu0 0.0
        %3069 = vmatprep.subr.mxu0 0.0
        %3070 = vmatpush2.msra.mxu0 0.0
        %3071 = vmatprep.subr.mxu0 0.0
        %3072 = vmatpush2.msra.mxu0 0.0
        %3073 = vmatprep.subr.mxu0 0.0
        %3074 = vmatpush2.msra.mxu0 0.0
        %3075 = vmatprep.subr.mxu0 0.0
        %3076 = vmatpush2.msra.mxu0 0.0
        %3077 = vmatprep.subr.mxu0 0.0
        %3078 = vmatpush2.msra.mxu0 0.0
        %3079 = vmatprep.subr.mxu0 0.0
        %3080 = vmatpush2.msra.mxu0 0.0
        %3081 = vmatprep.subr.mxu0 0.0
        %3082 = vmatpush2.msra.mxu0 0.0
        %3083 = vmatprep.subr.mxu0 0.0
        %3084 = vmatpush2.msra.mxu0 0.0
        %3085 = vmatprep.mubr.f32.mxu0 0.0
        %3086 = vmatmul.mubr.f32.gmra.mxu0 %v3016
        %v3087 = vpop.f32.mrf.mxu0
        %v3088 = vadd.f32 0.0, %v3087
        %v3089 = vpop.f32.mrf.mxu0
        %3090 = vmatprep.mubr.f32.mxu0 0.0
        %3091 = vmatmul.mubr.f32.gmra.mxu0 %v3019
        %v3092 = vpop.f32.mrf.mxu0
        %v3093 = vadd.f32 0.0, %v3092
        %v3094 = vpop.f32.mrf.mxu0
        %3095 = vdwg.mxu0
        %3096 = vrot.lane.b32.xlu0 %v2779, 64
        %v3097 = vpop.permute.xlu0 %3096
        %3098 = vrot.lane.b32.xlu0 %v2784, 64
        %v3099 = vpop.permute.xlu0 %3098
        %v3103 = vsel %vm723, %v3007, 0
        %v3106 = vsel %vm723, %v3008, 0
        %3108 = vmatprep.subr.mxu0 0.0
        %3109 = vmatpush1.msra.mxu0 0.0
        %3110 = vmatprep.subr.mxu0 0.0
        %3111 = vmatpush1.msra.mxu0 0.0
        %3112 = vmatprep.subr.mxu0 0.0
        %3113 = vmatpush1.msra.mxu0 0.0
        %3114 = vmatprep.subr.mxu0 0.0
        %3115 = vmatpush1.msra.mxu0 0.0
        %3116 = vmatprep.subr.mxu0 0.0
        %3117 = vmatpush1.msra.mxu0 0.0
        %3118 = vmatprep.subr.mxu0 0.0
        %3119 = vmatpush1.msra.mxu0 0.0
        %3120 = vmatprep.subr.mxu0 0.0
        %3121 = vmatpush1.msra.mxu0 0.0
        %3122 = vmatprep.subr.mxu0 0.0
        %3123 = vmatpush1.msra.mxu0 0.0
        %3124 = vmatprep.subr.mxu0 0.0
        %3125 = vmatpush1.msra.mxu0 0.0
        %3126 = vmatprep.subr.mxu0 0.0
        %3127 = vmatpush1.msra.mxu0 0.0
        %3128 = vmatprep.subr.mxu0 0.0
        %3129 = vmatpush1.msra.mxu0 0.0
        %3130 = vmatprep.subr.mxu0 0.0
        %3131 = vmatpush1.msra.mxu0 0.0
        %3132 = vmatprep.subr.mxu0 0.0
        %3133 = vmatpush1.msra.mxu0 0.0
        %3134 = vmatprep.subr.mxu0 0.0
        %3135 = vmatpush1.msra.mxu0 0.0
        %3136 = vmatprep.subr.mxu0 0.0
        %3137 = vmatpush1.msra.mxu0 %v3099
        %3138 = vmatprep.subr.mxu0 0.0
        %3139 = vmatpush1.msra.mxu0 %v3097
        %3140 = vmatprep.subr.mxu0 0.0
        %3141 = vmatpush2.msra.mxu0 0.0
        %3142 = vmatprep.subr.mxu0 0.0
        %3143 = vmatpush2.msra.mxu0 0.0
        %3144 = vmatprep.subr.mxu0 0.0
        %3145 = vmatpush2.msra.mxu0 0.0
        %3146 = vmatprep.subr.mxu0 0.0
        %3147 = vmatpush2.msra.mxu0 0.0
        %3148 = vmatprep.subr.mxu0 0.0
        %3149 = vmatpush2.msra.mxu0 0.0
        %3150 = vmatprep.subr.mxu0 0.0
        %3151 = vmatpush2.msra.mxu0 0.0
        %3152 = vmatprep.subr.mxu0 0.0
        %3153 = vmatpush2.msra.mxu0 0.0
        %3154 = vmatprep.subr.mxu0 0.0
        %3155 = vmatpush2.msra.mxu0 0.0
        %3156 = vmatprep.subr.mxu0 0.0
        %3157 = vmatpush2.msra.mxu0 0.0
        %3158 = vmatprep.subr.mxu0 0.0
        %3159 = vmatpush2.msra.mxu0 0.0
        %3160 = vmatprep.subr.mxu0 0.0
        %3161 = vmatpush2.msra.mxu0 0.0
        %3162 = vmatprep.subr.mxu0 0.0
        %3163 = vmatpush2.msra.mxu0 0.0
        %3164 = vmatprep.subr.mxu0 0.0
        %3165 = vmatpush2.msra.mxu0 0.0
        %3166 = vmatprep.subr.mxu0 0.0
        %3167 = vmatpush2.msra.mxu0 0.0
        %3168 = vmatprep.subr.mxu0 0.0
        %3169 = vmatpush2.msra.mxu0 0.0
        %3170 = vmatprep.subr.mxu0 0.0
        %3171 = vmatpush2.msra.mxu0 0.0
        %3172 = vmatprep.mubr.f32.mxu0 0.0
        %3173 = vmatmul.mubr.f32.gmra.mxu0 %v3103
        %v3174 = vpop.f32.mrf.mxu0
        %v3175 = vadd.f32 0.0, %v3174
        %v3176 = vpop.f32.mrf.mxu0
        %3177 = vmatprep.mubr.f32.mxu0 0.0
        %3178 = vmatmul.mubr.f32.gmra.mxu0 %v3106
        %v3179 = vpop.f32.mrf.mxu0
        %v3180 = vadd.f32 0.0, %v3179
        %v3181 = vpop.f32.mrf.mxu0
        %3182 = vdwg.mxu0
        %3183 = vrot.lane.b32.xlu0 %v2769, 120
        %v3184 = vpop.permute.xlu0 %3183
        %3185 = vrot.lane.b32.xlu0 %v2774, 120
        %v3186 = vpop.permute.xlu0 %3185
        %3187 = vrot.lane.b32.xlu0 %v2769, 88
        %v3188 = vpop.permute.xlu0 %3187
        %3189 = vrot.lane.b32.xlu0 %v2774, 88
        %v3190 = vpop.permute.xlu0 %3189
        %v3191 = vsel %vm550, %v3184, 0
        %v3193 = vsel %vm550, %v3186, 0
        %v3195 = vsel %vm550, %v3188, 0
        %v3197 = vsel %vm550, %v3190, 0
        %3199 = vmatprep.subr.mxu0 0.0
        %3200 = vmatpush1.xpose.msra.mxu0 0.0
        %3201 = vmatprep.subr.mxu0 0.0
        %3202 = vmatpush1.xpose.msra.mxu0 0.0
        %3203 = vmatprep.subr.mxu0 0.0
        %3204 = vmatpush1.xpose.msra.mxu0 0.0
        %3205 = vmatprep.subr.mxu0 0.0
        %3206 = vmatpush1.xpose.msra.mxu0 0.0
        %3207 = vmatprep.subr.mxu0 0.0
        %3208 = vmatpush1.xpose.msra.mxu0 0.0
        %3209 = vmatprep.subr.mxu0 0.0
        %3210 = vmatpush1.xpose.msra.mxu0 0.0
        %3211 = vmatprep.subr.mxu0 0.0
        %3212 = vmatpush1.xpose.msra.mxu0 0.0
        %3213 = vmatprep.subr.mxu0 0.0
        %3214 = vmatpush1.xpose.msra.mxu0 0.0
        %3215 = vmatprep.subr.mxu0 0.0
        %3216 = vmatpush1.xpose.msra.mxu0 0.0
        %3217 = vmatprep.subr.mxu0 0.0
        %3218 = vmatpush1.xpose.msra.mxu0 0.0
        %3219 = vmatprep.subr.mxu0 0.0
        %3220 = vmatpush1.xpose.msra.mxu0 0.0
        %3221 = vmatprep.subr.mxu0 0.0
        %3222 = vmatpush1.xpose.msra.mxu0 0.0
        %3223 = vmatprep.subr.mxu0 0.0
        %3224 = vmatpush1.xpose.msra.mxu0 0.0
        %3225 = vmatprep.subr.mxu0 0.0
        %3226 = vmatpush1.xpose.msra.mxu0 0.0
        %3227 = vmatprep.subr.mxu0 0.0
        %3228 = vmatpush1.xpose.msra.mxu0 %v3197
        %3229 = vmatprep.subr.mxu0 0.0
        %3230 = vmatpush1.xpose.msra.mxu0 %v3195
        %3231 = vmatprep.subr.mxu0 0.0
        %3232 = vmatpush2.xpose.msra.mxu0 0.0
        %3233 = vmatprep.subr.mxu0 0.0
        %3234 = vmatpush2.xpose.msra.mxu0 0.0
        %3235 = vmatprep.subr.mxu0 0.0
        %3236 = vmatpush2.xpose.msra.mxu0 0.0
        %3237 = vmatprep.subr.mxu0 0.0
        %3238 = vmatpush2.xpose.msra.mxu0 0.0
        %3239 = vmatprep.subr.mxu0 0.0
        %3240 = vmatpush2.xpose.msra.mxu0 0.0
        %3241 = vmatprep.subr.mxu0 0.0
        %3242 = vmatpush2.xpose.msra.mxu0 0.0
        %3243 = vmatprep.subr.mxu0 0.0
        %3244 = vmatpush2.xpose.msra.mxu0 0.0
        %3245 = vmatprep.subr.mxu0 0.0
        %3246 = vmatpush2.xpose.msra.mxu0 0.0
        %3247 = vmatprep.subr.mxu0 0.0
        %3248 = vmatpush2.xpose.msra.mxu0 0.0
        %3249 = vmatprep.subr.mxu0 0.0
        %3250 = vmatpush2.xpose.msra.mxu0 0.0
        %3251 = vmatprep.subr.mxu0 0.0
        %3252 = vmatpush2.xpose.msra.mxu0 0.0
        %3253 = vmatprep.subr.mxu0 0.0
        %3254 = vmatpush2.xpose.msra.mxu0 0.0
        %3255 = vmatprep.subr.mxu0 0.0
        %3256 = vmatpush2.xpose.msra.mxu0 0.0
        %3257 = vmatprep.subr.mxu0 0.0
        %3258 = vmatpush2.xpose.msra.mxu0 0.0
        %3259 = vmatprep.subr.mxu0 0.0
        %3260 = vmatpush2.xpose.msra.mxu0 0.0
        %3261 = vmatprep.subr.mxu0 0.0
        %3262 = vmatpush2.xpose.msra.mxu0 0.0
        %3263 = vmatprep.mubr.f32.mxu0 0.0
        %3264 = vmatmul.mubr.f32.gmra.mxu0 %v3191
        %v3265 = vpop.f32.mrf.mxu0
        %v3266 = vadd.f32 0.0, %v3265
        %v3267 = vpop.f32.mrf.mxu0
        %3268 = vmatprep.mubr.f32.mxu0 0.0
        %3269 = vmatmul.mubr.f32.gmra.mxu0 %v3193
        %v3270 = vpop.f32.mrf.mxu0
        %v3271 = vadd.f32 0.0, %v3270
        %v3272 = vpop.f32.mrf.mxu0
        %3273 = vdwg.mxu0
        %3274 = vrot.lane.b32.xlu0 %v2779, 120
        %v3275 = vpop.permute.xlu0 %3274
        %3276 = vrot.lane.b32.xlu0 %v2784, 120
        %v3277 = vpop.permute.xlu0 %3276
        %3278 = vrot.lane.b32.xlu0 %v2779, 88
        %v3279 = vpop.permute.xlu0 %3278
        %3280 = vrot.lane.b32.xlu0 %v2784, 88
        %v3281 = vpop.permute.xlu0 %3280
        %v3282 = vsel %vm550, %v3275, 0
        %v3284 = vsel %vm550, %v3277, 0
        %v3286 = vsel %vm550, %v3279, 0
        %v3288 = vsel %vm550, %v3281, 0
        %3290 = vmatprep.subr.mxu0 0.0
        %3291 = vmatpush1.xpose.msra.mxu0 0.0
        %3292 = vmatprep.subr.mxu0 0.0
        %3293 = vmatpush1.xpose.msra.mxu0 0.0
        %3294 = vmatprep.subr.mxu0 0.0
        %3295 = vmatpush1.xpose.msra.mxu0 0.0
        %3296 = vmatprep.subr.mxu0 0.0
        %3297 = vmatpush1.xpose.msra.mxu0 0.0
        %3298 = vmatprep.subr.mxu0 0.0
        %3299 = vmatpush1.xpose.msra.mxu0 0.0
        %3300 = vmatprep.subr.mxu0 0.0
        %3301 = vmatpush1.xpose.msra.mxu0 0.0
        %3302 = vmatprep.subr.mxu0 0.0
        %3303 = vmatpush1.xpose.msra.mxu0 0.0
        %3304 = vmatprep.subr.mxu0 0.0
        %3305 = vmatpush1.xpose.msra.mxu0 0.0
        %3306 = vmatprep.subr.mxu0 0.0
        %3307 = vmatpush1.xpose.msra.mxu0 0.0
        %3308 = vmatprep.subr.mxu0 0.0
        %3309 = vmatpush1.xpose.msra.mxu0 0.0
        %3310 = vmatprep.subr.mxu0 0.0
        %3311 = vmatpush1.xpose.msra.mxu0 0.0
        %3312 = vmatprep.subr.mxu0 0.0
        %3313 = vmatpush1.xpose.msra.mxu0 0.0
        %3314 = vmatprep.subr.mxu0 0.0
        %3315 = vmatpush1.xpose.msra.mxu0 0.0
        %3316 = vmatprep.subr.mxu0 0.0
        %3317 = vmatpush1.xpose.msra.mxu0 0.0
        %3318 = vmatprep.subr.mxu0 0.0
        %3319 = vmatpush1.xpose.msra.mxu0 %v3288
        %3320 = vmatprep.subr.mxu0 0.0
        %3321 = vmatpush1.xpose.msra.mxu0 %v3286
        %3322 = vmatprep.subr.mxu0 0.0
        %3323 = vmatpush2.xpose.msra.mxu0 0.0
        %3324 = vmatprep.subr.mxu0 0.0
        %3325 = vmatpush2.xpose.msra.mxu0 0.0
        %3326 = vmatprep.subr.mxu0 0.0
        %3327 = vmatpush2.xpose.msra.mxu0 0.0
        %3328 = vmatprep.subr.mxu0 0.0
        %3329 = vmatpush2.xpose.msra.mxu0 0.0
        %3330 = vmatprep.subr.mxu0 0.0
        %3331 = vmatpush2.xpose.msra.mxu0 0.0
        %3332 = vmatprep.subr.mxu0 0.0
        %3333 = vmatpush2.xpose.msra.mxu0 0.0
        %3334 = vmatprep.subr.mxu0 0.0
        %3335 = vmatpush2.xpose.msra.mxu0 0.0
        %3336 = vmatprep.subr.mxu0 0.0
        %3337 = vmatpush2.xpose.msra.mxu0 0.0
        %3338 = vmatprep.subr.mxu0 0.0
        %3339 = vmatpush2.xpose.msra.mxu0 0.0
        %3340 = vmatprep.subr.mxu0 0.0
        %3341 = vmatpush2.xpose.msra.mxu0 0.0
        %3342 = vmatprep.subr.mxu0 0.0
        %3343 = vmatpush2.xpose.msra.mxu0 0.0
        %3344 = vmatprep.subr.mxu0 0.0
        %3345 = vmatpush2.xpose.msra.mxu0 0.0
        %3346 = vmatprep.subr.mxu0 0.0
        %3347 = vmatpush2.xpose.msra.mxu0 0.0
        %3348 = vmatprep.subr.mxu0 0.0
        %3349 = vmatpush2.xpose.msra.mxu0 0.0
        %3350 = vmatprep.subr.mxu0 0.0
        %3351 = vmatpush2.xpose.msra.mxu0 0.0
        %3352 = vmatprep.subr.mxu0 0.0
        %3353 = vmatpush2.xpose.msra.mxu0 0.0
        %3354 = vmatprep.mubr.f32.mxu0 0.0
        %3355 = vmatmul.mubr.f32.gmra.mxu0 %v3282
        %v3356 = vpop.f32.mrf.mxu0
        %v3357 = vadd.f32 0.0, %v3356
        %v3358 = vpop.f32.mrf.mxu0
        %3359 = vmatprep.mubr.f32.mxu0 0.0
        %3360 = vmatmul.mubr.f32.gmra.mxu0 %v3284
        %v3361 = vpop.f32.mrf.mxu0
        %v3362 = vadd.f32 0.0, %v3361
        %v3363 = vpop.f32.mrf.mxu0
        %3364 = vdwg.mxu0
        %v3365 = vsel %vm723, %v3266, -inf
        %3366 = vmax.xlane.f32.xlu0 %v3365
        %v3367 = vpop.xlane.xlu0 %3366
        %v3368 = vsel %vm723, %v3271, -inf
        %3369 = vmax.xlane.f32.xlu0 %v3368
        %v3370 = vpop.xlane.xlu0 %3369
        %v3371 = vsel %vm723, %v3357, -inf
        %3372 = vmax.xlane.f32.xlu0 %v3371
        %v3373 = vpop.xlane.xlu0 %3372
        %v3374 = vsel %vm723, %v3362, -inf
        %3375 = vmax.xlane.f32.xlu0 %v3374
        %v3376 = vpop.xlane.xlu0 %3375
        %v3377 = vsub.f32 %v3266, %v3367
        %v3378 = vsub.f32 %v3271, %v3370
        %v3379 = vsub.f32 %v3357, %v3373
        %v3380 = vsub.f32 %v3362, %v3376
        %v3381 = vmul.f32 %v3377, 1.442695
        %v3382 = vpow.pop %v3381
        %v3383 = vmul.f32 %v3378, 1.442695
        %v3384 = vpow.pop %v3383
        %v3385 = vmul.f32 %v3379, 1.442695
        %v3386 = vpow.pop %v3385
        %v3387 = vmul.f32 %v3380, 1.442695
        %v3388 = vpow.pop %v3387
        %v3389 = vsel %vm723, %v3382, 0.0
        %3390 = vadd.xlane.f32.xlu0 %v3389
        %v3391 = vpop.xlane.xlu0 %3390
        %v3392 = vsel %vm723, %v3384, 0.0
        %3393 = vadd.xlane.f32.xlu0 %v3392
        %v3394 = vpop.xlane.xlu0 %3393
        %v3395 = vsel %vm723, %v3386, 0.0
        %3396 = vadd.xlane.f32.xlu0 %v3395
        %v3397 = vpop.xlane.xlu0 %3396
        %v3398 = vsel %vm723, %v3388, 0.0
        %3399 = vadd.xlane.f32.xlu0 %v3398
        %v3400 = vpop.xlane.xlu0 %3399
        %v3401 = vrcp.pop %v3391
        %v3402 = vrcp.pop %v3394
        %v3403 = vrcp.pop %v3397
        %v3404 = vrcp.pop %v3400
        %v3405 = vmul.f32 %v3382, %v3401
        %v3406 = vmul.f32 %v3384, %v3402
        %v3407 = vmul.f32 %v3386, %v3403
        %v3408 = vmul.f32 %v3388, %v3404
        %3409 = vrot.lane.b32.xlu0 %v2769, 56
        %v3410 = vpop.permute.xlu0 %3409
        %3411 = vrot.lane.b32.xlu0 %v2774, 56
        %v3412 = vpop.permute.xlu0 %3411
        %v3416 = vsel %vm723, %v3405, 0
        %v3419 = vsel %vm723, %v3406, 0
        %3421 = vmatprep.subr.mxu0 0.0
        %3422 = vmatpush1.msra.mxu0 0.0
        %3423 = vmatprep.subr.mxu0 0.0
        %3424 = vmatpush1.msra.mxu0 0.0
        %3425 = vmatprep.subr.mxu0 0.0
        %3426 = vmatpush1.msra.mxu0 0.0
        %3427 = vmatprep.subr.mxu0 0.0
        %3428 = vmatpush1.msra.mxu0 0.0
        %3429 = vmatprep.subr.mxu0 0.0
        %3430 = vmatpush1.msra.mxu0 0.0
        %3431 = vmatprep.subr.mxu0 0.0
        %3432 = vmatpush1.msra.mxu0 0.0
        %3433 = vmatprep.subr.mxu0 0.0
        %3434 = vmatpush1.msra.mxu0 0.0
        %3435 = vmatprep.subr.mxu0 0.0
        %3436 = vmatpush1.msra.mxu0 0.0
        %3437 = vmatprep.subr.mxu0 0.0
        %3438 = vmatpush1.msra.mxu0 0.0
        %3439 = vmatprep.subr.mxu0 0.0
        %3440 = vmatpush1.msra.mxu0 0.0
        %3441 = vmatprep.subr.mxu0 0.0
        %3442 = vmatpush1.msra.mxu0 0.0
        %3443 = vmatprep.subr.mxu0 0.0
        %3444 = vmatpush1.msra.mxu0 0.0
        %3445 = vmatprep.subr.mxu0 0.0
        %3446 = vmatpush1.msra.mxu0 0.0
        %3447 = vmatprep.subr.mxu0 0.0
        %3448 = vmatpush1.msra.mxu0 0.0
        %3449 = vmatprep.subr.mxu0 0.0
        %3450 = vmatpush1.msra.mxu0 %v3412
        %3451 = vmatprep.subr.mxu0 0.0
        %3452 = vmatpush1.msra.mxu0 %v3410
        %3453 = vmatprep.subr.mxu0 0.0
        %3454 = vmatpush2.msra.mxu0 0.0
        %3455 = vmatprep.subr.mxu0 0.0
        %3456 = vmatpush2.msra.mxu0 0.0
        %3457 = vmatprep.subr.mxu0 0.0
        %3458 = vmatpush2.msra.mxu0 0.0
        %3459 = vmatprep.subr.mxu0 0.0
        %3460 = vmatpush2.msra.mxu0 0.0
        %3461 = vmatprep.subr.mxu0 0.0
        %3462 = vmatpush2.msra.mxu0 0.0
        %3463 = vmatprep.subr.mxu0 0.0
        %3464 = vmatpush2.msra.mxu0 0.0
        %3465 = vmatprep.subr.mxu0 0.0
        %3466 = vmatpush2.msra.mxu0 0.0
        %3467 = vmatprep.subr.mxu0 0.0
        %3468 = vmatpush2.msra.mxu0 0.0
        %3469 = vmatprep.subr.mxu0 0.0
        %3470 = vmatpush2.msra.mxu0 0.0
        %3471 = vmatprep.subr.mxu0 0.0
        %3472 = vmatpush2.msra.mxu0 0.0
        %3473 = vmatprep.subr.mxu0 0.0
        %3474 = vmatpush2.msra.mxu0 0.0
        %3475 = vmatprep.subr.mxu0 0.0
        %3476 = vmatpush2.msra.mxu0 0.0
        %3477 = vmatprep.subr.mxu0 0.0
        %3478 = vmatpush2.msra.mxu0 0.0
        %3479 = vmatprep.subr.mxu0 0.0
        %3480 = vmatpush2.msra.mxu0 0.0
        %3481 = vmatprep.subr.mxu0 0.0
        %3482 = vmatpush2.msra.mxu0 0.0
        %3483 = vmatprep.subr.mxu0 0.0
        %3484 = vmatpush2.msra.mxu0 0.0
        %3485 = vmatprep.mubr.f32.mxu0 0.0
        %3486 = vmatmul.mubr.f32.gmra.mxu0 %v3416
        %v3487 = vpop.f32.mrf.mxu0
        %v3488 = vadd.f32 0.0, %v3487
        %v3489 = vpop.f32.mrf.mxu0
        %3490 = vmatprep.mubr.f32.mxu0 0.0
        %3491 = vmatmul.mubr.f32.gmra.mxu0 %v3419
        %v3492 = vpop.f32.mrf.mxu0
        %v3493 = vadd.f32 0.0, %v3492
        %v3494 = vpop.f32.mrf.mxu0
        %3495 = vdwg.mxu0
        %3496 = vrot.lane.b32.xlu0 %v2779, 56
        %v3497 = vpop.permute.xlu0 %3496
        %3498 = vrot.lane.b32.xlu0 %v2784, 56
        %v3499 = vpop.permute.xlu0 %3498
        %v3503 = vsel %vm723, %v3407, 0
        %v3506 = vsel %vm723, %v3408, 0
        %3508 = vmatprep.subr.mxu0 0.0
        %3509 = vmatpush1.msra.mxu0 0.0
        %3510 = vmatprep.subr.mxu0 0.0
        %3511 = vmatpush1.msra.mxu0 0.0
        %3512 = vmatprep.subr.mxu0 0.0
        %3513 = vmatpush1.msra.mxu0 0.0
        %3514 = vmatprep.subr.mxu0 0.0
        %3515 = vmatpush1.msra.mxu0 0.0
        %3516 = vmatprep.subr.mxu0 0.0
        %3517 = vmatpush1.msra.mxu0 0.0
        %3518 = vmatprep.subr.mxu0 0.0
        %3519 = vmatpush1.msra.mxu0 0.0
        %3520 = vmatprep.subr.mxu0 0.0
        %3521 = vmatpush1.msra.mxu0 0.0
        %3522 = vmatprep.subr.mxu0 0.0
        %3523 = vmatpush1.msra.mxu0 0.0
        %3524 = vmatprep.subr.mxu0 0.0
        %3525 = vmatpush1.msra.mxu0 0.0
        %3526 = vmatprep.subr.mxu0 0.0
        %3527 = vmatpush1.msra.mxu0 0.0
        %3528 = vmatprep.subr.mxu0 0.0
        %3529 = vmatpush1.msra.mxu0 0.0
        %3530 = vmatprep.subr.mxu0 0.0
        %3531 = vmatpush1.msra.mxu0 0.0
        %3532 = vmatprep.subr.mxu0 0.0
        %3533 = vmatpush1.msra.mxu0 0.0
        %3534 = vmatprep.subr.mxu0 0.0
        %3535 = vmatpush1.msra.mxu0 0.0
        %3536 = vmatprep.subr.mxu0 0.0
        %3537 = vmatpush1.msra.mxu0 %v3499
        %3538 = vmatprep.subr.mxu0 0.0
        %3539 = vmatpush1.msra.mxu0 %v3497
        %3540 = vmatprep.subr.mxu0 0.0
        %3541 = vmatpush2.msra.mxu0 0.0
        %3542 = vmatprep.subr.mxu0 0.0
        %3543 = vmatpush2.msra.mxu0 0.0
        %3544 = vmatprep.subr.mxu0 0.0
        %3545 = vmatpush2.msra.mxu0 0.0
        %3546 = vmatprep.subr.mxu0 0.0
        %3547 = vmatpush2.msra.mxu0 0.0
        %3548 = vmatprep.subr.mxu0 0.0
        %3549 = vmatpush2.msra.mxu0 0.0
        %3550 = vmatprep.subr.mxu0 0.0
        %3551 = vmatpush2.msra.mxu0 0.0
        %3552 = vmatprep.subr.mxu0 0.0
        %3553 = vmatpush2.msra.mxu0 0.0
        %3554 = vmatprep.subr.mxu0 0.0
        %3555 = vmatpush2.msra.mxu0 0.0
        %3556 = vmatprep.subr.mxu0 0.0
        %3557 = vmatpush2.msra.mxu0 0.0
        %3558 = vmatprep.subr.mxu0 0.0
        %3559 = vmatpush2.msra.mxu0 0.0
        %3560 = vmatprep.subr.mxu0 0.0
        %3561 = vmatpush2.msra.mxu0 0.0
        %3562 = vmatprep.subr.mxu0 0.0
        %3563 = vmatpush2.msra.mxu0 0.0
        %3564 = vmatprep.subr.mxu0 0.0
        %3565 = vmatpush2.msra.mxu0 0.0
        %3566 = vmatprep.subr.mxu0 0.0
        %3567 = vmatpush2.msra.mxu0 0.0
        %3568 = vmatprep.subr.mxu0 0.0
        %3569 = vmatpush2.msra.mxu0 0.0
        %3570 = vmatprep.subr.mxu0 0.0
        %3571 = vmatpush2.msra.mxu0 0.0
        %3572 = vmatprep.mubr.f32.mxu0 0.0
        %3573 = vmatmul.mubr.f32.gmra.mxu0 %v3503
        %v3574 = vpop.f32.mrf.mxu0
        %v3575 = vadd.f32 0.0, %v3574
        %v3576 = vpop.f32.mrf.mxu0
        %3577 = vmatprep.mubr.f32.mxu0 0.0
        %3578 = vmatmul.mubr.f32.gmra.mxu0 %v3506
        %v3579 = vpop.f32.mrf.mxu0
        %v3580 = vadd.f32 0.0, %v3579
        %v3581 = vpop.f32.mrf.mxu0
        %3582 = vdwg.mxu0
        %3583 = vrot.lane.b32.xlu0 %v2769, 112
        %v3584 = vpop.permute.xlu0 %3583
        %3585 = vrot.lane.b32.xlu0 %v2774, 112
        %v3586 = vpop.permute.xlu0 %3585
        %3587 = vrot.lane.b32.xlu0 %v2769, 80
        %v3588 = vpop.permute.xlu0 %3587
        %3589 = vrot.lane.b32.xlu0 %v2774, 80
        %v3590 = vpop.permute.xlu0 %3589
        %v3591 = vsel %vm550, %v3584, 0
        %v3593 = vsel %vm550, %v3586, 0
        %v3595 = vsel %vm550, %v3588, 0
        %v3597 = vsel %vm550, %v3590, 0
        %3599 = vmatprep.subr.mxu0 0.0
        %3600 = vmatpush1.xpose.msra.mxu0 0.0
        %3601 = vmatprep.subr.mxu0 0.0
        %3602 = vmatpush1.xpose.msra.mxu0 0.0
        %3603 = vmatprep.subr.mxu0 0.0
        %3604 = vmatpush1.xpose.msra.mxu0 0.0
        %3605 = vmatprep.subr.mxu0 0.0
        %3606 = vmatpush1.xpose.msra.mxu0 0.0
        %3607 = vmatprep.subr.mxu0 0.0
        %3608 = vmatpush1.xpose.msra.mxu0 0.0
        %3609 = vmatprep.subr.mxu0 0.0
        %3610 = vmatpush1.xpose.msra.mxu0 0.0
        %3611 = vmatprep.subr.mxu0 0.0
        %3612 = vmatpush1.xpose.msra.mxu0 0.0
        %3613 = vmatprep.subr.mxu0 0.0
        %3614 = vmatpush1.xpose.msra.mxu0 0.0
        %3615 = vmatprep.subr.mxu0 0.0
        %3616 = vmatpush1.xpose.msra.mxu0 0.0
        %3617 = vmatprep.subr.mxu0 0.0
        %3618 = vmatpush1.xpose.msra.mxu0 0.0
        %3619 = vmatprep.subr.mxu0 0.0
        %3620 = vmatpush1.xpose.msra.mxu0 0.0
        %3621 = vmatprep.subr.mxu0 0.0
        %3622 = vmatpush1.xpose.msra.mxu0 0.0
        %3623 = vmatprep.subr.mxu0 0.0
        %3624 = vmatpush1.xpose.msra.mxu0 0.0
        %3625 = vmatprep.subr.mxu0 0.0
        %3626 = vmatpush1.xpose.msra.mxu0 0.0
        %3627 = vmatprep.subr.mxu0 0.0
        %3628 = vmatpush1.xpose.msra.mxu0 %v3597
        %3629 = vmatprep.subr.mxu0 0.0
        %3630 = vmatpush1.xpose.msra.mxu0 %v3595
        %3631 = vmatprep.subr.mxu0 0.0
        %3632 = vmatpush2.xpose.msra.mxu0 0.0
        %3633 = vmatprep.subr.mxu0 0.0
        %3634 = vmatpush2.xpose.msra.mxu0 0.0
        %3635 = vmatprep.subr.mxu0 0.0
        %3636 = vmatpush2.xpose.msra.mxu0 0.0
        %3637 = vmatprep.subr.mxu0 0.0
        %3638 = vmatpush2.xpose.msra.mxu0 0.0
        %3639 = vmatprep.subr.mxu0 0.0
        %3640 = vmatpush2.xpose.msra.mxu0 0.0
        %3641 = vmatprep.subr.mxu0 0.0
        %3642 = vmatpush2.xpose.msra.mxu0 0.0
        %3643 = vmatprep.subr.mxu0 0.0
        %3644 = vmatpush2.xpose.msra.mxu0 0.0
        %3645 = vmatprep.subr.mxu0 0.0
        %3646 = vmatpush2.xpose.msra.mxu0 0.0
        %3647 = vmatprep.subr.mxu0 0.0
        %3648 = vmatpush2.xpose.msra.mxu0 0.0
        %3649 = vmatprep.subr.mxu0 0.0
        %3650 = vmatpush2.xpose.msra.mxu0 0.0
        %3651 = vmatprep.subr.mxu0 0.0
        %3652 = vmatpush2.xpose.msra.mxu0 0.0
        %3653 = vmatprep.subr.mxu0 0.0
        %3654 = vmatpush2.xpose.msra.mxu0 0.0
        %3655 = vmatprep.subr.mxu0 0.0
        %3656 = vmatpush2.xpose.msra.mxu0 0.0
        %3657 = vmatprep.subr.mxu0 0.0
        %3658 = vmatpush2.xpose.msra.mxu0 0.0
        %3659 = vmatprep.subr.mxu0 0.0
        %3660 = vmatpush2.xpose.msra.mxu0 0.0
        %3661 = vmatprep.subr.mxu0 0.0
        %3662 = vmatpush2.xpose.msra.mxu0 0.0
        %3663 = vmatprep.mubr.f32.mxu0 0.0
        %3664 = vmatmul.mubr.f32.gmra.mxu0 %v3591
        %v3665 = vpop.f32.mrf.mxu0
        %v3666 = vadd.f32 0.0, %v3665
        %v3667 = vpop.f32.mrf.mxu0
        %3668 = vmatprep.mubr.f32.mxu0 0.0
        %3669 = vmatmul.mubr.f32.gmra.mxu0 %v3593
        %v3670 = vpop.f32.mrf.mxu0
        %v3671 = vadd.f32 0.0, %v3670
        %v3672 = vpop.f32.mrf.mxu0
        %3673 = vdwg.mxu0
        %3674 = vrot.lane.b32.xlu0 %v2779, 112
        %v3675 = vpop.permute.xlu0 %3674
        %3676 = vrot.lane.b32.xlu0 %v2784, 112
        %v3677 = vpop.permute.xlu0 %3676
        %3678 = vrot.lane.b32.xlu0 %v2779, 80
        %v3679 = vpop.permute.xlu0 %3678
        %3680 = vrot.lane.b32.xlu0 %v2784, 80
        %v3681 = vpop.permute.xlu0 %3680
        %v3682 = vsel %vm550, %v3675, 0
        %v3684 = vsel %vm550, %v3677, 0
        %v3686 = vsel %vm550, %v3679, 0
        %v3688 = vsel %vm550, %v3681, 0
        %3690 = vmatprep.subr.mxu0 0.0
        %3691 = vmatpush1.xpose.msra.mxu0 0.0
        %3692 = vmatprep.subr.mxu0 0.0
        %3693 = vmatpush1.xpose.msra.mxu0 0.0
        %3694 = vmatprep.subr.mxu0 0.0
        %3695 = vmatpush1.xpose.msra.mxu0 0.0
        %3696 = vmatprep.subr.mxu0 0.0
        %3697 = vmatpush1.xpose.msra.mxu0 0.0
        %3698 = vmatprep.subr.mxu0 0.0
        %3699 = vmatpush1.xpose.msra.mxu0 0.0
        %3700 = vmatprep.subr.mxu0 0.0
        %3701 = vmatpush1.xpose.msra.mxu0 0.0
        %3702 = vmatprep.subr.mxu0 0.0
        %3703 = vmatpush1.xpose.msra.mxu0 0.0
        %3704 = vmatprep.subr.mxu0 0.0
        %3705 = vmatpush1.xpose.msra.mxu0 0.0
        %3706 = vmatprep.subr.mxu0 0.0
        %3707 = vmatpush1.xpose.msra.mxu0 0.0
        %3708 = vmatprep.subr.mxu0 0.0
        %3709 = vmatpush1.xpose.msra.mxu0 0.0
        %3710 = vmatprep.subr.mxu0 0.0
        %3711 = vmatpush1.xpose.msra.mxu0 0.0
        %3712 = vmatprep.subr.mxu0 0.0
        %3713 = vmatpush1.xpose.msra.mxu0 0.0
        %3714 = vmatprep.subr.mxu0 0.0
        %3715 = vmatpush1.xpose.msra.mxu0 0.0
        %3716 = vmatprep.subr.mxu0 0.0
        %3717 = vmatpush1.xpose.msra.mxu0 0.0
        %3718 = vmatprep.subr.mxu0 0.0
        %3719 = vmatpush1.xpose.msra.mxu0 %v3688
        %3720 = vmatprep.subr.mxu0 0.0
        %3721 = vmatpush1.xpose.msra.mxu0 %v3686
        %3722 = vmatprep.subr.mxu0 0.0
        %3723 = vmatpush2.xpose.msra.mxu0 0.0
        %3724 = vmatprep.subr.mxu0 0.0
        %3725 = vmatpush2.xpose.msra.mxu0 0.0
        %3726 = vmatprep.subr.mxu0 0.0
        %3727 = vmatpush2.xpose.msra.mxu0 0.0
        %3728 = vmatprep.subr.mxu0 0.0
        %3729 = vmatpush2.xpose.msra.mxu0 0.0
        %3730 = vmatprep.subr.mxu0 0.0
        %3731 = vmatpush2.xpose.msra.mxu0 0.0
        %3732 = vmatprep.subr.mxu0 0.0
        %3733 = vmatpush2.xpose.msra.mxu0 0.0
        %3734 = vmatprep.subr.mxu0 0.0
        %3735 = vmatpush2.xpose.msra.mxu0 0.0
        %3736 = vmatprep.subr.mxu0 0.0
        %3737 = vmatpush2.xpose.msra.mxu0 0.0
        %3738 = vmatprep.subr.mxu0 0.0
        %3739 = vmatpush2.xpose.msra.mxu0 0.0
        %3740 = vmatprep.subr.mxu0 0.0
        %3741 = vmatpush2.xpose.msra.mxu0 0.0
        %3742 = vmatprep.subr.mxu0 0.0
        %3743 = vmatpush2.xpose.msra.mxu0 0.0
        %3744 = vmatprep.subr.mxu0 0.0
        %3745 = vmatpush2.xpose.msra.mxu0 0.0
        %3746 = vmatprep.subr.mxu0 0.0
        %3747 = vmatpush2.xpose.msra.mxu0 0.0
        %3748 = vmatprep.subr.mxu0 0.0
        %3749 = vmatpush2.xpose.msra.mxu0 0.0
        %3750 = vmatprep.subr.mxu0 0.0
        %3751 = vmatpush2.xpose.msra.mxu0 0.0
        %3752 = vmatprep.subr.mxu0 0.0
        %3753 = vmatpush2.xpose.msra.mxu0 0.0
        %3754 = vmatprep.mubr.f32.mxu0 0.0
        %3755 = vmatmul.mubr.f32.gmra.mxu0 %v3682
        %v3756 = vpop.f32.mrf.mxu0
        %v3757 = vadd.f32 0.0, %v3756
        %v3758 = vpop.f32.mrf.mxu0
        %3759 = vmatprep.mubr.f32.mxu0 0.0
        %3760 = vmatmul.mubr.f32.gmra.mxu0 %v3684
        %v3761 = vpop.f32.mrf.mxu0
        %v3762 = vadd.f32 0.0, %v3761
        %v3763 = vpop.f32.mrf.mxu0
        %3764 = vdwg.mxu0
        %v3765 = vsel %vm723, %v3666, -inf
        %3766 = vmax.xlane.f32.xlu0 %v3765
        %v3767 = vpop.xlane.xlu0 %3766
        %v3768 = vsel %vm723, %v3671, -inf
        %3769 = vmax.xlane.f32.xlu0 %v3768
        %v3770 = vpop.xlane.xlu0 %3769
        %v3771 = vsel %vm723, %v3757, -inf
        %3772 = vmax.xlane.f32.xlu0 %v3771
        %v3773 = vpop.xlane.xlu0 %3772
        %v3774 = vsel %vm723, %v3762, -inf
        %3775 = vmax.xlane.f32.xlu0 %v3774
        %v3776 = vpop.xlane.xlu0 %3775
        %v3777 = vsub.f32 %v3666, %v3767
        %v3778 = vsub.f32 %v3671, %v3770
        %v3779 = vsub.f32 %v3757, %v3773
        %v3780 = vsub.f32 %v3762, %v3776
        %v3781 = vmul.f32 %v3777, 1.442695
        %v3782 = vpow.pop %v3781
        %v3783 = vmul.f32 %v3778, 1.442695
        %v3784 = vpow.pop %v3783
        %v3785 = vmul.f32 %v3779, 1.442695
        %v3786 = vpow.pop %v3785
        %v3787 = vmul.f32 %v3780, 1.442695
        %v3788 = vpow.pop %v3787
        %v3789 = vsel %vm723, %v3782, 0.0
        %3790 = vadd.xlane.f32.xlu0 %v3789
        %v3791 = vpop.xlane.xlu0 %3790
        %v3792 = vsel %vm723, %v3784, 0.0
        %3793 = vadd.xlane.f32.xlu0 %v3792
        %v3794 = vpop.xlane.xlu0 %3793
        %v3795 = vsel %vm723, %v3786, 0.0
        %3796 = vadd.xlane.f32.xlu0 %v3795
        %v3797 = vpop.xlane.xlu0 %3796
        %v3798 = vsel %vm723, %v3788, 0.0
        %3799 = vadd.xlane.f32.xlu0 %v3798
        %v3800 = vpop.xlane.xlu0 %3799
        %v3801 = vrcp.pop %v3791
        %v3802 = vrcp.pop %v3794
        %v3803 = vrcp.pop %v3797
        %v3804 = vrcp.pop %v3800
        %v3805 = vmul.f32 %v3782, %v3801
        %v3806 = vmul.f32 %v3784, %v3802
        %v3807 = vmul.f32 %v3786, %v3803
        %v3808 = vmul.f32 %v3788, %v3804
        %3809 = vrot.lane.b32.xlu0 %v2769, 48
        %v3810 = vpop.permute.xlu0 %3809
        %3811 = vrot.lane.b32.xlu0 %v2774, 48
        %v3812 = vpop.permute.xlu0 %3811
        %v3816 = vsel %vm723, %v3805, 0
        %v3819 = vsel %vm723, %v3806, 0
        %3821 = vmatprep.subr.mxu0 0.0
        %3822 = vmatpush1.msra.mxu0 0.0
        %3823 = vmatprep.subr.mxu0 0.0
        %3824 = vmatpush1.msra.mxu0 0.0
        %3825 = vmatprep.subr.mxu0 0.0
        %3826 = vmatpush1.msra.mxu0 0.0
        %3827 = vmatprep.subr.mxu0 0.0
        %3828 = vmatpush1.msra.mxu0 0.0
        %3829 = vmatprep.subr.mxu0 0.0
        %3830 = vmatpush1.msra.mxu0 0.0
        %3831 = vmatprep.subr.mxu0 0.0
        %3832 = vmatpush1.msra.mxu0 0.0
        %3833 = vmatprep.subr.mxu0 0.0
        %3834 = vmatpush1.msra.mxu0 0.0
        %3835 = vmatprep.subr.mxu0 0.0
        %3836 = vmatpush1.msra.mxu0 0.0
        %3837 = vmatprep.subr.mxu0 0.0
        %3838 = vmatpush1.msra.mxu0 0.0
        %3839 = vmatprep.subr.mxu0 0.0
        %3840 = vmatpush1.msra.mxu0 0.0
        %3841 = vmatprep.subr.mxu0 0.0
        %3842 = vmatpush1.msra.mxu0 0.0
        %3843 = vmatprep.subr.mxu0 0.0
        %3844 = vmatpush1.msra.mxu0 0.0
        %3845 = vmatprep.subr.mxu0 0.0
        %3846 = vmatpush1.msra.mxu0 0.0
        %3847 = vmatprep.subr.mxu0 0.0
        %3848 = vmatpush1.msra.mxu0 0.0
        %3849 = vmatprep.subr.mxu0 0.0
        %3850 = vmatpush1.msra.mxu0 %v3812
        %3851 = vmatprep.subr.mxu0 0.0
        %3852 = vmatpush1.msra.mxu0 %v3810
        %3853 = vmatprep.subr.mxu0 0.0
        %3854 = vmatpush2.msra.mxu0 0.0
        %3855 = vmatprep.subr.mxu0 0.0
        %3856 = vmatpush2.msra.mxu0 0.0
        %3857 = vmatprep.subr.mxu0 0.0
        %3858 = vmatpush2.msra.mxu0 0.0
        %3859 = vmatprep.subr.mxu0 0.0
        %3860 = vmatpush2.msra.mxu0 0.0
        %3861 = vmatprep.subr.mxu0 0.0
        %3862 = vmatpush2.msra.mxu0 0.0
        %3863 = vmatprep.subr.mxu0 0.0
        %3864 = vmatpush2.msra.mxu0 0.0
        %3865 = vmatprep.subr.mxu0 0.0
        %3866 = vmatpush2.msra.mxu0 0.0
        %3867 = vmatprep.subr.mxu0 0.0
        %3868 = vmatpush2.msra.mxu0 0.0
        %3869 = vmatprep.subr.mxu0 0.0
        %3870 = vmatpush2.msra.mxu0 0.0
        %3871 = vmatprep.subr.mxu0 0.0
        %3872 = vmatpush2.msra.mxu0 0.0
        %3873 = vmatprep.subr.mxu0 0.0
        %3874 = vmatpush2.msra.mxu0 0.0
        %3875 = vmatprep.subr.mxu0 0.0
        %3876 = vmatpush2.msra.mxu0 0.0
        %3877 = vmatprep.subr.mxu0 0.0
        %3878 = vmatpush2.msra.mxu0 0.0
        %3879 = vmatprep.subr.mxu0 0.0
        %3880 = vmatpush2.msra.mxu0 0.0
        %3881 = vmatprep.subr.mxu0 0.0
        %3882 = vmatpush2.msra.mxu0 0.0
        %3883 = vmatprep.subr.mxu0 0.0
        %3884 = vmatpush2.msra.mxu0 0.0
        %3885 = vmatprep.mubr.f32.mxu0 0.0
        %3886 = vmatmul.mubr.f32.gmra.mxu0 %v3816
        %v3887 = vpop.f32.mrf.mxu0
        %v3888 = vadd.f32 0.0, %v3887
        %v3889 = vpop.f32.mrf.mxu0
        %3890 = vmatprep.mubr.f32.mxu0 0.0
        %3891 = vmatmul.mubr.f32.gmra.mxu0 %v3819
        %v3892 = vpop.f32.mrf.mxu0
        %v3893 = vadd.f32 0.0, %v3892
        %v3894 = vpop.f32.mrf.mxu0
        %3895 = vdwg.mxu0
        %3896 = vrot.lane.b32.xlu0 %v2779, 48
        %v3897 = vpop.permute.xlu0 %3896
        %3898 = vrot.lane.b32.xlu0 %v2784, 48
        %v3899 = vpop.permute.xlu0 %3898
        %v3903 = vsel %vm723, %v3807, 0
        %v3906 = vsel %vm723, %v3808, 0
        %3908 = vmatprep.subr.mxu0 0.0
        %3909 = vmatpush1.msra.mxu0 0.0
        %3910 = vmatprep.subr.mxu0 0.0
        %3911 = vmatpush1.msra.mxu0 0.0
        %3912 = vmatprep.subr.mxu0 0.0
        %3913 = vmatpush1.msra.mxu0 0.0
        %3914 = vmatprep.subr.mxu0 0.0
        %3915 = vmatpush1.msra.mxu0 0.0
        %3916 = vmatprep.subr.mxu0 0.0
        %3917 = vmatpush1.msra.mxu0 0.0
        %3918 = vmatprep.subr.mxu0 0.0
        %3919 = vmatpush1.msra.mxu0 0.0
        %3920 = vmatprep.subr.mxu0 0.0
        %3921 = vmatpush1.msra.mxu0 0.0
        %3922 = vmatprep.subr.mxu0 0.0
        %3923 = vmatpush1.msra.mxu0 0.0
        %3924 = vmatprep.subr.mxu0 0.0
        %3925 = vmatpush1.msra.mxu0 0.0
        %3926 = vmatprep.subr.mxu0 0.0
        %3927 = vmatpush1.msra.mxu0 0.0
        %3928 = vmatprep.subr.mxu0 0.0
        %3929 = vmatpush1.msra.mxu0 0.0
        %3930 = vmatprep.subr.mxu0 0.0
        %3931 = vmatpush1.msra.mxu0 0.0
        %3932 = vmatprep.subr.mxu0 0.0
        %3933 = vmatpush1.msra.mxu0 0.0
        %3934 = vmatprep.subr.mxu0 0.0
        %3935 = vmatpush1.msra.mxu0 0.0
        %3936 = vmatprep.subr.mxu0 0.0
        %3937 = vmatpush1.msra.mxu0 %v3899
        %3938 = vmatprep.subr.mxu0 0.0
        %3939 = vmatpush1.msra.mxu0 %v3897
        %3940 = vmatprep.subr.mxu0 0.0
        %3941 = vmatpush2.msra.mxu0 0.0
        %3942 = vmatprep.subr.mxu0 0.0
        %3943 = vmatpush2.msra.mxu0 0.0
        %3944 = vmatprep.subr.mxu0 0.0
        %3945 = vmatpush2.msra.mxu0 0.0
        %3946 = vmatprep.subr.mxu0 0.0
        %3947 = vmatpush2.msra.mxu0 0.0
        %3948 = vmatprep.subr.mxu0 0.0
        %3949 = vmatpush2.msra.mxu0 0.0
        %3950 = vmatprep.subr.mxu0 0.0
        %3951 = vmatpush2.msra.mxu0 0.0
        %3952 = vmatprep.subr.mxu0 0.0
        %3953 = vmatpush2.msra.mxu0 0.0
        %3954 = vmatprep.subr.mxu0 0.0
        %3955 = vmatpush2.msra.mxu0 0.0
        %3956 = vmatprep.subr.mxu0 0.0
        %3957 = vmatpush2.msra.mxu0 0.0
        %3958 = vmatprep.subr.mxu0 0.0
        %3959 = vmatpush2.msra.mxu0 0.0
        %3960 = vmatprep.subr.mxu0 0.0
        %3961 = vmatpush2.msra.mxu0 0.0
        %3962 = vmatprep.subr.mxu0 0.0
        %3963 = vmatpush2.msra.mxu0 0.0
        %3964 = vmatprep.subr.mxu0 0.0
        %3965 = vmatpush2.msra.mxu0 0.0
        %3966 = vmatprep.subr.mxu0 0.0
        %3967 = vmatpush2.msra.mxu0 0.0
        %3968 = vmatprep.subr.mxu0 0.0
        %3969 = vmatpush2.msra.mxu0 0.0
        %3970 = vmatprep.subr.mxu0 0.0
        %3971 = vmatpush2.msra.mxu0 0.0
        %3972 = vmatprep.mubr.f32.mxu0 0.0
        %3973 = vmatmul.mubr.f32.gmra.mxu0 %v3903
        %v3974 = vpop.f32.mrf.mxu0
        %v3975 = vadd.f32 0.0, %v3974
        %v3976 = vpop.f32.mrf.mxu0
        %3977 = vmatprep.mubr.f32.mxu0 0.0
        %3978 = vmatmul.mubr.f32.gmra.mxu0 %v3906
        %v3979 = vpop.f32.mrf.mxu0
        %v3980 = vadd.f32 0.0, %v3979
        %v3981 = vpop.f32.mrf.mxu0
        %3982 = vdwg.mxu0
        %3983 = vrot.lane.b32.xlu0 %v2769, 104
        %v3984 = vpop.permute.xlu0 %3983
        %3985 = vrot.lane.b32.xlu0 %v2774, 104
        %v3986 = vpop.permute.xlu0 %3985
        %3987 = vrot.lane.b32.xlu0 %v2769, 72
        %v3988 = vpop.permute.xlu0 %3987
        %3989 = vrot.lane.b32.xlu0 %v2774, 72
        %v3990 = vpop.permute.xlu0 %3989
        %v3991 = vsel %vm550, %v3984, 0
        %v3993 = vsel %vm550, %v3986, 0
        %v3995 = vsel %vm550, %v3988, 0
        %v3997 = vsel %vm550, %v3990, 0
        %3999 = vmatprep.subr.mxu0 0.0
        %4000 = vmatpush1.xpose.msra.mxu0 0.0
        %4001 = vmatprep.subr.mxu0 0.0
        %4002 = vmatpush1.xpose.msra.mxu0 0.0
        %4003 = vmatprep.subr.mxu0 0.0
        %4004 = vmatpush1.xpose.msra.mxu0 0.0
        %4005 = vmatprep.subr.mxu0 0.0
        %4006 = vmatpush1.xpose.msra.mxu0 0.0
        %4007 = vmatprep.subr.mxu0 0.0
        %4008 = vmatpush1.xpose.msra.mxu0 0.0
        %4009 = vmatprep.subr.mxu0 0.0
        %4010 = vmatpush1.xpose.msra.mxu0 0.0
        %4011 = vmatprep.subr.mxu0 0.0
        %4012 = vmatpush1.xpose.msra.mxu0 0.0
        %4013 = vmatprep.subr.mxu0 0.0
        %4014 = vmatpush1.xpose.msra.mxu0 0.0
        %4015 = vmatprep.subr.mxu0 0.0
        %4016 = vmatpush1.xpose.msra.mxu0 0.0
        %4017 = vmatprep.subr.mxu0 0.0
        %4018 = vmatpush1.xpose.msra.mxu0 0.0
        %4019 = vmatprep.subr.mxu0 0.0
        %4020 = vmatpush1.xpose.msra.mxu0 0.0
        %4021 = vmatprep.subr.mxu0 0.0
        %4022 = vmatpush1.xpose.msra.mxu0 0.0
        %4023 = vmatprep.subr.mxu0 0.0
        %4024 = vmatpush1.xpose.msra.mxu0 0.0
        %4025 = vmatprep.subr.mxu0 0.0
        %4026 = vmatpush1.xpose.msra.mxu0 0.0
        %4027 = vmatprep.subr.mxu0 0.0
        %4028 = vmatpush1.xpose.msra.mxu0 %v3997
        %4029 = vmatprep.subr.mxu0 0.0
        %4030 = vmatpush1.xpose.msra.mxu0 %v3995
        %4031 = vmatprep.subr.mxu0 0.0
        %4032 = vmatpush2.xpose.msra.mxu0 0.0
        %4033 = vmatprep.subr.mxu0 0.0
        %4034 = vmatpush2.xpose.msra.mxu0 0.0
        %4035 = vmatprep.subr.mxu0 0.0
        %4036 = vmatpush2.xpose.msra.mxu0 0.0
        %4037 = vmatprep.subr.mxu0 0.0
        %4038 = vmatpush2.xpose.msra.mxu0 0.0
        %4039 = vmatprep.subr.mxu0 0.0
        %4040 = vmatpush2.xpose.msra.mxu0 0.0
        %4041 = vmatprep.subr.mxu0 0.0
        %4042 = vmatpush2.xpose.msra.mxu0 0.0
        %4043 = vmatprep.subr.mxu0 0.0
        %4044 = vmatpush2.xpose.msra.mxu0 0.0
        %4045 = vmatprep.subr.mxu0 0.0
        %4046 = vmatpush2.xpose.msra.mxu0 0.0
        %4047 = vmatprep.subr.mxu0 0.0
        %4048 = vmatpush2.xpose.msra.mxu0 0.0
        %4049 = vmatprep.subr.mxu0 0.0
        %4050 = vmatpush2.xpose.msra.mxu0 0.0
        %4051 = vmatprep.subr.mxu0 0.0
        %4052 = vmatpush2.xpose.msra.mxu0 0.0
        %4053 = vmatprep.subr.mxu0 0.0
        %4054 = vmatpush2.xpose.msra.mxu0 0.0
        %4055 = vmatprep.subr.mxu0 0.0
        %4056 = vmatpush2.xpose.msra.mxu0 0.0
        %4057 = vmatprep.subr.mxu0 0.0
        %4058 = vmatpush2.xpose.msra.mxu0 0.0
        %4059 = vmatprep.subr.mxu0 0.0
        %4060 = vmatpush2.xpose.msra.mxu0 0.0
        %4061 = vmatprep.subr.mxu0 0.0
        %4062 = vmatpush2.xpose.msra.mxu0 0.0
        %4063 = vmatprep.mubr.f32.mxu0 0.0
        %4064 = vmatmul.mubr.f32.gmra.mxu0 %v3991
        %v4065 = vpop.f32.mrf.mxu0
        %v4066 = vadd.f32 0.0, %v4065
        %v4067 = vpop.f32.mrf.mxu0
        %4068 = vmatprep.mubr.f32.mxu0 0.0
        %4069 = vmatmul.mubr.f32.gmra.mxu0 %v3993
        %v4070 = vpop.f32.mrf.mxu0
        %v4071 = vadd.f32 0.0, %v4070
        %v4072 = vpop.f32.mrf.mxu0
        %4073 = vdwg.mxu0
        %4074 = vrot.lane.b32.xlu0 %v2779, 104
        %v4075 = vpop.permute.xlu0 %4074
        %4076 = vrot.lane.b32.xlu0 %v2784, 104
        %v4077 = vpop.permute.xlu0 %4076
        %4078 = vrot.lane.b32.xlu0 %v2779, 72
        %v4079 = vpop.permute.xlu0 %4078
        %4080 = vrot.lane.b32.xlu0 %v2784, 72
        %v4081 = vpop.permute.xlu0 %4080
        %v4082 = vsel %vm550, %v4075, 0
        %v4084 = vsel %vm550, %v4077, 0
        %v4086 = vsel %vm550, %v4079, 0
        %v4088 = vsel %vm550, %v4081, 0
        %4090 = vmatprep.subr.mxu0 0.0
        %4091 = vmatpush1.xpose.msra.mxu0 0.0
        %4092 = vmatprep.subr.mxu0 0.0
        %4093 = vmatpush1.xpose.msra.mxu0 0.0
        %4094 = vmatprep.subr.mxu0 0.0
        %4095 = vmatpush1.xpose.msra.mxu0 0.0
        %4096 = vmatprep.subr.mxu0 0.0
        %4097 = vmatpush1.xpose.msra.mxu0 0.0
        %4098 = vmatprep.subr.mxu0 0.0
        %4099 = vmatpush1.xpose.msra.mxu0 0.0
        %4100 = vmatprep.subr.mxu0 0.0
        %4101 = vmatpush1.xpose.msra.mxu0 0.0
        %4102 = vmatprep.subr.mxu0 0.0
        %4103 = vmatpush1.xpose.msra.mxu0 0.0
        %4104 = vmatprep.subr.mxu0 0.0
        %4105 = vmatpush1.xpose.msra.mxu0 0.0
        %4106 = vmatprep.subr.mxu0 0.0
        %4107 = vmatpush1.xpose.msra.mxu0 0.0
        %4108 = vmatprep.subr.mxu0 0.0
        %4109 = vmatpush1.xpose.msra.mxu0 0.0
        %4110 = vmatprep.subr.mxu0 0.0
        %4111 = vmatpush1.xpose.msra.mxu0 0.0
        %4112 = vmatprep.subr.mxu0 0.0
        %4113 = vmatpush1.xpose.msra.mxu0 0.0
        %4114 = vmatprep.subr.mxu0 0.0
        %4115 = vmatpush1.xpose.msra.mxu0 0.0
        %4116 = vmatprep.subr.mxu0 0.0
        %4117 = vmatpush1.xpose.msra.mxu0 0.0
        %4118 = vmatprep.subr.mxu0 0.0
        %4119 = vmatpush1.xpose.msra.mxu0 %v4088
        %4120 = vmatprep.subr.mxu0 0.0
        %4121 = vmatpush1.xpose.msra.mxu0 %v4086
        %4122 = vmatprep.subr.mxu0 0.0
        %4123 = vmatpush2.xpose.msra.mxu0 0.0
        %4124 = vmatprep.subr.mxu0 0.0
        %4125 = vmatpush2.xpose.msra.mxu0 0.0
        %4126 = vmatprep.subr.mxu0 0.0
        %4127 = vmatpush2.xpose.msra.mxu0 0.0
        %4128 = vmatprep.subr.mxu0 0.0
        %4129 = vmatpush2.xpose.msra.mxu0 0.0
        %4130 = vmatprep.subr.mxu0 0.0
        %4131 = vmatpush2.xpose.msra.mxu0 0.0
        %4132 = vmatprep.subr.mxu0 0.0
        %4133 = vmatpush2.xpose.msra.mxu0 0.0
        %4134 = vmatprep.subr.mxu0 0.0
        %4135 = vmatpush2.xpose.msra.mxu0 0.0
        %4136 = vmatprep.subr.mxu0 0.0
        %4137 = vmatpush2.xpose.msra.mxu0 0.0
        %4138 = vmatprep.subr.mxu0 0.0
        %4139 = vmatpush2.xpose.msra.mxu0 0.0
        %4140 = vmatprep.subr.mxu0 0.0
        %4141 = vmatpush2.xpose.msra.mxu0 0.0
        %4142 = vmatprep.subr.mxu0 0.0
        %4143 = vmatpush2.xpose.msra.mxu0 0.0
        %4144 = vmatprep.subr.mxu0 0.0
        %4145 = vmatpush2.xpose.msra.mxu0 0.0
        %4146 = vmatprep.subr.mxu0 0.0
        %4147 = vmatpush2.xpose.msra.mxu0 0.0
        %4148 = vmatprep.subr.mxu0 0.0
        %4149 = vmatpush2.xpose.msra.mxu0 0.0
        %4150 = vmatprep.subr.mxu0 0.0
        %4151 = vmatpush2.xpose.msra.mxu0 0.0
        %4152 = vmatprep.subr.mxu0 0.0
        %4153 = vmatpush2.xpose.msra.mxu0 0.0
        %4154 = vmatprep.mubr.f32.mxu0 0.0
        %4155 = vmatmul.mubr.f32.gmra.mxu0 %v4082
        %v4156 = vpop.f32.mrf.mxu0
        %v4157 = vadd.f32 0.0, %v4156
        %v4158 = vpop.f32.mrf.mxu0
        %4159 = vmatprep.mubr.f32.mxu0 0.0
        %4160 = vmatmul.mubr.f32.gmra.mxu0 %v4084
        %v4161 = vpop.f32.mrf.mxu0
        %v4162 = vadd.f32 0.0, %v4161
        %v4163 = vpop.f32.mrf.mxu0
        %4164 = vdwg.mxu0
        %v4165 = vsel %vm723, %v4066, -inf
        %4166 = vmax.xlane.f32.xlu0 %v4165
        %v4167 = vpop.xlane.xlu0 %4166
        %v4168 = vsel %vm723, %v4071, -inf
        %4169 = vmax.xlane.f32.xlu0 %v4168
        %v4170 = vpop.xlane.xlu0 %4169
        %v4171 = vsel %vm723, %v4157, -inf
        %4172 = vmax.xlane.f32.xlu0 %v4171
        %v4173 = vpop.xlane.xlu0 %4172
        %v4174 = vsel %vm723, %v4162, -inf
        %4175 = vmax.xlane.f32.xlu0 %v4174
        %v4176 = vpop.xlane.xlu0 %4175
        %v4177 = vsub.f32 %v4066, %v4167
        %v4178 = vsub.f32 %v4071, %v4170
        %v4179 = vsub.f32 %v4157, %v4173
        %v4180 = vsub.f32 %v4162, %v4176
        %v4181 = vmul.f32 %v4177, 1.442695
        %v4182 = vpow.pop %v4181
        %v4183 = vmul.f32 %v4178, 1.442695
        %v4184 = vpow.pop %v4183
        %v4185 = vmul.f32 %v4179, 1.442695
        %v4186 = vpow.pop %v4185
        %v4187 = vmul.f32 %v4180, 1.442695
        %v4188 = vpow.pop %v4187
        %v4189 = vsel %vm723, %v4182, 0.0
        %4190 = vadd.xlane.f32.xlu0 %v4189
        %v4191 = vpop.xlane.xlu0 %4190
        %v4192 = vsel %vm723, %v4184, 0.0
        %4193 = vadd.xlane.f32.xlu0 %v4192
        %v4194 = vpop.xlane.xlu0 %4193
        %v4195 = vsel %vm723, %v4186, 0.0
        %4196 = vadd.xlane.f32.xlu0 %v4195
        %v4197 = vpop.xlane.xlu0 %4196
        %v4198 = vsel %vm723, %v4188, 0.0
        %4199 = vadd.xlane.f32.xlu0 %v4198
        %v4200 = vpop.xlane.xlu0 %4199
        %v4201 = vrcp.pop %v4191
        %v4202 = vrcp.pop %v4194
        %v4203 = vrcp.pop %v4197
        %v4204 = vrcp.pop %v4200
        %v4205 = vmul.f32 %v4182, %v4201
        %v4206 = vmul.f32 %v4184, %v4202
        %v4207 = vmul.f32 %v4186, %v4203
        %v4208 = vmul.f32 %v4188, %v4204
        %4209 = vrot.lane.b32.xlu0 %v2769, 40
        %v4210 = vpop.permute.xlu0 %4209
        %4211 = vrot.lane.b32.xlu0 %v2774, 40
        %v4212 = vpop.permute.xlu0 %4211
        %v4216 = vsel %vm723, %v4205, 0
        %v4219 = vsel %vm723, %v4206, 0
        %4221 = vmatprep.subr.mxu0 0.0
        %4222 = vmatpush1.msra.mxu0 0.0
        %4223 = vmatprep.subr.mxu0 0.0
        %4224 = vmatpush1.msra.mxu0 0.0
        %4225 = vmatprep.subr.mxu0 0.0
        %4226 = vmatpush1.msra.mxu0 0.0
        %4227 = vmatprep.subr.mxu0 0.0
        %4228 = vmatpush1.msra.mxu0 0.0
        %4229 = vmatprep.subr.mxu0 0.0
        %4230 = vmatpush1.msra.mxu0 0.0
        %4231 = vmatprep.subr.mxu0 0.0
        %4232 = vmatpush1.msra.mxu0 0.0
        %4233 = vmatprep.subr.mxu0 0.0
        %4234 = vmatpush1.msra.mxu0 0.0
        %4235 = vmatprep.subr.mxu0 0.0
        %4236 = vmatpush1.msra.mxu0 0.0
        %4237 = vmatprep.subr.mxu0 0.0
        %4238 = vmatpush1.msra.mxu0 0.0
        %4239 = vmatprep.subr.mxu0 0.0
        %4240 = vmatpush1.msra.mxu0 0.0
        %4241 = vmatprep.subr.mxu0 0.0
        %4242 = vmatpush1.msra.mxu0 0.0
        %4243 = vmatprep.subr.mxu0 0.0
        %4244 = vmatpush1.msra.mxu0 0.0
        %4245 = vmatprep.subr.mxu0 0.0
        %4246 = vmatpush1.msra.mxu0 0.0
        %4247 = vmatprep.subr.mxu0 0.0
        %4248 = vmatpush1.msra.mxu0 0.0
        %4249 = vmatprep.subr.mxu0 0.0
        %4250 = vmatpush1.msra.mxu0 %v4212
        %4251 = vmatprep.subr.mxu0 0.0
        %4252 = vmatpush1.msra.mxu0 %v4210
        %4253 = vmatprep.subr.mxu0 0.0
        %4254 = vmatpush2.msra.mxu0 0.0
        %4255 = vmatprep.subr.mxu0 0.0
        %4256 = vmatpush2.msra.mxu0 0.0
        %4257 = vmatprep.subr.mxu0 0.0
        %4258 = vmatpush2.msra.mxu0 0.0
        %4259 = vmatprep.subr.mxu0 0.0
        %4260 = vmatpush2.msra.mxu0 0.0
        %4261 = vmatprep.subr.mxu0 0.0
        %4262 = vmatpush2.msra.mxu0 0.0
        %4263 = vmatprep.subr.mxu0 0.0
        %4264 = vmatpush2.msra.mxu0 0.0
        %4265 = vmatprep.subr.mxu0 0.0
        %4266 = vmatpush2.msra.mxu0 0.0
        %4267 = vmatprep.subr.mxu0 0.0
        %4268 = vmatpush2.msra.mxu0 0.0
        %4269 = vmatprep.subr.mxu0 0.0
        %4270 = vmatpush2.msra.mxu0 0.0
        %4271 = vmatprep.subr.mxu0 0.0
        %4272 = vmatpush2.msra.mxu0 0.0
        %4273 = vmatprep.subr.mxu0 0.0
        %4274 = vmatpush2.msra.mxu0 0.0
        %4275 = vmatprep.subr.mxu0 0.0
        %4276 = vmatpush2.msra.mxu0 0.0
        %4277 = vmatprep.subr.mxu0 0.0
        %4278 = vmatpush2.msra.mxu0 0.0
        %4279 = vmatprep.subr.mxu0 0.0
        %4280 = vmatpush2.msra.mxu0 0.0
        %4281 = vmatprep.subr.mxu0 0.0
        %4282 = vmatpush2.msra.mxu0 0.0
        %4283 = vmatprep.subr.mxu0 0.0
        %4284 = vmatpush2.msra.mxu0 0.0
        %4285 = vmatprep.mubr.f32.mxu0 0.0
        %4286 = vmatmul.mubr.f32.gmra.mxu0 %v4216
        %v4287 = vpop.f32.mrf.mxu0
        %v4288 = vadd.f32 0.0, %v4287
        %v4289 = vpop.f32.mrf.mxu0
        %4290 = vmatprep.mubr.f32.mxu0 0.0
        %4291 = vmatmul.mubr.f32.gmra.mxu0 %v4219
        %v4292 = vpop.f32.mrf.mxu0
        %v4293 = vadd.f32 0.0, %v4292
        %v4294 = vpop.f32.mrf.mxu0
        %4295 = vdwg.mxu0
        %4296 = vrot.lane.b32.xlu0 %v2779, 40
        %v4297 = vpop.permute.xlu0 %4296
        %4298 = vrot.lane.b32.xlu0 %v2784, 40
        %v4299 = vpop.permute.xlu0 %4298
        %v4303 = vsel %vm723, %v4207, 0
        %v4306 = vsel %vm723, %v4208, 0
        %4308 = vmatprep.subr.mxu0 0.0
        %4309 = vmatpush1.msra.mxu0 0.0
        %4310 = vmatprep.subr.mxu0 0.0
        %4311 = vmatpush1.msra.mxu0 0.0
        %4312 = vmatprep.subr.mxu0 0.0
        %4313 = vmatpush1.msra.mxu0 0.0
        %4314 = vmatprep.subr.mxu0 0.0
        %4315 = vmatpush1.msra.mxu0 0.0
        %4316 = vmatprep.subr.mxu0 0.0
        %4317 = vmatpush1.msra.mxu0 0.0
        %4318 = vmatprep.subr.mxu0 0.0
        %4319 = vmatpush1.msra.mxu0 0.0
        %4320 = vmatprep.subr.mxu0 0.0
        %4321 = vmatpush1.msra.mxu0 0.0
        %4322 = vmatprep.subr.mxu0 0.0
        %4323 = vmatpush1.msra.mxu0 0.0
        %4324 = vmatprep.subr.mxu0 0.0
        %4325 = vmatpush1.msra.mxu0 0.0
        %4326 = vmatprep.subr.mxu0 0.0
        %4327 = vmatpush1.msra.mxu0 0.0
        %4328 = vmatprep.subr.mxu0 0.0
        %4329 = vmatpush1.msra.mxu0 0.0
        %4330 = vmatprep.subr.mxu0 0.0
        %4331 = vmatpush1.msra.mxu0 0.0
        %4332 = vmatprep.subr.mxu0 0.0
        %4333 = vmatpush1.msra.mxu0 0.0
        %4334 = vmatprep.subr.mxu0 0.0
        %4335 = vmatpush1.msra.mxu0 0.0
        %4336 = vmatprep.subr.mxu0 0.0
        %4337 = vmatpush1.msra.mxu0 %v4299
        %4338 = vmatprep.subr.mxu0 0.0
        %4339 = vmatpush1.msra.mxu0 %v4297
        %4340 = vmatprep.subr.mxu0 0.0
        %4341 = vmatpush2.msra.mxu0 0.0
        %4342 = vmatprep.subr.mxu0 0.0
        %4343 = vmatpush2.msra.mxu0 0.0
        %4344 = vmatprep.subr.mxu0 0.0
        %4345 = vmatpush2.msra.mxu0 0.0
        %4346 = vmatprep.subr.mxu0 0.0
        %4347 = vmatpush2.msra.mxu0 0.0
        %4348 = vmatprep.subr.mxu0 0.0
        %4349 = vmatpush2.msra.mxu0 0.0
        %4350 = vmatprep.subr.mxu0 0.0
        %4351 = vmatpush2.msra.mxu0 0.0
        %4352 = vmatprep.subr.mxu0 0.0
        %4353 = vmatpush2.msra.mxu0 0.0
        %4354 = vmatprep.subr.mxu0 0.0
        %4355 = vmatpush2.msra.mxu0 0.0
        %4356 = vmatprep.subr.mxu0 0.0
        %4357 = vmatpush2.msra.mxu0 0.0
        %4358 = vmatprep.subr.mxu0 0.0
        %4359 = vmatpush2.msra.mxu0 0.0
        %4360 = vmatprep.subr.mxu0 0.0
        %4361 = vmatpush2.msra.mxu0 0.0
        %4362 = vmatprep.subr.mxu0 0.0
        %4363 = vmatpush2.msra.mxu0 0.0
        %4364 = vmatprep.subr.mxu0 0.0
        %4365 = vmatpush2.msra.mxu0 0.0
        %4366 = vmatprep.subr.mxu0 0.0
        %4367 = vmatpush2.msra.mxu0 0.0
        %4368 = vmatprep.subr.mxu0 0.0
        %4369 = vmatpush2.msra.mxu0 0.0
        %4370 = vmatprep.subr.mxu0 0.0
        %4371 = vmatpush2.msra.mxu0 0.0
        %4372 = vmatprep.mubr.f32.mxu0 0.0
        %4373 = vmatmul.mubr.f32.gmra.mxu0 %v4303
        %v4374 = vpop.f32.mrf.mxu0
        %v4375 = vadd.f32 0.0, %v4374
        %v4376 = vpop.f32.mrf.mxu0
        %4377 = vmatprep.mubr.f32.mxu0 0.0
        %4378 = vmatmul.mubr.f32.gmra.mxu0 %v4306
        %v4379 = vpop.f32.mrf.mxu0
        %v4380 = vadd.f32 0.0, %v4379
        %v4381 = vpop.f32.mrf.mxu0
        %4382 = vdwg.mxu0
        %4387 = vrot.lane.b32.xlu0 %v3488, 8
        %v4388 = vpop.permute.xlu0 %4387
        %4389 = vrot.lane.b32.xlu0 %v3493, 8
        %v4390 = vpop.permute.xlu0 %4389
        %4391 = vrot.lane.b32.xlu0 %v3575, 8
        %v4392 = vpop.permute.xlu0 %4391
        %4393 = vrot.lane.b32.xlu0 %v3580, 8
        %v4394 = vpop.permute.xlu0 %4393
        %4403 = vrot.lane.b32.xlu0 %v3888, 16
        %v4404 = vpop.permute.xlu0 %4403
        %4405 = vrot.lane.b32.xlu0 %v3893, 16
        %v4406 = vpop.permute.xlu0 %4405
        %4407 = vrot.lane.b32.xlu0 %v3975, 16
        %v4408 = vpop.permute.xlu0 %4407
        %4409 = vrot.lane.b32.xlu0 %v3980, 16
        %v4410 = vpop.permute.xlu0 %4409
        %4419 = vrot.lane.b32.xlu0 %v4288, 24
        %v4420 = vpop.permute.xlu0 %4419
        %4421 = vrot.lane.b32.xlu0 %v4293, 24
        %v4422 = vpop.permute.xlu0 %4421
        %4423 = vrot.lane.b32.xlu0 %v4375, 24
        %v4424 = vpop.permute.xlu0 %4423
        %4425 = vrot.lane.b32.xlu0 %v4380, 24
        %v4426 = vpop.permute.xlu0 %4425
        %v4431 = vsel %vm550, %v3088, %v4388
        %v4432 = vsel %vm550, %v3093, %v4390
        %v4433 = vsel %vm550, %v3175, %v4392
        %v4434 = vsel %vm550, %v3180, %v4394
        %v4435 = vsel %vm723, %v4431, %v4404
        %v4436 = vsel %vm723, %v4432, %v4406
        %v4437 = vsel %vm723, %v4433, %v4408
        %v4438 = vsel %vm723, %v4434, %v4410
        %v4439 = vsel %vm2198, %v4435, %v4420
        %v4440 = vsel %vm2198, %v4436, %v4422
        %v4441 = vsel %vm2198, %v4437, %v4424
        %v4442 = vsel %vm2198, %v4438, %v4426
        %s4443 = scalar_lea.vmem [#allocation6], 32
        %v4444 = vld [vmem:[%s4443] sm:$0xff]
        %v4445 = vld [vmem:[%s4443 + $0x8] sm:$0xff]
        %v4446 = vld [vmem:[%s4443 + $0x10] sm:$0xff]
        %v4447 = vld [vmem:[%s4443 + $0x18] sm:$0xff]
        %v4448 = vld [vmem:[%s2684 + $0x2] sm:$0x1]
        %v4449 = vlaneseq
        %v4450 = vshrl.u32 %v4449, 7
        %v4451 = vsub.s32 0, %v4450
        %v4452 = vrot.slane %v4448, %v4451
        %v4454 = vsel %vm446, %v4439, 0
        %v4457 = vsel %vm446, %v4440, 0
        %v4460 = vsel %vm446, %v4441, 0
        %v4463 = vsel %vm446, %v4442, 0
        %4465 = vmatprep.subr.mxu0 0.0
        %4466 = vmatpush1.msra.mxu0 0.0
        %4467 = vmatprep.subr.mxu0 0.0
        %4468 = vmatpush1.msra.mxu0 0.0
        %4469 = vmatprep.subr.mxu0 0.0
        %4470 = vmatpush1.msra.mxu0 0.0
        %4471 = vmatprep.subr.mxu0 0.0
        %4472 = vmatpush1.msra.mxu0 0.0
        %4473 = vmatprep.subr.mxu0 0.0
        %4474 = vmatpush1.msra.mxu0 0.0
        %4475 = vmatprep.subr.mxu0 0.0
        %4476 = vmatpush1.msra.mxu0 0.0
        %4477 = vmatprep.subr.mxu0 0.0
        %4478 = vmatpush1.msra.mxu0 0.0
        %4479 = vmatprep.subr.mxu0 0.0
        %4480 = vmatpush1.msra.mxu0 0.0
        %4481 = vmatprep.subr.mxu0 0.0
        %4482 = vmatpush1.msra.mxu0 0.0
        %4483 = vmatprep.subr.mxu0 0.0
        %4484 = vmatpush1.msra.mxu0 0.0
        %4485 = vmatprep.subr.mxu0 0.0
        %4486 = vmatpush1.msra.mxu0 0.0
        %4487 = vmatprep.subr.mxu0 0.0
        %4488 = vmatpush1.msra.mxu0 0.0
        %4489 = vmatprep.subr.mxu0 0.0
        %4490 = vmatpush1.msra.mxu0 %v4447
        %4491 = vmatprep.subr.mxu0 0.0
        %4492 = vmatpush1.msra.mxu0 %v4446
        %4493 = vmatprep.subr.mxu0 0.0
        %4494 = vmatpush1.msra.mxu0 %v4445
        %4495 = vmatprep.subr.mxu0 0.0
        %4496 = vmatpush1.msra.mxu0 %v4444
        %4497 = vmatprep.subr.mxu0 0.0
        %4498 = vmatpush2.msra.mxu0 0.0
        %4499 = vmatprep.subr.mxu0 0.0
        %4500 = vmatpush2.msra.mxu0 0.0
        %4501 = vmatprep.subr.mxu0 0.0
        %4502 = vmatpush2.msra.mxu0 0.0
        %4503 = vmatprep.subr.mxu0 0.0
        %4504 = vmatpush2.msra.mxu0 0.0
        %4505 = vmatprep.subr.mxu0 0.0
        %4506 = vmatpush2.msra.mxu0 0.0
        %4507 = vmatprep.subr.mxu0 0.0
        %4508 = vmatpush2.msra.mxu0 0.0
        %4509 = vmatprep.subr.mxu0 0.0
        %4510 = vmatpush2.msra.mxu0 0.0
        %4511 = vmatprep.subr.mxu0 0.0
        %4512 = vmatpush2.msra.mxu0 0.0
        %4513 = vmatprep.subr.mxu0 0.0
        %4514 = vmatpush2.msra.mxu0 0.0
        %4515 = vmatprep.subr.mxu0 0.0
        %4516 = vmatpush2.msra.mxu0 0.0
        %4517 = vmatprep.subr.mxu0 0.0
        %4518 = vmatpush2.msra.mxu0 0.0
        %4519 = vmatprep.subr.mxu0 0.0
        %4520 = vmatpush2.msra.mxu0 0.0
        %4521 = vmatprep.subr.mxu0 0.0
        %4522 = vmatpush2.msra.mxu0 0.0
        %4523 = vmatprep.subr.mxu0 0.0
        %4524 = vmatpush2.msra.mxu0 0.0
        %4525 = vmatprep.subr.mxu0 0.0
        %4526 = vmatpush2.msra.mxu0 0.0
        %4527 = vmatprep.subr.mxu0 0.0
        %4528 = vmatpush2.msra.mxu0 0.0
        %4529 = vmatprep.mubr.f32.mxu0 0.0
        %4530 = vmatmul.mubr.f32.gmra.mxu0 %v4454
        %v4531 = vpop.f32.mrf.mxu0
        %v4532 = vadd.f32 %v4452, %v4531
        %v4533 = vpop.f32.mrf.mxu0
        %4534 = vmatprep.mubr.f32.mxu0 0.0
        %4535 = vmatmul.mubr.f32.gmra.mxu0 %v4457
        %v4536 = vpop.f32.mrf.mxu0
        %v4537 = vadd.f32 %v4452, %v4536
        %v4538 = vpop.f32.mrf.mxu0
        %4539 = vmatprep.mubr.f32.mxu0 0.0
        %4540 = vmatmul.mubr.f32.gmra.mxu0 %v4460
        %v4541 = vpop.f32.mrf.mxu0
        %v4542 = vadd.f32 %v4452, %v4541
        %v4543 = vpop.f32.mrf.mxu0
        %4544 = vmatprep.mubr.f32.mxu0 0.0
        %4545 = vmatmul.mubr.f32.gmra.mxu0 %v4463
        %v4546 = vpop.f32.mrf.mxu0
        %v4547 = vadd.f32 %v4452, %v4546
        %v4548 = vpop.f32.mrf.mxu0
        %4549 = vdwg.mxu0
        %v4550 = vadd.f32 %v2675, %v4532
        %v4551 = vadd.f32 %v2676, %v4537
        %v4552 = vadd.f32 %v2677, %v4542
        %v4553 = vadd.f32 %v2678, %v4547
        %v4554 = vld [vmem:[%s2684 + $0x3] sm:$0x1]
        %v4555 = vld [vmem:[%s2684 + $0x4] sm:$0x1]
        %v4556 = vsel %vm446, %v4550, 0.0
        %4557 = vadd.xlane.f32.xlu0 %v4556
        %v4558 = vpop.xlane.xlu0 %4557
        %v4559 = vsel %vm446, %v4551, 0.0
        %4560 = vadd.xlane.f32.xlu0 %v4559
        %v4561 = vpop.xlane.xlu0 %4560
        %v4562 = vsel %vm446, %v4552, 0.0
        %4563 = vadd.xlane.f32.xlu0 %v4562
        %v4564 = vpop.xlane.xlu0 %4563
        %v4565 = vsel %vm446, %v4553, 0.0
        %4566 = vadd.xlane.f32.xlu0 %v4565
        %v4567 = vpop.xlane.xlu0 %4566
        %v4568 = vmul.f32 %v4558, %v2327
        %v4569 = vmul.f32 %v4561, %v2327
        %v4570 = vmul.f32 %v4564, %v2327
        %v4571 = vmul.f32 %v4567, %v2327
        %v4572 = vsub.f32 %v4550, %v4568
        %v4573 = vsub.f32 %v4551, %v4569
        %v4574 = vsub.f32 %v4552, %v4570
        %v4575 = vsub.f32 %v4553, %v4571
        %v4576 = vmul.f32 %v4572, %v4572
        %v4577 = vmul.f32 %v4573, %v4573
        %v4578 = vmul.f32 %v4574, %v4574
        %v4579 = vmul.f32 %v4575, %v4575
        %v4580 = vsel %vm446, %v4576, 0.0
        %4581 = vadd.xlane.f32.xlu0 %v4580
        %v4582 = vpop.xlane.xlu0 %4581
        %v4583 = vsel %vm446, %v4577, 0.0
        %4584 = vadd.xlane.f32.xlu0 %v4583
        %v4585 = vpop.xlane.xlu0 %4584
        %v4586 = vsel %vm446, %v4578, 0.0
        %4587 = vadd.xlane.f32.xlu0 %v4586
        %v4588 = vpop.xlane.xlu0 %4587
        %v4589 = vsel %vm446, %v4579, 0.0
        %4590 = vadd.xlane.f32.xlu0 %v4589
        %v4591 = vpop.xlane.xlu0 %4590
        %v4592 = vmul.f32 %v4582, %v2327
        %v4593 = vmul.f32 %v4585, %v2327
        %v4594 = vmul.f32 %v4588, %v2327
        %v4595 = vmul.f32 %v4591, %v2327
        %v4596 = vadd.f32 %v4592, 1e-05
        %v4597 = vadd.f32 %v4593, 1e-05
        %v4598 = vadd.f32 %v4594, 1e-05
        %v4599 = vadd.f32 %v4595, 1e-05
        %v4600 = vrsqrt.pop %v4596
        %v4601 = vrsqrt.pop %v4597
        %v4602 = vrsqrt.pop %v4598
        %v4603 = vrsqrt.pop %v4599
        %v4604 = vmul.f32 %v4572, %v4600
        %v4605 = vmul.f32 %v4573, %v4601
        %v4606 = vmul.f32 %v4574, %v4602
        %v4607 = vmul.f32 %v4575, %v4603
        %v4608 = vlaneseq
        %v4609 = vshrl.u32 %v4608, 7
        %v4610 = vsub.s32 0, %v4609
        %v4611 = vrot.slane %v4554, %v4610
        %v4612 = vmul.f32 %v4604, %v4611
        %v4613 = vmul.f32 %v4605, %v4611
        %v4614 = vmul.f32 %v4606, %v4611
        %v4615 = vmul.f32 %v4607, %v4611
        %v4616 = vlaneseq
        %v4617 = vshrl.u32 %v4616, 7
        %v4618 = vsub.s32 0, %v4617
        %v4619 = vrot.slane %v4555, %v4618
        %v4620 = vadd.f32 %v4612, %v4619
        %v4621 = vadd.f32 %v4613, %v4619
        %v4622 = vadd.f32 %v4614, %v4619
        %v4623 = vadd.f32 %v4615, %v4619
        %s4624 = scalar_lea.vmem [#allocation7], 32
        %v4625 = vld [vmem:[%s4624] sm:$0xff]
        %v4626 = vld [vmem:[%s4624 + $0x8] sm:$0xff]
        %v4627 = vld [vmem:[%s4624 + $0x10] sm:$0xff]
        %v4628 = vld [vmem:[%s4624 + $0x18] sm:$0xff]
        %v4629 = vld [vmem:[%s2684 + $0x1] sm:$0x1]
        %v4630 = vlaneseq
        %v4631 = vshrl.u32 %v4630, 7
        %v4632 = vsub.s32 0, %v4631
        %v4633 = vrot.slane %v4629, %v4632
        %v4635 = vsel %vm446, %v4620, 0
        %v4638 = vsel %vm446, %v4621, 0
        %v4641 = vsel %vm446, %v4622, 0
        %v4644 = vsel %vm446, %v4623, 0
        %4646 = vmatprep.subr.mxu0 0.0
        %4647 = vmatpush1.msra.mxu0 0.0
        %4648 = vmatprep.subr.mxu0 0.0
        %4649 = vmatpush1.msra.mxu0 0.0
        %4650 = vmatprep.subr.mxu0 0.0
        %4651 = vmatpush1.msra.mxu0 0.0
        %4652 = vmatprep.subr.mxu0 0.0
        %4653 = vmatpush1.msra.mxu0 0.0
        %4654 = vmatprep.subr.mxu0 0.0
        %4655 = vmatpush1.msra.mxu0 0.0
        %4656 = vmatprep.subr.mxu0 0.0
        %4657 = vmatpush1.msra.mxu0 0.0
        %4658 = vmatprep.subr.mxu0 0.0
        %4659 = vmatpush1.msra.mxu0 0.0
        %4660 = vmatprep.subr.mxu0 0.0
        %4661 = vmatpush1.msra.mxu0 0.0
        %4662 = vmatprep.subr.mxu0 0.0
        %4663 = vmatpush1.msra.mxu0 0.0
        %4664 = vmatprep.subr.mxu0 0.0
        %4665 = vmatpush1.msra.mxu0 0.0
        %4666 = vmatprep.subr.mxu0 0.0
        %4667 = vmatpush1.msra.mxu0 0.0
        %4668 = vmatprep.subr.mxu0 0.0
        %4669 = vmatpush1.msra.mxu0 0.0
        %4670 = vmatprep.subr.mxu0 0.0
        %4671 = vmatpush1.msra.mxu0 %v4628
        %4672 = vmatprep.subr.mxu0 0.0
        %4673 = vmatpush1.msra.mxu0 %v4627
        %4674 = vmatprep.subr.mxu0 0.0
        %4675 = vmatpush1.msra.mxu0 %v4626
        %4676 = vmatprep.subr.mxu0 0.0
        %4677 = vmatpush1.msra.mxu0 %v4625
        %4678 = vmatprep.subr.mxu0 0.0
        %4679 = vmatpush2.msra.mxu0 0.0
        %4680 = vmatprep.subr.mxu0 0.0
        %4681 = vmatpush2.msra.mxu0 0.0
        %4682 = vmatprep.subr.mxu0 0.0
        %4683 = vmatpush2.msra.mxu0 0.0
        %4684 = vmatprep.subr.mxu0 0.0
        %4685 = vmatpush2.msra.mxu0 0.0
        %4686 = vmatprep.subr.mxu0 0.0
        %4687 = vmatpush2.msra.mxu0 0.0
        %4688 = vmatprep.subr.mxu0 0.0
        %4689 = vmatpush2.msra.mxu0 0.0
        %4690 = vmatprep.subr.mxu0 0.0
        %4691 = vmatpush2.msra.mxu0 0.0
        %4692 = vmatprep.subr.mxu0 0.0
        %4693 = vmatpush2.msra.mxu0 0.0
        %4694 = vmatprep.subr.mxu0 0.0
        %4695 = vmatpush2.msra.mxu0 0.0
        %4696 = vmatprep.subr.mxu0 0.0
        %4697 = vmatpush2.msra.mxu0 0.0
        %4698 = vmatprep.subr.mxu0 0.0
        %4699 = vmatpush2.msra.mxu0 0.0
        %4700 = vmatprep.subr.mxu0 0.0
        %4701 = vmatpush2.msra.mxu0 0.0
        %4702 = vmatprep.subr.mxu0 0.0
        %4703 = vmatpush2.msra.mxu0 0.0
        %4704 = vmatprep.subr.mxu0 0.0
        %4705 = vmatpush2.msra.mxu0 0.0
        %4706 = vmatprep.subr.mxu0 0.0
        %4707 = vmatpush2.msra.mxu0 0.0
        %4708 = vmatprep.subr.mxu0 0.0
        %4709 = vmatpush2.msra.mxu0 0.0
        %4710 = vmatprep.mubr.f32.mxu0 0.0
        %4711 = vmatmul.mubr.f32.gmra.mxu0 %v4635
        %v4712 = vpop.f32.mrf.mxu0
        %v4713 = vadd.f32 %v4633, %v4712
        %v4714 = vpop.f32.mrf.mxu0
        %4715 = vmatprep.mubr.f32.mxu0 0.0
        %4716 = vmatmul.mubr.f32.gmra.mxu0 %v4638
        %v4717 = vpop.f32.mrf.mxu0
        %v4718 = vadd.f32 %v4633, %v4717
        %v4719 = vpop.f32.mrf.mxu0
        %4720 = vmatprep.mubr.f32.mxu0 0.0
        %4721 = vmatmul.mubr.f32.gmra.mxu0 %v4641
        %v4722 = vpop.f32.mrf.mxu0
        %v4723 = vadd.f32 %v4633, %v4722
        %v4724 = vpop.f32.mrf.mxu0
        %4725 = vmatprep.mubr.f32.mxu0 0.0
        %4726 = vmatmul.mubr.f32.gmra.mxu0 %v4644
        %v4727 = vpop.f32.mrf.mxu0
        %v4728 = vadd.f32 %v4633, %v4727
        %v4729 = vpop.f32.mrf.mxu0
        %4730 = vdwg.mxu0
        %v4731 = vmax.f32 %v4713, 0.0
        %v4732 = vmax.f32 %v4718, 0.0
        %v4733 = vmax.f32 %v4723, 0.0
        %v4734 = vmax.f32 %v4728, 0.0
        %s4735 = scalar_lea.vmem %s6, 64
        %v4736 = vld [vmem:[%s4735] sm:$0xff]
        %v4737 = vld [vmem:[%s4735 + $0x8] sm:$0xff]
        %v4738 = vld [vmem:[%s4735 + $0x10] sm:$0xff]
        %v4739 = vld [vmem:[%s4735 + $0x18] sm:$0xff]
        %v4740 = vld [vmem:[%s4735 + $0x20] sm:$0xff]
        %v4741 = vld [vmem:[%s4735 + $0x28] sm:$0xff]
        %v4742 = vld [vmem:[%s4735 + $0x30] sm:$0xff]
        %v4743 = vld [vmem:[%s4735 + $0x38] sm:$0xff]
        %v4744 = vld [vmem:[%s2684 + $0x5] sm:$0x1]
        %v4745 = vlaneseq
        %v4746 = vshrl.u32 %v4745, 7
        %v4747 = vsub.s32 0, %v4746
        %v4748 = vrot.slane %v4744, %v4747
        %v4750 = vsel %vm2507, %v4731, 0
        %v4753 = vsel %vm2507, %v4732, 0
        %v4756 = vsel %vm2507, %v4733, 0
        %v4759 = vsel %vm2507, %v4734, 0
        %4761 = vmatprep.subr.mxu0 0.0
        %4762 = vmatpush1.msra.mxu0 0.0
        %4763 = vmatprep.subr.mxu0 0.0
        %4764 = vmatpush1.msra.mxu0 0.0
        %4765 = vmatprep.subr.mxu0 0.0
        %4766 = vmatpush1.msra.mxu0 0.0
        %4767 = vmatprep.subr.mxu0 0.0
        %4768 = vmatpush1.msra.mxu0 0.0
        %4769 = vmatprep.subr.mxu0 0.0
        %4770 = vmatpush1.msra.mxu0 0.0
        %4771 = vmatprep.subr.mxu0 0.0
        %4772 = vmatpush1.msra.mxu0 0.0
        %4773 = vmatprep.subr.mxu0 0.0
        %4774 = vmatpush1.msra.mxu0 0.0
        %4775 = vmatprep.subr.mxu0 0.0
        %4776 = vmatpush1.msra.mxu0 0.0
        %4777 = vmatprep.subr.mxu0 0.0
        %4778 = vmatpush1.msra.mxu0 %v4743
        %4779 = vmatprep.subr.mxu0 0.0
        %4780 = vmatpush1.msra.mxu0 %v4742
        %4781 = vmatprep.subr.mxu0 0.0
        %4782 = vmatpush1.msra.mxu0 %v4741
        %4783 = vmatprep.subr.mxu0 0.0
        %4784 = vmatpush1.msra.mxu0 %v4740
        %4785 = vmatprep.subr.mxu0 0.0
        %4786 = vmatpush1.msra.mxu0 %v4739
        %4787 = vmatprep.subr.mxu0 0.0
        %4788 = vmatpush1.msra.mxu0 %v4738
        %4789 = vmatprep.subr.mxu0 0.0
        %4790 = vmatpush1.msra.mxu0 %v4737
        %4791 = vmatprep.subr.mxu0 0.0
        %4792 = vmatpush1.msra.mxu0 %v4736
        %4793 = vmatprep.subr.mxu0 0.0
        %4794 = vmatpush2.msra.mxu0 0.0
        %4795 = vmatprep.subr.mxu0 0.0
        %4796 = vmatpush2.msra.mxu0 0.0
        %4797 = vmatprep.subr.mxu0 0.0
        %4798 = vmatpush2.msra.mxu0 0.0
        %4799 = vmatprep.subr.mxu0 0.0
        %4800 = vmatpush2.msra.mxu0 0.0
        %4801 = vmatprep.subr.mxu0 0.0
        %4802 = vmatpush2.msra.mxu0 0.0
        %4803 = vmatprep.subr.mxu0 0.0
        %4804 = vmatpush2.msra.mxu0 0.0
        %4805 = vmatprep.subr.mxu0 0.0
        %4806 = vmatpush2.msra.mxu0 0.0
        %4807 = vmatprep.subr.mxu0 0.0
        %4808 = vmatpush2.msra.mxu0 0.0
        %4809 = vmatprep.subr.mxu0 0.0
        %4810 = vmatpush2.msra.mxu0 0.0
        %4811 = vmatprep.subr.mxu0 0.0
        %4812 = vmatpush2.msra.mxu0 0.0
        %4813 = vmatprep.subr.mxu0 0.0
        %4814 = vmatpush2.msra.mxu0 0.0
        %4815 = vmatprep.subr.mxu0 0.0
        %4816 = vmatpush2.msra.mxu0 0.0
        %4817 = vmatprep.subr.mxu0 0.0
        %4818 = vmatpush2.msra.mxu0 0.0
        %4819 = vmatprep.subr.mxu0 0.0
        %4820 = vmatpush2.msra.mxu0 0.0
        %4821 = vmatprep.subr.mxu0 0.0
        %4822 = vmatpush2.msra.mxu0 0.0
        %4823 = vmatprep.subr.mxu0 0.0
        %4824 = vmatpush2.msra.mxu0 0.0
        %4825 = vmatprep.mubr.f32.mxu0 0.0
        %4826 = vmatmul.mubr.f32.gmra.mxu0 %v4750
        %v4827 = vpop.f32.mrf.mxu0
        %v4828 = vadd.f32 %v4748, %v4827
        %v4829 = vpop.f32.mrf.mxu0
        %4830 = vmatprep.mubr.f32.mxu0 0.0
        %4831 = vmatmul.mubr.f32.gmra.mxu0 %v4753
        %v4832 = vpop.f32.mrf.mxu0
        %v4833 = vadd.f32 %v4748, %v4832
        %v4834 = vpop.f32.mrf.mxu0
        %4835 = vmatprep.mubr.f32.mxu0 0.0
        %4836 = vmatmul.mubr.f32.gmra.mxu0 %v4756
        %v4837 = vpop.f32.mrf.mxu0
        %v4838 = vadd.f32 %v4748, %v4837
        %v4839 = vpop.f32.mrf.mxu0
        %4840 = vmatprep.mubr.f32.mxu0 0.0
        %4841 = vmatmul.mubr.f32.gmra.mxu0 %v4759
        %v4842 = vpop.f32.mrf.mxu0
        %v4843 = vadd.f32 %v4748, %v4842
        %v4844 = vpop.f32.mrf.mxu0
        %4845 = vdwg.mxu0
        %v4846 = vadd.f32 %v4620, %v4828
        %v4847 = vadd.f32 %v4621, %v4833
        %v4848 = vadd.f32 %v4622, %v4838
        %v4849 = vadd.f32 %v4623, %v4843
        %v4850 = vld [vmem:[%s2684 + $0x6] sm:$0x1]
        %v4851 = vld [vmem:[%s2684 + $0x7] sm:$0x1]
        %v4852 = vsel %vm446, %v4846, 0.0
        %4853 = vadd.xlane.f32.xlu0 %v4852
        %v4854 = vpop.xlane.xlu0 %4853
        %v4855 = vsel %vm446, %v4847, 0.0
        %4856 = vadd.xlane.f32.xlu0 %v4855
        %v4857 = vpop.xlane.xlu0 %4856
        %v4858 = vsel %vm446, %v4848, 0.0
        %4859 = vadd.xlane.f32.xlu0 %v4858
        %v4860 = vpop.xlane.xlu0 %4859
        %v4861 = vsel %vm446, %v4849, 0.0
        %4862 = vadd.xlane.f32.xlu0 %v4861
        %v4863 = vpop.xlane.xlu0 %4862
        %v4864 = vmul.f32 %v4854, %v2327
        %v4865 = vmul.f32 %v4857, %v2327
        %v4866 = vmul.f32 %v4860, %v2327
        %v4867 = vmul.f32 %v4863, %v2327
        %v4868 = vsub.f32 %v4846, %v4864
        %v4869 = vsub.f32 %v4847, %v4865
        %v4870 = vsub.f32 %v4848, %v4866
        %v4871 = vsub.f32 %v4849, %v4867
        %v4872 = vmul.f32 %v4868, %v4868
        %v4873 = vmul.f32 %v4869, %v4869
        %v4874 = vmul.f32 %v4870, %v4870
        %v4875 = vmul.f32 %v4871, %v4871
        %v4876 = vsel %vm446, %v4872, 0.0
        %4877 = vadd.xlane.f32.xlu0 %v4876
        %v4878 = vpop.xlane.xlu0 %4877
        %v4879 = vsel %vm446, %v4873, 0.0
        %4880 = vadd.xlane.f32.xlu0 %v4879
        %v4881 = vpop.xlane.xlu0 %4880
        %v4882 = vsel %vm446, %v4874, 0.0
        %4883 = vadd.xlane.f32.xlu0 %v4882
        %v4884 = vpop.xlane.xlu0 %4883
        %v4885 = vsel %vm446, %v4875, 0.0
        %4886 = vadd.xlane.f32.xlu0 %v4885
        %v4887 = vpop.xlane.xlu0 %4886
        %v4888 = vmul.f32 %v4878, %v2327
        %v4889 = vmul.f32 %v4881, %v2327
        %v4890 = vmul.f32 %v4884, %v2327
        %v4891 = vmul.f32 %v4887, %v2327
        %v4892 = vadd.f32 %v4888, 1e-05
        %v4893 = vadd.f32 %v4889, 1e-05
        %v4894 = vadd.f32 %v4890, 1e-05
        %v4895 = vadd.f32 %v4891, 1e-05
        %v4896 = vrsqrt.pop %v4892
        %v4897 = vrsqrt.pop %v4893
        %v4898 = vrsqrt.pop %v4894
        %v4899 = vrsqrt.pop %v4895
        %v4900 = vmul.f32 %v4868, %v4896
        %v4901 = vmul.f32 %v4869, %v4897
        %v4902 = vmul.f32 %v4870, %v4898
        %v4903 = vmul.f32 %v4871, %v4899
        %v4904 = vlaneseq
        %v4905 = vshrl.u32 %v4904, 7
        %v4906 = vsub.s32 0, %v4905
        %v4907 = vrot.slane %v4850, %v4906
        %v4908 = vmul.f32 %v4900, %v4907
        %v4909 = vmul.f32 %v4901, %v4907
        %v4910 = vmul.f32 %v4902, %v4907
        %v4911 = vmul.f32 %v4903, %v4907
        %v4912 = vlaneseq
        %v4913 = vshrl.u32 %v4912, 7
        %v4914 = vsub.s32 0, %v4913
        %v4915 = vrot.slane %v4851, %v4914
        %v4916 = vadd.f32 %v4908, %v4915
        %v4917 = vadd.f32 %v4909, %v4915
        %v4918 = vadd.f32 %v4910, %v4915
        %v4919 = vadd.f32 %v4911, %v4915
        %4920 = vst.msk [vmem:[%s408] sm:$0xff] %vm446, %v4916
        %4921 = vst.msk [vmem:[%s408 + $0x8] sm:$0xff] %vm446, %v4917
        %4922 = vst.msk [vmem:[%s408 + $0x10] sm:$0xff] %vm446, %v4918
        %4923 = vst.msk [vmem:[%s408 + $0x18] sm:$0xff] %vm446, %v4919
        %s4924 = smul.u32 2, %s24
        %p4925 = scmp.lt.s32.totalorder %s4924, 3
        %s4926 = scalar_select %p4925, %s4924, 3
        %s4927 = smul.addr %s4926, 2
        %s4928 = smul.addr %s4927, 8
        %s4929 = scalar_lea.vmem %s8, %s4928
        // Predicated region
        $region73: #{transformer_encoder_forward.1} parent=51 // pred_check
          %p4930 = pneg %p220
        $region74: #{transformer_encoder_forward.1} parent=51 // pred_check_branch
          %4932 = sbr.rel (%p4930) target = $region76
        $region75: #{transformer_encoder_forward.1} parent=51 // pred_region
          %s4933 = smul.u32 2, %s24
        $region76: #{transformer_encoder_forward.1} parent=51 // pred_fallthru
          _
      $region52: #{transformer_encoder_forward.1} parent=5 // pred_fallthru
        _
      %p4934 = scmp.le.s32.totalorder 2, %s19
      // Predicated region
      $region77: #{transformer_encoder_forward.1} parent=5 // pred_check
        %p4935 = pneg %p4934
      $region78: #{transformer_encoder_forward.1} parent=5 // pred_check_branch
        %4937 = sbr.rel (%p4935) target = $region80
      $region79: #{transformer_encoder_forward.1} parent=5 // pred_region
        %s4938 = ssub.s32 %s19, 2
        // Predicated region
        $region81: #{transformer_encoder_forward.1} parent=79 // pred_check
          %p4939 = pneg %p226
        $region82: #{transformer_encoder_forward.1} parent=79 // pred_check_branch
          %4941 = sbr.rel (%p4939) target = $region84
        $region83: #{transformer_encoder_forward.1} parent=79 // pred_region
          %s4942 = smul.u32 2, %s25
          %p4943 = scmp.lt.s32.totalorder %s4942, 3
          %s4944 = scalar_select %p4943, %s4942, 3
          %s4945 = smul.addr %s4944, 2
          %s4946 = smul.addr %s4945, 8
          %s4947 = scalar_lea.vmem %s8, %s4946
        $region84: #{transformer_encoder_forward.1} parent=79 // pred_fallthru
          _
      $region80: #{transformer_encoder_forward.1} parent=5 // pred_fallthru
        _
    $region6: #{transformer_encoder_forward.1} parent=1 // loop_footer
      %s23 = sadd.s32 1, %s19
    $region7: #{transformer_encoder_forward.1} parent=1 // loop_footer_branch
      %18 = sbr.rel target = $region3
    $region8: #{transformer_encoder_forward.1} parent=1 // loop_exit
      _
    %4948 = vsyncpa [#allocation3], 1
    %s4949 = scalar_lea.sflag [#allocation3], 1
    %4950 = vsyncpa %s4949, 1
    %4951 = vsyncpa [#allocation5], 1
    %4952 = vsyncpa [#allocation8], 1

</llo_original>
